<compile_context>
chip_gen: v6e
topology: v6e:2x2x1
jax: 0.10.0
libtpu: 0.0.40
codegen_flags: <defaults>
</compile_context>

<pallas_src>
import functools

import jax
import jax.numpy as jnp
from jax.experimental import pallas as pl
from jax.experimental.pallas import tpu as pltpu

EMBED = 128          # d_model (module default)
NUM_HEADS = 2
HEAD_DIM = EMBED // NUM_HEADS
FF = 2048            # nn.TransformerEncoderLayer default dim_feedforward
FF_CHUNK = 512       # FFN chunking over the 2048 hidden dimension
EPS = 1e-5           # default layer_norm_eps


def _is_v7x():
    try:
        return "v7" in jax.devices()[0].device_kind.lower()
    except Exception:
        return False


_IS_V7X = _is_v7x()
# v7x: 64 MiB VMEM per TensorCore -> cap near 48 MiB.
# v5e/v6e: 128 MiB physical but small default scoped limit -> raise to 96 MiB.
_VMEM_LIMIT_BYTES = (48 << 20) if _IS_V7X else (96 << 20)


def _layernorm(x, gamma, beta):
    mu = jnp.mean(x, axis=-1, keepdims=True)
    xc = x - mu
    var = jnp.mean(xc * xc, axis=-1, keepdims=True)
    inv = jax.lax.rsqrt(var + EPS)
    return xc * inv * gamma + beta


def encoder_layer_kernel(x_ref, wqkv_ref, bqkv_ref, wo_ref, bo_ref,
                         g1_ref, be1_ref, w1_ref, bb1_ref,
                         w2_ref, bb2_ref, g2_ref, be2_ref,
                         o_ref, xin_ref, acat_ref):
    TB, S, E = x_ref.shape
    Lp = xin_ref.shape[1]          # padded length (CLS + seq + pad), multiple of 8
    L = S + 1                      # real length after CLS prepend
    T = TB * Lp

    # ---- in-kernel CLS prepend (+ pad to a sublane multiple) ----------------
    xin_ref[...] = jnp.zeros((TB, Lp, E), jnp.float32)     # CLS row + tail pad
    xin_ref[:, pl.ds(1, S), :] = x_ref[...]
    xt = xin_ref[...].reshape(T, E)                        # (T, E) f32 token slab

    # ---- QKV projection (bf16 MXU operands, f32 accumulate) -----------------
    qkv = jnp.dot(xt.astype(jnp.bfloat16), wqkv_ref[...],
                  preferred_element_type=jnp.float32) + bqkv_ref[...]   # (T, 3E)
    q = qkv[:, :E].reshape(TB, Lp, E)
    k = qkv[:, E:2 * E].reshape(TB, Lp, E)
    v = qkv[:, 2 * E:].reshape(TB, Lp, E)

    # ---- attention: TB-batched einsums per head, softmax in f32 -------------
    # TODO(synk): a single two-batch-dim 'bqhd,bkhd->bhqk' einsum was skipped
    # for Mosaic dot_general lowering safety; with H=2 and attention <15% of
    # the layer FLOPs the static 2-head loop costs little.
    scale = 1.0 / (HEAD_DIM ** 0.5)
    if Lp > L:                                              # mask padded keys
        key_ids = jax.lax.broadcasted_iota(jnp.int32, (1, 1, Lp), 2)
        key_bias = jnp.where(key_ids < L, 0.0, -1e30).astype(jnp.float32)
    for h in range(NUM_HEADS):
        sl = slice(h * HEAD_DIM, (h + 1) * HEAD_DIM)
        qh = (q[:, :, sl] * scale).astype(jnp.bfloat16)     # (TB, Lp, hd)
        kh = k[:, :, sl].astype(jnp.bfloat16)
        vh = v[:, :, sl].astype(jnp.bfloat16)
        s = jnp.einsum('bqd,bkd->bqk', qh, kh,
                       preferred_element_type=jnp.float32)  # (TB, Lp, Lp)
        if Lp > L:
            s = s + key_bias
        s = s - jnp.max(s, axis=-1, keepdims=True)
        p = jnp.exp(s)
        inv = pl.reciprocal(jnp.sum(p, axis=-1, keepdims=True), approx=True)
        p = (p * inv).astype(jnp.bfloat16)
        oh = jnp.einsum('bqk,bkd->bqd', p, vh,
                        preferred_element_type=jnp.float32) # (TB, Lp, hd)
        acat_ref[:, :, sl] = oh.astype(jnp.bfloat16)        # concat via lane halves

    # head concat folded into ONE K=128 output-projection GEMM
    attn = jnp.dot(acat_ref[...].reshape(T, E), wo_ref[...],
                   preferred_element_type=jnp.float32) + bo_ref[...]

    # ---- residual + LayerNorm1 (f32 VPU math) --------------------------------
    x1 = _layernorm(xt + attn, g1_ref[...], be1_ref[...])   # (T, E)

    # ---- feed-forward, chunked over FF=2048 (no (T,2048) f32 slab) -----------
    x1b = x1.astype(jnp.bfloat16)
    ff = jnp.zeros((T, E), jnp.float32)
    for c in range(FF // FF_CHUNK):
        lo, hi = c * FF_CHUNK, (c + 1) * FF_CHUNK
        hid = jnp.dot(x1b, w1_ref[:, lo:hi],
                      preferred_element_type=jnp.float32) + bb1_ref[:, lo:hi]
        hid = jnp.maximum(hid, 0.0).astype(jnp.bfloat16)    # ReLU
        ff = ff + jnp.dot(hid, w2_ref[lo:hi, :],
                          preferred_element_type=jnp.float32)
    ff = ff + bb2_ref[...]

    # ---- residual + LayerNorm2 ------------------------------------------------
    x2 = _layernorm(x1 + ff, g2_ref[...], be2_ref[...])
    o_ref[...] = x2.reshape(TB, Lp, E)


def _choose_tb(B, lp, target_tokens=2048):
    """Largest divisor of B giving ~target_tokens tokens per grid step.
    Prefers T = TB*lp multiples of 256 (fills v6e/v7x MXU rows).  The
    '>=2 grid steps' fallback is applied only on 2-TensorCore chips (v7x)."""
    cap = max(1, target_tokens // lp)
    divs = [d for d in range(1, B + 1) if B % d == 0]
    cands = [d for d in divs if d <= cap] or [1]
    aligned = [d for d in cands if (d * lp) % 256 == 0]
    tb = max(aligned or cands)
    if _IS_V7X and B // tb < 2:
        smaller = [d for d in divs if d < tb]
        if smaller:
            tb = max(smaller)
    return tb


def _const_spec(arr):
    # Whole-array block pinned at block index 0 -> DMA'd once, stays resident.
    # TODO(synk): pipeline_mode=pl.Buffered(1) would drop the redundant second
    # weight buffer (~1.2 MiB headroom); left at the default for lowering safety.
    zeros = (0,) * arr.ndim
    return pl.BlockSpec(arr.shape, lambda b, _z=zeros: _z)


def _cost_estimate(B, S, lp):
    E = EMBED
    tok = B * lp
    flops = (2 * tok * (E * 3 * E + E * E + 2 * E * FF)
             + 4 * B * NUM_HEADS * lp * lp * HEAD_DIM)
    transcendentals = B * NUM_HEADS * lp * lp
    param_bytes = 2 * (E * 3 * E + E * E + 2 * E * FF) + 4 * (3 * E + 6 * E + FF)
    bytes_accessed = 4 * B * S * E + 4 * B * lp * E + param_bytes
    return pl.CostEstimate(flops=flops, transcendentals=transcendentals,
                           bytes_accessed=bytes_accessed)


@functools.partial(jax.jit, static_argnames=("tb", "lp"))
def _forward(x, params, tb, lp):
    B, S, E = x.shape
    in_specs = [pl.BlockSpec((tb, S, E), lambda b: (b, 0, 0))]
    in_specs += [_const_spec(p) for p in params]
    return pl.pallas_call(
        encoder_layer_kernel,
        out_shape=jax.ShapeDtypeStruct((B, lp, E), jnp.float32),
        grid=(B // tb,),
        in_specs=in_specs,
        out_specs=pl.BlockSpec((tb, lp, E), lambda b: (b, 0, 0)),
        scratch_shapes=[pltpu.VMEM((tb, lp, E), jnp.float32),    # CLS-prepended x
                        pltpu.VMEM((tb, lp, E), jnp.bfloat16)],  # head concat
        compiler_params=pltpu.CompilerParams(
            dimension_semantics=("parallel",),
            vmem_limit_bytes=_VMEM_LIMIT_BYTES),
        cost_estimate=_cost_estimate(B, S, lp),
    )(x, *params)


def transformer_align(x, params):
    """x: (B, S, E) float32.  Returns (B, S+1, E) float32 (CLS token prepended)."""
    B, S, E = x.shape
    assert E == EMBED
    L = S + 1
    lp = ((L + 7) // 8) * 8        # sublane-align so in-kernel reshapes are free
    tb = _choose_tb(B, lp)
    out = _forward(x, params, tb, lp)
    if lp != L:
        out = out[:, :L, :]
    return out


def init_params(key):
    """Deterministic synthetic parameters matching nn.TransformerEncoderLayer
    (d_model=128, nhead=2, dim_feedforward=2048).  Matmul weights stored bf16."""
    ks = jax.random.split(key, 8)
    s = 0.05
    in_proj_w = jax.random.normal(ks[0], (3 * EMBED, EMBED), jnp.float32) * s
    in_proj_b = jax.random.normal(ks[1], (3 * EMBED,), jnp.float32) * s
    out_proj_w = jax.random.normal(ks[2], (EMBED, EMBED), jnp.float32) * s
    out_proj_b = jax.random.normal(ks[3], (EMBED,), jnp.float32) * s
    lin1_w = jax.random.normal(ks[4], (FF, EMBED), jnp.float32) * s
    lin1_b = jax.random.normal(ks[5], (FF,), jnp.float32) * s
    lin2_w = jax.random.normal(ks[6], (EMBED, FF), jnp.float32) * s
    lin2_b = jax.random.normal(ks[7], (EMBED,), jnp.float32) * s
    g1 = jnp.ones((EMBED,), jnp.float32)
    be1 = jnp.zeros((EMBED,), jnp.float32)
    g2 = jnp.ones((EMBED,), jnp.float32)
    be2 = jnp.zeros((EMBED,), jnp.float32)

    # pre-transpose weights (glue) so the kernel does x @ W; matmul weights bf16
    # (MXU operands), biases / LN params stay f32.
    params = (
        in_proj_w.T.astype(jnp.bfloat16),      # (E, 3E)
        in_proj_b.reshape(1, -1),              # (1, 3E) f32
        out_proj_w.T.astype(jnp.bfloat16),     # (E, E)
        out_proj_b.reshape(1, -1),             # (1, E) f32
        g1.reshape(1, -1), be1.reshape(1, -1),
        lin1_w.T.astype(jnp.bfloat16),         # (E, FF)
        lin1_b.reshape(1, -1),                 # (1, FF) f32
        lin2_w.T.astype(jnp.bfloat16),         # (FF, E)
        lin2_b.reshape(1, -1),                 # (1, E) f32
        g2.reshape(1, -1), be2.reshape(1, -1),
    )
    return params


def reference(x, params):
    """Pure-JAX (f32 math) reference of the same forward (eval-mode, post-norm)."""
    (wqkv_t, bqkv, wo_t, bo, g1, be1, w1_t, bb1, w2_t, bb2, g2, be2) = params
    wqkv_t = wqkv_t.astype(jnp.float32)
    wo_t = wo_t.astype(jnp.float32)
    w1_t = w1_t.astype(jnp.float32)
    w2_t = w2_t.astype(jnp.float32)
    B, S, E = x.shape
    xin = jnp.concatenate([jnp.zeros((B, 1, E), x.dtype), x], axis=1)
    qkv = xin @ wqkv_t + bqkv
    q, k, v = qkv[..., :E], qkv[..., E:2 * E], qkv[..., 2 * E:]
    scale = 1.0 / (HEAD_DIM ** 0.5)
    outs = []
    for h in range(NUM_HEADS):
        sl = slice(h * HEAD_DIM, (h + 1) * HEAD_DIM)
        s = jnp.einsum('bqd,bkd->bqk', q[..., sl] * scale, k[..., sl])
        p = jax.nn.softmax(s, axis=-1)
        outs.append(jnp.einsum('bqk,bkd->bqd', p, v[..., sl]))
    attn = jnp.concatenate(outs, axis=-1) @ wo_t + bo

    def ln(z, g, b):
        mu = jnp.mean(z, -1, keepdims=True)
        var = jnp.mean((z - mu) ** 2, -1, keepdims=True)
        return (z - mu) * jax.lax.rsqrt(var + EPS) * g + b

    x1 = ln(xin + attn, g1, be1)
    ff = jnp.maximum(x1 @ w1_t + bb1, 0.0) @ w2_t + bb2
    return ln(x1 + ff, g2, be2)


if __name__ == "__main__":
    key = jax.random.PRNGKey(0)
    kx, kp = jax.random.split(key)
    B, S = 8, 7                                  # L = S + 1 = 8 after CLS token
    x = jax.random.normal(kx, (B, S, EMBED), jnp.float32) * 0.5
    params = init_params(kp)

    out = jax.block_until_ready(transformer_align(x, params))
    ref = reference(x, params)
    assert out.shape == (B, S + 1, EMBED)
    # bf16 MXU operands + approx softmax reciprocal vs f32 reference.
    assert jnp.allclose(out, ref, atol=5e-2, rtol=5e-2), "mismatch vs reference"
    # TODO(synk): dropout layers are identity here (eval-mode semantics).
    print("KERNEL_OK")
</pallas_src>

<mosaic_0001>
module attributes {stable_mosaic.version = 11 : i64} {
  func.func @encoder_layer_kernel(%arg0: i32, %arg1: memref<8x7x128xf32, #tpu.memory_space<vmem>>, %arg2: memref<128x384xbf16, #tpu.memory_space<vmem>>, %arg3: memref<1x384xf32, #tpu.memory_space<vmem>>, %arg4: memref<128x128xbf16, #tpu.memory_space<vmem>>, %arg5: memref<1x128xf32, #tpu.memory_space<vmem>>, %arg6: memref<1x128xf32, #tpu.memory_space<vmem>>, %arg7: memref<1x128xf32, #tpu.memory_space<vmem>>, %arg8: memref<128x2048xbf16, #tpu.memory_space<vmem>>, %arg9: memref<1x2048xf32, #tpu.memory_space<vmem>>, %arg10: memref<2048x128xbf16, #tpu.memory_space<vmem>>, %arg11: memref<1x128xf32, #tpu.memory_space<vmem>>, %arg12: memref<1x128xf32, #tpu.memory_space<vmem>>, %arg13: memref<1x128xf32, #tpu.memory_space<vmem>>, %arg14: memref<8x8x128xf32, #tpu.memory_space<vmem>>, %arg15: memref<8x8x128xf32, #tpu.memory_space<vmem>>, %arg16: memref<8x8x128xbf16, #tpu.memory_space<vmem>>) attributes {dimension_semantics = [#tpu.dimension_semantics<parallel>], iteration_bounds = array<i64: 1>, scalar_prefetch = 0 : i64, scratch_operands = 2 : i64, tpu.core_type = #tpu.core_type<tc>, window_params = [{transform_indices = @transform_0, window_bounds = array<i64: 8, 7, 128>}, {pipeline_mode = #tpu.pipeline_mode<synchronous>, transform_indices = @transform_1, window_bounds = array<i64: 128, 384>}, {pipeline_mode = #tpu.pipeline_mode<synchronous>, transform_indices = @transform_2, window_bounds = array<i64: 1, 384>}, {pipeline_mode = #tpu.pipeline_mode<synchronous>, transform_indices = @transform_3, window_bounds = array<i64: 128, 128>}, {pipeline_mode = #tpu.pipeline_mode<synchronous>, transform_indices = @transform_4, window_bounds = array<i64: 1, 128>}, {pipeline_mode = #tpu.pipeline_mode<synchronous>, transform_indices = @transform_5, window_bounds = array<i64: 1, 128>}, {pipeline_mode = #tpu.pipeline_mode<synchronous>, transform_indices = @transform_6, window_bounds = array<i64: 1, 128>}, {pipeline_mode = #tpu.pipeline_mode<synchronous>, transform_indices = @transform_7, window_bounds = array<i64: 128, 2048>}, {pipeline_mode = #tpu.pipeline_mode<synchronous>, transform_indices = @transform_8, window_bounds = array<i64: 1, 2048>}, {pipeline_mode = #tpu.pipeline_mode<synchronous>, transform_indices = @transform_9, window_bounds = array<i64: 2048, 128>}, {pipeline_mode = #tpu.pipeline_mode<synchronous>, transform_indices = @transform_10, window_bounds = array<i64: 1, 128>}, {pipeline_mode = #tpu.pipeline_mode<synchronous>, transform_indices = @transform_11, window_bounds = array<i64: 1, 128>}, {pipeline_mode = #tpu.pipeline_mode<synchronous>, transform_indices = @transform_12, window_bounds = array<i64: 1, 128>}, {transform_indices = @transform_13, window_bounds = array<i64: 8, 8, 128>}]} {
    %cst = arith.constant 0.000000e+00 : f32
    %0 = vector.broadcast %cst : f32 to vector<8x8x128xf32>
    %c0 = arith.constant 0 : index
    %c0_0 = arith.constant 0 : index
    %c0_1 = arith.constant 0 : index
    %1 = vector.load %arg15[%c0, %c0_0, %c0_1] : memref<8x8x128xf32, #tpu.memory_space<vmem>>, vector<8x8x128xf32>
    tpu.vector_store %arg15[%c0, %c0_0, %c0_1], %0 {strides = array<i32>} : memref<8x8x128xf32, #tpu.memory_space<vmem>>, vector<8x8x128xf32>,
    %c0_2 = arith.constant 0 : index
    %c0_3 = arith.constant 0 : index
    %c0_4 = arith.constant 0 : index
    %2 = vector.load %arg1[%c0_2, %c0_3, %c0_4] : memref<8x7x128xf32, #tpu.memory_space<vmem>>, vector<8x7x128xf32>
    %c0_5 = arith.constant 0 : index
    %c1 = arith.constant 1 : index
    %c0_6 = arith.constant 0 : index
    %3 = vector.load %arg15[%c0_5, %c1, %c0_6] : memref<8x8x128xf32, #tpu.memory_space<vmem>>, vector<8x7x128xf32>
    tpu.vector_store %arg15[%c0_5, %c1, %c0_6], %2 {strides = array<i32>} : memref<8x8x128xf32, #tpu.memory_space<vmem>>, vector<8x7x128xf32>,
    %c0_7 = arith.constant 0 : index
    %c0_8 = arith.constant 0 : index
    %c0_9 = arith.constant 0 : index
    %4 = vector.load %arg15[%c0_7, %c0_8, %c0_9] : memref<8x8x128xf32, #tpu.memory_space<vmem>>, vector<8x8x128xf32>
    %5 = vector.shape_cast %4 : vector<8x8x128xf32> to vector<64x128xf32>
    %6 = arith.truncf %5 : vector<64x128xf32> to vector<64x128xbf16>
    %c0_10 = arith.constant 0 : index
    %c0_11 = arith.constant 0 : index
    %7 = vector.load %arg2[%c0_10, %c0_11] : memref<128x384xbf16, #tpu.memory_space<vmem>>, vector<128x384xbf16>
    %cst_12 = arith.constant dense<0.000000e+00> : vector<64x384xf32>
    %8 = tpu.matmul %6, %7, %cst_12 {dimension_numbers = #tpu.dot_dimension_numbers<[1], [0], [0], [1], [0, 0, 1, 1], [], []>} : vector<64x128xbf16>, vector<128x384xbf16>, vector<64x384xf32> -> vector<64x384xf32>
    %c0_13 = arith.constant 0 : index
    %c0_14 = arith.constant 0 : index
    %9 = vector.load %arg3[%c0_13, %c0_14] : memref<1x384xf32, #tpu.memory_space<vmem>>, vector<1x384xf32>
    %10 = vector.broadcast %9 : vector<1x384xf32> to vector<64x384xf32>
    %11 = arith.addf %8, %10 : vector<64x384xf32>
    %12 = vector.extract_strided_slice %11 {offsets = [0, 0], sizes = [64, 128], strides = [1, 1]} : vector<64x384xf32> to vector<64x128xf32>
    %13 = vector.shape_cast %12 : vector<64x128xf32> to vector<8x8x128xf32>
    %14 = vector.extract_strided_slice %11 {offsets = [0, 128], sizes = [64, 128], strides = [1, 1]} : vector<64x384xf32> to vector<64x128xf32>
    %15 = vector.shape_cast %14 : vector<64x128xf32> to vector<8x8x128xf32>
    %16 = vector.extract_strided_slice %11 {offsets = [0, 256], sizes = [64, 128], strides = [1, 1]} : vector<64x384xf32> to vector<64x128xf32>
    %17 = vector.shape_cast %16 : vector<64x128xf32> to vector<8x8x128xf32>
    %18 = vector.extract_strided_slice %13 {offsets = [0, 0, 0], sizes = [8, 8, 64], strides = [1, 1, 1]} : vector<8x8x128xf32> to vector<8x8x64xf32>
    %cst_15 = arith.constant 1.250000e-01 : f32
    %19 = vector.broadcast %cst_15 : f32 to vector<8x8x64xf32>
    %20 = arith.mulf %18, %19 : vector<8x8x64xf32>
    %21 = arith.truncf %20 : vector<8x8x64xf32> to vector<8x8x64xbf16>
    %22 = vector.extract_strided_slice %15 {offsets = [0, 0, 0], sizes = [8, 8, 64], strides = [1, 1, 1]} : vector<8x8x128xf32> to vector<8x8x64xf32>
    %23 = arith.truncf %22 : vector<8x8x64xf32> to vector<8x8x64xbf16>
    %24 = vector.extract_strided_slice %17 {offsets = [0, 0, 0], sizes = [8, 8, 64], strides = [1, 1, 1]} : vector<8x8x128xf32> to vector<8x8x64xf32>
    %25 = arith.truncf %24 : vector<8x8x64xf32> to vector<8x8x64xbf16>
    "tpu.trace_start"() <{level = 10 : i32, message = "bqd,bkd->bqk"}> : () -> ()
    %cst_16 = arith.constant dense<0.000000e+00> : vector<8x8x8xf32>
    %26 = tpu.matmul %21, %23, %cst_16 {dimension_numbers = #tpu.dot_dimension_numbers<[2], [2], [1], [1], [0, 0, 0, 1, 1, 1], [0], [0]>} : vector<8x8x64xbf16>, vector<8x8x64xbf16>, vector<8x8x8xf32> -> vector<8x8x8xf32>
    "tpu.trace_stop"() : () -> ()
    %cst_17 = arith.constant dense<0xFF800000> : vector<8x8xf32>
    %27 = vector.multi_reduction <maximumf>, %26, %cst_17 [2] : vector<8x8x8xf32> to vector<8x8xf32>
    %28 = vector.shape_cast %27 : vector<8x8xf32> to vector<8x8x1xf32>
    %29 = vector.broadcast %28 : vector<8x8x1xf32> to vector<8x8x8xf32>
    %30 = arith.subf %26, %29 : vector<8x8x8xf32>
    %31 = math.exp %30 : vector<8x8x8xf32>
    %cst_18 = arith.constant dense<0.000000e+00> : vector<8x8xf32>
    %32 = vector.multi_reduction <add>, %31, %cst_18 [2] : vector<8x8x8xf32> to vector<8x8xf32>
    %33 = vector.shape_cast %32 : vector<8x8xf32> to vector<8x8x1xf32>
    %34 = tpu.reciprocal %33 {approx = true} : vector<8x8x1xf32> -> vector<8x8x1xf32>
    %35 = vector.broadcast %34 : vector<8x8x1xf32> to vector<8x8x8xf32>
    %36 = arith.mulf %31, %35 : vector<8x8x8xf32>
    %37 = arith.truncf %36 : vector<8x8x8xf32> to vector<8x8x8xbf16>
    "tpu.trace_start"() <{level = 10 : i32, message = "bqk,bkd->bqd"}> : () -> ()
    %cst_19 = arith.constant dense<0.000000e+00> : vector<8x8x64xf32>
    %38 = tpu.matmul %37, %25, %cst_19 {dimension_numbers = #tpu.dot_dimension_numbers<[2], [1], [1], [2], [0, 0, 0, 1, 1, 2], [0], [0]>} : vector<8x8x8xbf16>, vector<8x8x64xbf16>, vector<8x8x64xf32> -> vector<8x8x64xf32>
    "tpu.trace_stop"() : () -> ()
    %39 = arith.truncf %38 : vector<8x8x64xf32> to vector<8x8x64xbf16>
    %c0_20 = arith.constant 0 : index
    %c0_21 = arith.constant 0 : index
    %c0_22 = arith.constant 0 : index
    %40 = vector.load %arg16[%c0_20, %c0_21, %c0_22] : memref<8x8x128xbf16, #tpu.memory_space<vmem>>, vector<8x8x64xbf16>
    tpu.vector_store %arg16[%c0_20, %c0_21, %c0_22], %39 {strides = array<i32>} : memref<8x8x128xbf16, #tpu.memory_space<vmem>>, vector<8x8x64xbf16>,
    %41 = vector.extract_strided_slice %13 {offsets = [0, 0, 64], sizes = [8, 8, 64], strides = [1, 1, 1]} : vector<8x8x128xf32> to vector<8x8x64xf32>
    %cst_23 = arith.constant 1.250000e-01 : f32
    %42 = vector.broadcast %cst_23 : f32 to vector<8x8x64xf32>
    %43 = arith.mulf %41, %42 : vector<8x8x64xf32>
    %44 = arith.truncf %43 : vector<8x8x64xf32> to vector<8x8x64xbf16>
    %45 = vector.extract_strided_slice %15 {offsets = [0, 0, 64], sizes = [8, 8, 64], strides = [1, 1, 1]} : vector<8x8x128xf32> to vector<8x8x64xf32>
    %46 = arith.truncf %45 : vector<8x8x64xf32> to vector<8x8x64xbf16>
    %47 = vector.extract_strided_slice %17 {offsets = [0, 0, 64], sizes = [8, 8, 64], strides = [1, 1, 1]} : vector<8x8x128xf32> to vector<8x8x64xf32>
    %48 = arith.truncf %47 : vector<8x8x64xf32> to vector<8x8x64xbf16>
    "tpu.trace_start"() <{level = 10 : i32, message = "bqd,bkd->bqk"}> : () -> ()
    %cst_24 = arith.constant dense<0.000000e+00> : vector<8x8x8xf32>
    %49 = tpu.matmul %44, %46, %cst_24 {dimension_numbers = #tpu.dot_dimension_numbers<[2], [2], [1], [1], [0, 0, 0, 1, 1, 1], [0], [0]>} : vector<8x8x64xbf16>, vector<8x8x64xbf16>, vector<8x8x8xf32> -> vector<8x8x8xf32>
    "tpu.trace_stop"() : () -> ()
    %cst_25 = arith.constant dense<0xFF800000> : vector<8x8xf32>
    %50 = vector.multi_reduction <maximumf>, %49, %cst_25 [2] : vector<8x8x8xf32> to vector<8x8xf32>
    %51 = vector.shape_cast %50 : vector<8x8xf32> to vector<8x8x1xf32>
    %52 = vector.broadcast %51 : vector<8x8x1xf32> to vector<8x8x8xf32>
    %53 = arith.subf %49, %52 : vector<8x8x8xf32>
    %54 = math.exp %53 : vector<8x8x8xf32>
    %cst_26 = arith.constant dense<0.000000e+00> : vector<8x8xf32>
    %55 = vector.multi_reduction <add>, %54, %cst_26 [2] : vector<8x8x8xf32> to vector<8x8xf32>
    %56 = vector.shape_cast %55 : vector<8x8xf32> to vector<8x8x1xf32>
    %57 = tpu.reciprocal %56 {approx = true} : vector<8x8x1xf32> -> vector<8x8x1xf32>
    %58 = vector.broadcast %57 : vector<8x8x1xf32> to vector<8x8x8xf32>
    %59 = arith.mulf %54, %58 : vector<8x8x8xf32>
    %60 = arith.truncf %59 : vector<8x8x8xf32> to vector<8x8x8xbf16>
    "tpu.trace_start"() <{level = 10 : i32, message = "bqk,bkd->bqd"}> : () -> ()
    %cst_27 = arith.constant dense<0.000000e+00> : vector<8x8x64xf32>
    %61 = tpu.matmul %60, %48, %cst_27 {dimension_numbers = #tpu.dot_dimension_numbers<[2], [1], [1], [2], [0, 0, 0, 1, 1, 2], [0], [0]>} : vector<8x8x8xbf16>, vector<8x8x64xbf16>, vector<8x8x64xf32> -> vector<8x8x64xf32>
    "tpu.trace_stop"() : () -> ()
    %62 = arith.truncf %61 : vector<8x8x64xf32> to vector<8x8x64xbf16>
    %c0_28 = arith.constant 0 : index
    %c0_29 = arith.constant 0 : index
    %c64 = arith.constant 64 : index
    %63 = vector.load %arg16[%c0_28, %c0_29, %c64] : memref<8x8x128xbf16, #tpu.memory_space<vmem>>, vector<8x8x64xbf16>
    tpu.vector_store %arg16[%c0_28, %c0_29, %c64], %62 {strides = array<i32>} : memref<8x8x128xbf16, #tpu.memory_space<vmem>>, vector<8x8x64xbf16>,
    %c0_30 = arith.constant 0 : index
    %c0_31 = arith.constant 0 : index
    %c0_32 = arith.constant 0 : index
    %64 = vector.load %arg16[%c0_30, %c0_31, %c0_32] : memref<8x8x128xbf16, #tpu.memory_space<vmem>>, vector<8x8x128xbf16>
    %65 = vector.shape_cast %64 : vector<8x8x128xbf16> to vector<64x128xbf16>
    %c0_33 = arith.constant 0 : index
    %c0_34 = arith.constant 0 : index
    %66 = vector.load %arg4[%c0_33, %c0_34] : memref<128x128xbf16, #tpu.memory_space<vmem>>, vector<128x128xbf16>
    %cst_35 = arith.constant dense<0.000000e+00> : vector<64x128xf32>
    %67 = tpu.matmul %65, %66, %cst_35 {dimension_numbers = #tpu.dot_dimension_numbers<[1], [0], [0], [1], [0, 0, 1, 1], [], []>} : vector<64x128xbf16>, vector<128x128xbf16>, vector<64x128xf32> -> vector<64x128xf32>
    %c0_36 = arith.constant 0 : index
    %c0_37 = arith.constant 0 : index
    %68 = vector.load %arg5[%c0_36, %c0_37] : memref<1x128xf32, #tpu.memory_space<vmem>>, vector<1x128xf32>
    %69 = vector.broadcast %68 : vector<1x128xf32> to vector<64x128xf32>
    %70 = arith.addf %67, %69 : vector<64x128xf32>
    %71 = arith.addf %5, %70 : vector<64x128xf32>
    %c0_38 = arith.constant 0 : index
    %c0_39 = arith.constant 0 : index
    %72 = vector.load %arg6[%c0_38, %c0_39] : memref<1x128xf32, #tpu.memory_space<vmem>>, vector<1x128xf32>
    %c0_40 = arith.constant 0 : index
    %c0_41 = arith.constant 0 : index
    %73 = vector.load %arg7[%c0_40, %c0_41] : memref<1x128xf32, #tpu.memory_space<vmem>>, vector<1x128xf32>
    %cst_42 = arith.constant dense<0.000000e+00> : vector<64xf32>
    %74 = vector.multi_reduction <add>, %71, %cst_42 [1] : vector<64x128xf32> to vector<64xf32>
    %75 = vector.shape_cast %74 : vector<64xf32> to vector<64x1xf32>
    %cst_43 = arith.constant 1.280000e+02 : f32
    %76 = vector.broadcast %cst_43 : f32 to vector<64x1xf32>
    %77 = arith.divf %75, %76 : vector<64x1xf32>
    %78 = vector.broadcast %77 : vector<64x1xf32> to vector<64x128xf32>
    %79 = arith.subf %71, %78 : vector<64x128xf32>
    %80 = arith.mulf %79, %79 : vector<64x128xf32>
    %cst_44 = arith.constant dense<0.000000e+00> : vector<64xf32>
    %81 = vector.multi_reduction <add>, %80, %cst_44 [1] : vector<64x128xf32> to vector<64xf32>
    %82 = vector.shape_cast %81 : vector<64xf32> to vector<64x1xf32>
    %cst_45 = arith.constant 1.280000e+02 : f32
    %83 = vector.broadcast %cst_45 : f32 to vector<64x1xf32>
    %84 = arith.divf %82, %83 : vector<64x1xf32>
    %cst_46 = arith.constant 9.99999974E-6 : f32
    %85 = vector.broadcast %cst_46 : f32 to vector<64x1xf32>
    %86 = arith.addf %84, %85 : vector<64x1xf32>
    %87 = math.rsqrt %86 : vector<64x1xf32>
    %88 = vector.broadcast %87 : vector<64x1xf32> to vector<64x128xf32>
    %89 = arith.mulf %79, %88 : vector<64x128xf32>
    %90 = vector.broadcast %72 : vector<1x128xf32> to vector<64x128xf32>
    %91 = arith.mulf %89, %90 : vector<64x128xf32>
    %92 = vector.broadcast %73 : vector<1x128xf32> to vector<64x128xf32>
    %93 = arith.addf %91, %92 : vector<64x128xf32>
    %94 = arith.truncf %93 : vector<64x128xf32> to vector<64x128xbf16>
    %cst_47 = arith.constant 0.000000e+00 : f32
    %95 = vector.broadcast %cst_47 : f32 to vector<64x128xf32>
    %c0_48 = arith.constant 0 : index
    %c0_49 = arith.constant 0 : index
    %96 = vector.load %arg8[%c0_48, %c0_49] : memref<128x2048xbf16, #tpu.memory_space<vmem>>, vector<128x512xbf16>
    %cst_50 = arith.constant dense<0.000000e+00> : vector<64x512xf32>
    %97 = tpu.matmul %94, %96, %cst_50 {dimension_numbers = #tpu.dot_dimension_numbers<[1], [0], [0], [1], [0, 0, 1, 1], [], []>} : vector<64x128xbf16>, vector<128x512xbf16>, vector<64x512xf32> -> vector<64x512xf32>
    %c0_51 = arith.constant 0 : index
    %c0_52 = arith.constant 0 : index
    %98 = vector.load %arg9[%c0_51, %c0_52] : memref<1x2048xf32, #tpu.memory_space<vmem>>, vector<1x512xf32>
    %99 = vector.broadcast %98 : vector<1x512xf32> to vector<64x512xf32>
    %100 = arith.addf %97, %99 : vector<64x512xf32>
    %cst_53 = arith.constant 0.000000e+00 : f32
    %101 = vector.broadcast %cst_53 : f32 to vector<64x512xf32>
    %102 = arith.maximumf %100, %101 : vector<64x512xf32>
    %103 = arith.truncf %102 : vector<64x512xf32> to vector<64x512xbf16>
    %c0_54 = arith.constant 0 : index
    %c0_55 = arith.constant 0 : index
    %104 = vector.load %arg10[%c0_54, %c0_55] : memref<2048x128xbf16, #tpu.memory_space<vmem>>, vector<512x128xbf16>
    %cst_56 = arith.constant dense<0.000000e+00> : vector<64x128xf32>
    %105 = tpu.matmul %103, %104, %cst_56 {dimension_numbers = #tpu.dot_dimension_numbers<[1], [0], [0], [1], [0, 0, 1, 1], [], []>} : vector<64x512xbf16>, vector<512x128xbf16>, vector<64x128xf32> -> vector<64x128xf32>
    %106 = arith.addf %95, %105 : vector<64x128xf32>
    %c0_57 = arith.constant 0 : index
    %c512 = arith.constant 512 : index
    %107 = vector.load %arg8[%c0_57, %c512] : memref<128x2048xbf16, #tpu.memory_space<vmem>>, vector<128x512xbf16>
    %cst_58 = arith.constant dense<0.000000e+00> : vector<64x512xf32>
    %108 = tpu.matmul %94, %107, %cst_58 {dimension_numbers = #tpu.dot_dimension_numbers<[1], [0], [0], [1], [0, 0, 1, 1], [], []>} : vector<64x128xbf16>, vector<128x512xbf16>, vector<64x512xf32> -> vector<64x512xf32>
    %c0_59 = arith.constant 0 : index
    %c512_60 = arith.constant 512 : index
    %109 = vector.load %arg9[%c0_59, %c512_60] : memref<1x2048xf32, #tpu.memory_space<vmem>>, vector<1x512xf32>
    %110 = vector.broadcast %109 : vector<1x512xf32> to vector<64x512xf32>
    %111 = arith.addf %108, %110 : vector<64x512xf32>
    %cst_61 = arith.constant 0.000000e+00 : f32
    %112 = vector.broadcast %cst_61 : f32 to vector<64x512xf32>
    %113 = arith.maximumf %111, %112 : vector<64x512xf32>
    %114 = arith.truncf %113 : vector<64x512xf32> to vector<64x512xbf16>
    %c512_62 = arith.constant 512 : index
    %c0_63 = arith.constant 0 : index
    %115 = vector.load %arg10[%c512_62, %c0_63] : memref<2048x128xbf16, #tpu.memory_space<vmem>>, vector<512x128xbf16>
    %cst_64 = arith.constant dense<0.000000e+00> : vector<64x128xf32>
    %116 = tpu.matmul %114, %115, %cst_64 {dimension_numbers = #tpu.dot_dimension_numbers<[1], [0], [0], [1], [0, 0, 1, 1], [], []>} : vector<64x512xbf16>, vector<512x128xbf16>, vector<64x128xf32> -> vector<64x128xf32>
    %117 = arith.addf %106, %116 : vector<64x128xf32>
    %c0_65 = arith.constant 0 : index
    %c1024 = arith.constant 1024 : index
    %118 = vector.load %arg8[%c0_65, %c1024] : memref<128x2048xbf16, #tpu.memory_space<vmem>>, vector<128x512xbf16>
    %cst_66 = arith.constant dense<0.000000e+00> : vector<64x512xf32>
    %119 = tpu.matmul %94, %118, %cst_66 {dimension_numbers = #tpu.dot_dimension_numbers<[1], [0], [0], [1], [0, 0, 1, 1], [], []>} : vector<64x128xbf16>, vector<128x512xbf16>, vector<64x512xf32> -> vector<64x512xf32>
    %c0_67 = arith.constant 0 : index
    %c1024_68 = arith.constant 1024 : index
    %120 = vector.load %arg9[%c0_67, %c1024_68] : memref<1x2048xf32, #tpu.memory_space<vmem>>, vector<1x512xf32>
    %121 = vector.broadcast %120 : vector<1x512xf32> to vector<64x512xf32>
    %122 = arith.addf %119, %121 : vector<64x512xf32>
    %cst_69 = arith.constant 0.000000e+00 : f32
    %123 = vector.broadcast %cst_69 : f32 to vector<64x512xf32>
    %124 = arith.maximumf %122, %123 : vector<64x512xf32>
    %125 = arith.truncf %124 : vector<64x512xf32> to vector<64x512xbf16>
    %c1024_70 = arith.constant 1024 : index
    %c0_71 = arith.constant 0 : index
    %126 = vector.load %arg10[%c1024_70, %c0_71] : memref<2048x128xbf16, #tpu.memory_space<vmem>>, vector<512x128xbf16>
    %cst_72 = arith.constant dense<0.000000e+00> : vector<64x128xf32>
    %127 = tpu.matmul %125, %126, %cst_72 {dimension_numbers = #tpu.dot_dimension_numbers<[1], [0], [0], [1], [0, 0, 1, 1], [], []>} : vector<64x512xbf16>, vector<512x128xbf16>, vector<64x128xf32> -> vector<64x128xf32>
    %128 = arith.addf %117, %127 : vector<64x128xf32>
    %c0_73 = arith.constant 0 : index
    %c1536 = arith.constant 1536 : index
    %129 = vector.load %arg8[%c0_73, %c1536] : memref<128x2048xbf16, #tpu.memory_space<vmem>>, vector<128x512xbf16>
    %cst_74 = arith.constant dense<0.000000e+00> : vector<64x512xf32>
    %130 = tpu.matmul %94, %129, %cst_74 {dimension_numbers = #tpu.dot_dimension_numbers<[1], [0], [0], [1], [0, 0, 1, 1], [], []>} : vector<64x128xbf16>, vector<128x512xbf16>, vector<64x512xf32> -> vector<64x512xf32>
    %c0_75 = arith.constant 0 : index
    %c1536_76 = arith.constant 1536 : index
    %131 = vector.load %arg9[%c0_75, %c1536_76] : memref<1x2048xf32, #tpu.memory_space<vmem>>, vector<1x512xf32>
    %132 = vector.broadcast %131 : vector<1x512xf32> to vector<64x512xf32>
    %133 = arith.addf %130, %132 : vector<64x512xf32>
    %cst_77 = arith.constant 0.000000e+00 : f32
    %134 = vector.broadcast %cst_77 : f32 to vector<64x512xf32>
    %135 = arith.maximumf %133, %134 : vector<64x512xf32>
    %136 = arith.truncf %135 : vector<64x512xf32> to vector<64x512xbf16>
    %c1536_78 = arith.constant 1536 : index
    %c0_79 = arith.constant 0 : index
    %137 = vector.load %arg10[%c1536_78, %c0_79] : memref<2048x128xbf16, #tpu.memory_space<vmem>>, vector<512x128xbf16>
    %cst_80 = arith.constant dense<0.000000e+00> : vector<64x128xf32>
    %138 = tpu.matmul %136, %137, %cst_80 {dimension_numbers = #tpu.dot_dimension_numbers<[1], [0], [0], [1], [0, 0, 1, 1], [], []>} : vector<64x512xbf16>, vector<512x128xbf16>, vector<64x128xf32> -> vector<64x128xf32>
    %139 = arith.addf %128, %138 : vector<64x128xf32>
    %c0_81 = arith.constant 0 : index
    %c0_82 = arith.constant 0 : index
    %140 = vector.load %arg11[%c0_81, %c0_82] : memref<1x128xf32, #tpu.memory_space<vmem>>, vector<1x128xf32>
    %141 = vector.broadcast %140 : vector<1x128xf32> to vector<64x128xf32>
    %142 = arith.addf %139, %141 : vector<64x128xf32>
    %143 = arith.addf %93, %142 : vector<64x128xf32>
    %c0_83 = arith.constant 0 : index
    %c0_84 = arith.constant 0 : index
    %144 = vector.load %arg12[%c0_83, %c0_84] : memref<1x128xf32, #tpu.memory_space<vmem>>, vector<1x128xf32>
    %c0_85 = arith.constant 0 : index
    %c0_86 = arith.constant 0 : index
    %145 = vector.load %arg13[%c0_85, %c0_86] : memref<1x128xf32, #tpu.memory_space<vmem>>, vector<1x128xf32>
    %cst_87 = arith.constant dense<0.000000e+00> : vector<64xf32>
    %146 = vector.multi_reduction <add>, %143, %cst_87 [1] : vector<64x128xf32> to vector<64xf32>
    %147 = vector.shape_cast %146 : vector<64xf32> to vector<64x1xf32>
    %cst_88 = arith.constant 1.280000e+02 : f32
    %148 = vector.broadcast %cst_88 : f32 to vector<64x1xf32>
    %149 = arith.divf %147, %148 : vector<64x1xf32>
    %150 = vector.broadcast %149 : vector<64x1xf32> to vector<64x128xf32>
    %151 = arith.subf %143, %150 : vector<64x128xf32>
    %152 = arith.mulf %151, %151 : vector<64x128xf32>
    %cst_89 = arith.constant dense<0.000000e+00> : vector<64xf32>
    %153 = vector.multi_reduction <add>, %152, %cst_89 [1] : vector<64x128xf32> to vector<64xf32>
    %154 = vector.shape_cast %153 : vector<64xf32> to vector<64x1xf32>
    %cst_90 = arith.constant 1.280000e+02 : f32
    %155 = vector.broadcast %cst_90 : f32 to vector<64x1xf32>
    %156 = arith.divf %154, %155 : vector<64x1xf32>
    %cst_91 = arith.constant 9.99999974E-6 : f32
    %157 = vector.broadcast %cst_91 : f32 to vector<64x1xf32>
    %158 = arith.addf %156, %157 : vector<64x1xf32>
    %159 = math.rsqrt %158 : vector<64x1xf32>
    %160 = vector.broadcast %159 : vector<64x1xf32> to vector<64x128xf32>
    %161 = arith.mulf %151, %160 : vector<64x128xf32>
    %162 = vector.broadcast %144 : vector<1x128xf32> to vector<64x128xf32>
    %163 = arith.mulf %161, %162 : vector<64x128xf32>
    %164 = vector.broadcast %145 : vector<1x128xf32> to vector<64x128xf32>
    %165 = arith.addf %163, %164 : vector<64x128xf32>
    %166 = vector.shape_cast %165 : vector<64x128xf32> to vector<8x8x128xf32>
    %c0_92 = arith.constant 0 : index
    %c0_93 = arith.constant 0 : index
    %c0_94 = arith.constant 0 : index
    %167 = vector.load %arg14[%c0_92, %c0_93, %c0_94] : memref<8x8x128xf32, #tpu.memory_space<vmem>>, vector<8x8x128xf32>
    tpu.vector_store %arg14[%c0_92, %c0_93, %c0_94], %166 {strides = array<i32>} : memref<8x8x128xf32, #tpu.memory_space<vmem>>, vector<8x8x128xf32>,
    return
  }
  func.func @transform_0(%arg0: i32) -> (i32, i32, i32) {
    %c0_i32 = arith.constant 0 : i32
    %c0_i32_0 = arith.constant 0 : i32
    %c0_i32_1 = arith.constant 0 : i32
    return %arg0, %c0_i32, %c0_i32_0 : i32, i32, i32
  }
  func.func @transform_1(%arg0: i32) -> (i32, i32) {
    %c0_i32 = arith.constant 0 : i32
    %c0_i32_0 = arith.constant 0 : i32
    %c0_i32_1 = arith.constant 0 : i32
    return %c0_i32, %c0_i32_0 : i32, i32
  }
  func.func @transform_2(%arg0: i32) -> (i32, i32) {
    %c0_i32 = arith.constant 0 : i32
    %c0_i32_0 = arith.constant 0 : i32
    %c0_i32_1 = arith.constant 0 : i32
    return %c0_i32, %c0_i32_0 : i32, i32
  }
  func.func @transform_3(%arg0: i32) -> (i32, i32) {
    %c0_i32 = arith.constant 0 : i32
    %c0_i32_0 = arith.constant 0 : i32
    %c0_i32_1 = arith.constant 0 : i32
    return %c0_i32, %c0_i32_0 : i32, i32
  }
  func.func @transform_4(%arg0: i32) -> (i32, i32) {
    %c0_i32 = arith.constant 0 : i32
    %c0_i32_0 = arith.constant 0 : i32
    %c0_i32_1 = arith.constant 0 : i32
    return %c0_i32, %c0_i32_0 : i32, i32
  }
  func.func @transform_5(%arg0: i32) -> (i32, i32) {
    %c0_i32 = arith.constant 0 : i32
    %c0_i32_0 = arith.constant 0 : i32
    %c0_i32_1 = arith.constant 0 : i32
    return %c0_i32, %c0_i32_0 : i32, i32
  }
  func.func @transform_6(%arg0: i32) -> (i32, i32) {
    %c0_i32 = arith.constant 0 : i32
    %c0_i32_0 = arith.constant 0 : i32
    %c0_i32_1 = arith.constant 0 : i32
    return %c0_i32, %c0_i32_0 : i32, i32
  }
  func.func @transform_7(%arg0: i32) -> (i32, i32) {
    %c0_i32 = arith.constant 0 : i32
    %c0_i32_0 = arith.constant 0 : i32
    %c0_i32_1 = arith.constant 0 : i32
    return %c0_i32, %c0_i32_0 : i32, i32
  }
  func.func @transform_8(%arg0: i32) -> (i32, i32) {
    %c0_i32 = arith.constant 0 : i32
    %c0_i32_0 = arith.constant 0 : i32
    %c0_i32_1 = arith.constant 0 : i32
    return %c0_i32, %c0_i32_0 : i32, i32
  }
  func.func @transform_9(%arg0: i32) -> (i32, i32) {
    %c0_i32 = arith.constant 0 : i32
    %c0_i32_0 = arith.constant 0 : i32
    %c0_i32_1 = arith.constant 0 : i32
    return %c0_i32, %c0_i32_0 : i32, i32
  }
  func.func @transform_10(%arg0: i32) -> (i32, i32) {
    %c0_i32 = arith.constant 0 : i32
    %c0_i32_0 = arith.constant 0 : i32
    %c0_i32_1 = arith.constant 0 : i32
    return %c0_i32, %c0_i32_0 : i32, i32
  }
  func.func @transform_11(%arg0: i32) -> (i32, i32) {
    %c0_i32 = arith.constant 0 : i32
    %c0_i32_0 = arith.constant 0 : i32
    %c0_i32_1 = arith.constant 0 : i32
    return %c0_i32, %c0_i32_0 : i32, i32
  }
  func.func @transform_12(%arg0: i32) -> (i32, i32) {
    %c0_i32 = arith.constant 0 : i32
    %c0_i32_0 = arith.constant 0 : i32
    %c0_i32_1 = arith.constant 0 : i32
    return %c0_i32, %c0_i32_0 : i32, i32
  }
  func.func @transform_13(%arg0: i32) -> (i32, i32, i32) {
    %c0_i32 = arith.constant 0 : i32
    %c0_i32_0 = arith.constant 0 : i32
    %c0_i32_1 = arith.constant 0 : i32
    return %arg0, %c0_i32, %c0_i32_0 : i32, i32, i32
  }
}

</mosaic_0001>

<llo_original>
// kernel: _forward.1
$region0: #{_forward.1}
  #allocation0 [shape = 'u32[]', space=smem, size = 0x4, offset = 0x4, fixed_abs, tag = 'smem constant byte address 0x4 - core index']
  #allocation1 [shape = 'u32[144,128]{1,0:T(1,128)}', space=vmem, size = 0x12000, scoped, tag = 'internal scratch']
  #allocation2 [shape = 'f32[8,8,128]{2,1,0:T(8,128)}', space=vmem, size = 0x8000, scoped, tag = 'scratch operand']
  #allocation3 [shape = 'bf16[8,8,128]{2,1,0:T(8,128)(2,1)}', space=vmem, size = 0x4000, scoped, tag = 'scratch operand']
  %s0 = inlined_call_operand.vmem [shape: f32[8,7,128], index: 0, kind: input, shape index: {}]
  %s1 = inlined_call_operand.hbm [shape: bf16[128,384], index: 1, kind: input, shape index: {}]
  %s2 = inlined_call_operand.vmem [shape: f32[1,384], index: 2, kind: input, shape index: {}]
  %s3 = inlined_call_operand.vmem [shape: bf16[128,128], index: 3, kind: input, shape index: {}]
  %s4 = inlined_call_operand.vmem [shape: f32[1,128], index: 4, kind: input, shape index: {}]
  %s5 = inlined_call_operand.vmem [shape: f32[1,128], index: 5, kind: input, shape index: {}]
  %s6 = inlined_call_operand.vmem [shape: f32[1,128], index: 6, kind: input, shape index: {}]
  %s7 = inlined_call_operand.hbm [shape: bf16[128,2048], index: 7, kind: input, shape index: {}]
  %s8 = inlined_call_operand.vmem [shape: f32[1,2048], index: 8, kind: input, shape index: {}]
  %s9 = inlined_call_operand.hbm [shape: bf16[2048,128], index: 9, kind: input, shape index: {}]
  %s10 = inlined_call_operand.vmem [shape: f32[1,128], index: 10, kind: input, shape index: {}]
  %s11 = inlined_call_operand.vmem [shape: f32[1,128], index: 11, kind: input, shape index: {}]
  %s12 = inlined_call_operand.vmem [shape: f32[1,128], index: 12, kind: input, shape index: {}]
  %s13 = inlined_call_operand.hbm [shape: f32[8,8,128], index: 13, kind: output, shape index: {}]
  %s14 = sld [smem:[#allocation0]]
  $region74: #{_forward.1} parent=0
    _
  %s16 = ssub.s32 1, %s14
  %s17 = scalar_select 0, %s16, %s14
  $region1: #{_forward.1} parent=0
    #allocation4 [shape = 'u8[98304]{0}', space=vmem, size = 0x18000, scoped, tag = 'input window, operand 1, single buffered']
    #allocation5 [shape = 's32[1]{0}', space=sflag, size = 0x4, scoped, tag = 'scoped memory for _forward.1']
    #allocation6 [shape = 's32[1]{0}', space=sflag, size = 0x4, scoped, tag = 'scoped memory for _forward.1']
    #allocation7 [shape = 'u8[524288]{0}', space=vmem, size = 0x80000, scoped, tag = 'input window, operand 7, single buffered']
    #allocation8 [shape = 's32[1]{0}', space=sflag, size = 0x4, scoped, tag = 'scoped memory for _forward.1']
    #allocation9 [shape = 'u8[524288]{0}', space=vmem, size = 0x80000, scoped, tag = 'input window, operand 9, single buffered']
    #allocation10 [shape = 'u8[32768]{0}', space=vmem, size = 0x8000, scoped, tag = 'output window, operand 0, single buffered']
    %18 = vsyncpa [#allocation5], 0
    %19 = vsyncpa [#allocation8], 0
    %20 = vsyncpa [#allocation6], 0
    // Predicated region
    $region2: #{_forward.1} parent=1 // pred_check
      _
    $region3: #{_forward.1} parent=1 // pred_check_branch
      %22 = sbr.rel (0) target = $region5
    $region4: #{_forward.1} parent=1 // pred_region
      _
    $region5: #{_forward.1} parent=1 // pred_fallthru
      _
    // Predicated region
    $region6: #{_forward.1} parent=1 // pred_check
      _
    $region7: #{_forward.1} parent=1 // pred_check_branch
      %24 = sbr.rel (0) target = $region9
    $region8: #{_forward.1} parent=1 // pred_region
      %s26 = ssub.s32 3072, 3072
      %27 = vsyncadd [#allocation5], %s26
      %s28 = sshll.u32 [#allocation4], 4
      %s29 = int_to_ptr.vmem [resolvable:$true] %s28
      %34 = dma.hbm_to_vmem [thread:$0]  %s1, 3072, %s29, [#allocation5], 192, 192, 12
    $region9: #{_forward.1} parent=1 // pred_fallthru
      _
    // Predicated region
    $region10: #{_forward.1} parent=1 // pred_check
      _
    $region11: #{_forward.1} parent=1 // pred_check_branch
      %36 = sbr.rel (0) target = $region13
    $region12: #{_forward.1} parent=1 // pred_region
      _
    $region13: #{_forward.1} parent=1 // pred_fallthru
      _
    // Predicated region
    $region14: #{_forward.1} parent=1 // pred_check
      _
    $region15: #{_forward.1} parent=1 // pred_check_branch
      %38 = sbr.rel (0) target = $region17
    $region16: #{_forward.1} parent=1 // pred_region
      _
    $region17: #{_forward.1} parent=1 // pred_fallthru
      _
    // Predicated region
    $region18: #{_forward.1} parent=1 // pred_check
      _
    $region19: #{_forward.1} parent=1 // pred_check_branch
      %40 = sbr.rel (0) target = $region21
    $region20: #{_forward.1} parent=1 // pred_region
      _
    $region21: #{_forward.1} parent=1 // pred_fallthru
      _
    // Predicated region
    $region22: #{_forward.1} parent=1 // pred_check
      _
    $region23: #{_forward.1} parent=1 // pred_check_branch
      %42 = sbr.rel (0) target = $region25
    $region24: #{_forward.1} parent=1 // pred_region
      _
    $region25: #{_forward.1} parent=1 // pred_fallthru
      _
    // Predicated region
    $region26: #{_forward.1} parent=1 // pred_check
      _
    $region27: #{_forward.1} parent=1 // pred_check_branch
      %44 = sbr.rel (0) target = $region29
    $region28: #{_forward.1} parent=1 // pred_region
      _
    $region29: #{_forward.1} parent=1 // pred_fallthru
      _
    // Predicated region
    $region30: #{_forward.1} parent=1 // pred_check
      _
    $region31: #{_forward.1} parent=1 // pred_check_branch
      %46 = sbr.rel (0) target = $region33
    $region32: #{_forward.1} parent=1 // pred_region
      %s48 = ssub.s32 16384, 16384
      %49 = vsyncadd [#allocation8], %s48
      %s50 = sshll.u32 [#allocation7], 4
      %s51 = int_to_ptr.vmem [resolvable:$true] %s50
      %56 = dma.hbm_to_vmem [thread:$0]  %s7, 16384, %s51, [#allocation8], 1024, 1024, 64
    $region33: #{_forward.1} parent=1 // pred_fallthru
      _
    // Predicated region
    $region34: #{_forward.1} parent=1 // pred_check
      _
    $region35: #{_forward.1} parent=1 // pred_check_branch
      %58 = sbr.rel (0) target = $region37
    $region36: #{_forward.1} parent=1 // pred_region
      _
    $region37: #{_forward.1} parent=1 // pred_fallthru
      _
    // Predicated region
    $region38: #{_forward.1} parent=1 // pred_check
      _
    $region39: #{_forward.1} parent=1 // pred_check_branch
      %60 = sbr.rel (0) target = $region41
    $region40: #{_forward.1} parent=1 // pred_region
      %s62 = ssub.s32 16384, 16384
      %63 = vsyncadd [#allocation8], %s62
      %s64 = sshll.u32 [#allocation9], 4
      %s65 = int_to_ptr.vmem [resolvable:$true] %s64
      %70 = dma.hbm_to_vmem [thread:$0]  %s9, 16384, %s65, [#allocation8], 64, 64, 4
    $region41: #{_forward.1} parent=1 // pred_fallthru
      _
    // Predicated region
    $region42: #{_forward.1} parent=1 // pred_check
      _
    $region43: #{_forward.1} parent=1 // pred_check_branch
      %72 = sbr.rel (0) target = $region45
    $region44: #{_forward.1} parent=1 // pred_region
      _
    $region45: #{_forward.1} parent=1 // pred_fallthru
      _
    // Predicated region
    $region46: #{_forward.1} parent=1 // pred_check
      _
    $region47: #{_forward.1} parent=1 // pred_check_branch
      %74 = sbr.rel (0) target = $region49
    $region48: #{_forward.1} parent=1 // pred_region
      _
    $region49: #{_forward.1} parent=1 // pred_fallthru
      _
    // Predicated region
    $region50: #{_forward.1} parent=1 // pred_check
      _
    $region51: #{_forward.1} parent=1 // pred_check_branch
      %76 = sbr.rel (0) target = $region53
    $region52: #{_forward.1} parent=1 // pred_region
      _
    $region53: #{_forward.1} parent=1 // pred_fallthru
      _
    // Predicated region
    $region54: #{_forward.1} parent=1 // pred_check
      _
    $region55: #{_forward.1} parent=1 // pred_check_branch
      %78 = sbr.rel (0) target = $region57
    $region56: #{_forward.1} parent=1 // pred_region
      %79 = dma.done [#allocation5], 3072
    $region57: #{_forward.1} parent=1 // pred_fallthru
      _
    // Predicated region
    $region58: #{_forward.1} parent=1 // pred_check
      _
    $region59: #{_forward.1} parent=1 // pred_check_branch
      %81 = sbr.rel (0) target = $region61
    $region60: #{_forward.1} parent=1 // pred_region
      %82 = dma.done [#allocation8], 16384
    $region61: #{_forward.1} parent=1 // pred_fallthru
      _
    // Predicated region
    $region62: #{_forward.1} parent=1 // pred_check
      _
    $region63: #{_forward.1} parent=1 // pred_check_branch
      %84 = sbr.rel (0) target = $region65
    $region64: #{_forward.1} parent=1 // pred_region
      %85 = dma.done [#allocation8], 16384
    $region65: #{_forward.1} parent=1 // pred_fallthru
      _
    %87 = vst [vmem:[#allocation2] sm:$0xff] 0.0
    %88 = vst [vmem:[#allocation2 + $0x8] sm:$0xff] 0.0
    %89 = vst [vmem:[#allocation2 + $0x10] sm:$0xff] 0.0
    %90 = vst [vmem:[#allocation2 + $0x18] sm:$0xff] 0.0
    %91 = vst [vmem:[#allocation2 + $0x20] sm:$0xff] 0.0
    %92 = vst [vmem:[#allocation2 + $0x28] sm:$0xff] 0.0
    %93 = vst [vmem:[#allocation2 + $0x30] sm:$0xff] 0.0
    %94 = vst [vmem:[#allocation2 + $0x38] sm:$0xff] 0.0
    %v95 = vld [vmem:[%s0] sm:$0x7f]
    %v96 = vld [vmem:[%s0 + $0x8] sm:$0x7f]
    %v97 = vld [vmem:[%s0 + $0x10] sm:$0x7f]
    %v98 = vld [vmem:[%s0 + $0x18] sm:$0x7f]
    %v99 = vld [vmem:[%s0 + $0x20] sm:$0x7f]
    %v100 = vld [vmem:[%s0 + $0x28] sm:$0x7f]
    %v101 = vld [vmem:[%s0 + $0x30] sm:$0x7f]
    %v102 = vld [vmem:[%s0 + $0x38] sm:$0x7f]
    %103 = vst [vmem:[#allocation2 + $0x1] sm:$0x7f] %v95
    %104 = vst [vmem:[#allocation2 + $0x9] sm:$0x7f] %v96
    %105 = vst [vmem:[#allocation2 + $0x11] sm:$0x7f] %v97
    %106 = vst [vmem:[#allocation2 + $0x19] sm:$0x7f] %v98
    %107 = vst [vmem:[#allocation2 + $0x21] sm:$0x7f] %v99
    %108 = vst [vmem:[#allocation2 + $0x29] sm:$0x7f] %v100
    %109 = vst [vmem:[#allocation2 + $0x31] sm:$0x7f] %v101
    %110 = vst [vmem:[#allocation2 + $0x39] sm:$0x7f] %v102
    %v111 = vld [vmem:[#allocation2] sm:$0xff]
    %v112 = vld [vmem:[#allocation2 + $0x8] sm:$0xff]
    %v113 = vld [vmem:[#allocation2 + $0x10] sm:$0xff]
    %v114 = vld [vmem:[#allocation2 + $0x18] sm:$0xff]
    %v115 = vld [vmem:[#allocation2 + $0x20] sm:$0xff]
    %v116 = vld [vmem:[#allocation2 + $0x28] sm:$0xff]
    %v117 = vld [vmem:[#allocation2 + $0x30] sm:$0xff]
    %v118 = vld [vmem:[#allocation2 + $0x38] sm:$0xff]
    %v119 = vpack.c.bf16 %v112, %v111
    %v120 = vpack.c.bf16 %v114, %v113
    %v121 = vpack.c.bf16 %v116, %v115
    %v122 = vpack.c.bf16 %v118, %v117
    %v123 = vld [vmem:[#allocation4] sm:$0xff]
    %v124 = vld [vmem:[#allocation4 + $0x8] sm:$0xf]
    %v125 = vld [vmem:[#allocation4 + $0xc] sm:$0xff]
    %v126 = vld [vmem:[#allocation4 + $0x14] sm:$0xf]
    %v127 = vld [vmem:[#allocation4 + $0x18] sm:$0xff]
    %v128 = vld [vmem:[#allocation4 + $0x20] sm:$0xf]
    %v129 = vld [vmem:[#allocation4 + $0x24] sm:$0xff]
    %v130 = vld [vmem:[#allocation4 + $0x2c] sm:$0xf]
    %v131 = vld [vmem:[#allocation4 + $0x30] sm:$0xff]
    %v132 = vld [vmem:[#allocation4 + $0x38] sm:$0xf]
    %v133 = vld [vmem:[#allocation4 + $0x3c] sm:$0xff]
    %v134 = vld [vmem:[#allocation4 + $0x44] sm:$0xf]
    %v135 = vld [vmem:[#allocation4 + $0x48] sm:$0xff]
    %v136 = vld [vmem:[#allocation4 + $0x50] sm:$0xf]
    %v137 = vld [vmem:[#allocation4 + $0x54] sm:$0xff]
    %v138 = vld [vmem:[#allocation4 + $0x5c] sm:$0xf]
    %v139 = vld [vmem:[#allocation4 + $0x60] sm:$0xff]
    %v140 = vld [vmem:[#allocation4 + $0x68] sm:$0xf]
    %v141 = vld [vmem:[#allocation4 + $0x6c] sm:$0xff]
    %v142 = vld [vmem:[#allocation4 + $0x74] sm:$0xf]
    %v143 = vld [vmem:[#allocation4 + $0x78] sm:$0xff]
    %v144 = vld [vmem:[#allocation4 + $0x80] sm:$0xf]
    %v145 = vld [vmem:[#allocation4 + $0x84] sm:$0xff]
    %v146 = vld [vmem:[#allocation4 + $0x8c] sm:$0xf]
    %v147 = vld [vmem:[#allocation4 + $0x90] sm:$0xff]
    %v148 = vld [vmem:[#allocation4 + $0x98] sm:$0xf]
    %v149 = vld [vmem:[#allocation4 + $0x9c] sm:$0xff]
    %v150 = vld [vmem:[#allocation4 + $0xa4] sm:$0xf]
    %v151 = vld [vmem:[#allocation4 + $0xa8] sm:$0xff]
    %v152 = vld [vmem:[#allocation4 + $0xb0] sm:$0xf]
    %v153 = vld [vmem:[#allocation4 + $0xb4] sm:$0xff]
    %v154 = vld [vmem:[#allocation4 + $0xbc] sm:$0xf]
    %v155 = vld [vmem:[%s2] sm:$0x7]
    %v157 = vlaneseq
    %v158 = vshrl.u32 %v157, 7
    %v159 = vsub.s32 0, %v158
    %v160 = vrot.slane %v155, %v159
    %v161 = vlaneseq
    %v162 = vshrl.u32 %v161, 7
    %v163 = vsub.s32 1, %v162
    %v164 = vrot.slane %v155, %v163
    %v165 = vlaneseq
    %v166 = vshrl.u32 %v165, 7
    %v167 = vsub.s32 2, %v166
    %v168 = vrot.slane %v155, %v167
    %v204 = vunpack.c.l.b16 %v123
    %v205 = vunpack.c.h.b16 %v123
    %v206 = vunpack.c.l.b16 %v124
    %v207 = vunpack.c.l.b16 %v125
    %v208 = vunpack.c.h.b16 %v125
    %v209 = vunpack.c.l.b16 %v126
    %v210 = vunpack.c.l.b16 %v127
    %v211 = vunpack.c.h.b16 %v127
    %v212 = vunpack.c.l.b16 %v128
    %v213 = vunpack.c.l.b16 %v129
    %v214 = vunpack.c.h.b16 %v129
    %v215 = vunpack.c.l.b16 %v130
    %v216 = vunpack.c.l.b16 %v131
    %v217 = vunpack.c.h.b16 %v131
    %v218 = vunpack.c.l.b16 %v132
    %v219 = vunpack.c.l.b16 %v133
    %v220 = vunpack.c.h.b16 %v133
    %v221 = vunpack.c.l.b16 %v134
    %v222 = vunpack.c.l.b16 %v135
    %v223 = vunpack.c.h.b16 %v135
    %v224 = vunpack.c.l.b16 %v136
    %v225 = vunpack.c.l.b16 %v137
    %v226 = vunpack.c.h.b16 %v137
    %v227 = vunpack.c.l.b16 %v138
    %v228 = vunpack.c.l.b16 %v139
    %v229 = vunpack.c.h.b16 %v139
    %v230 = vunpack.c.l.b16 %v140
    %v231 = vunpack.c.l.b16 %v141
    %v232 = vunpack.c.h.b16 %v141
    %v233 = vunpack.c.l.b16 %v142
    %v234 = vunpack.c.l.b16 %v143
    %v235 = vunpack.c.h.b16 %v143
    %v236 = vunpack.c.l.b16 %v144
    %v237 = vunpack.c.l.b16 %v145
    %v238 = vunpack.c.h.b16 %v145
    %v239 = vunpack.c.l.b16 %v146
    %v240 = vunpack.c.l.b16 %v147
    %v241 = vunpack.c.h.b16 %v147
    %v242 = vunpack.c.l.b16 %v148
    %v243 = vunpack.c.l.b16 %v149
    %v244 = vunpack.c.h.b16 %v149
    %v245 = vunpack.c.l.b16 %v150
    %v246 = vunpack.c.l.b16 %v151
    %v247 = vunpack.c.h.b16 %v151
    %v248 = vunpack.c.l.b16 %v152
    %v249 = vunpack.c.l.b16 %v153
    %v250 = vunpack.c.h.b16 %v153
    %v251 = vunpack.c.l.b16 %v154
    %v252 = vpack.c.b16 %v207, %v204
    %v253 = vpack.c.b16 %v208, %v205
    %v254 = vpack.c.b16 %v209, %v206
    %v255 = vpack.c.b16 %v213, %v210
    %v256 = vpack.c.b16 %v214, %v211
    %v257 = vpack.c.b16 %v215, %v212
    %v258 = vpack.c.b16 %v219, %v216
    %v259 = vpack.c.b16 %v220, %v217
    %v260 = vpack.c.b16 %v221, %v218
    %v261 = vpack.c.b16 %v225, %v222
    %v262 = vpack.c.b16 %v226, %v223
    %v263 = vpack.c.b16 %v227, %v224
    %v264 = vpack.c.b16 %v231, %v228
    %v265 = vpack.c.b16 %v232, %v229
    %v266 = vpack.c.b16 %v233, %v230
    %v267 = vpack.c.b16 %v237, %v234
    %v268 = vpack.c.b16 %v238, %v235
    %v269 = vpack.c.b16 %v239, %v236
    %v270 = vpack.c.b16 %v243, %v240
    %v271 = vpack.c.b16 %v244, %v241
    %v272 = vpack.c.b16 %v245, %v242
    %v273 = vpack.c.b16 %v249, %v246
    %v274 = vpack.c.b16 %v250, %v247
    %v275 = vpack.c.b16 %v251, %v248
    %300 = vmatprep.subr.bf16.mxu0 %v274
    %301 = vmatpush1.bf16.msra.mxu0 %v273
    %302 = vmatprep.subr.bf16.mxu0 %v271
    %303 = vmatpush1.bf16.msra.mxu0 %v270
    %304 = vmatprep.subr.bf16.mxu0 %v268
    %305 = vmatpush1.bf16.msra.mxu0 %v267
    %306 = vmatprep.subr.bf16.mxu0 %v265
    %307 = vmatpush1.bf16.msra.mxu0 %v264
    %308 = vmatprep.subr.bf16.mxu0 %v262
    %309 = vmatpush1.bf16.msra.mxu0 %v261
    %310 = vmatprep.subr.bf16.mxu0 %v259
    %311 = vmatpush1.bf16.msra.mxu0 %v258
    %312 = vmatprep.subr.bf16.mxu0 %v256
    %313 = vmatpush1.bf16.msra.mxu0 %v255
    %314 = vmatprep.subr.bf16.mxu0 %v253
    %315 = vmatpush1.bf16.msra.mxu0 %v252
    %316 = vmatprep.subr.bf16.mxu0 0
    %317 = vmatpush2.bf16.msra.mxu0 0
    %318 = vmatprep.subr.bf16.mxu0 0
    %319 = vmatpush2.bf16.msra.mxu0 0
    %320 = vmatprep.subr.bf16.mxu0 0
    %321 = vmatpush2.bf16.msra.mxu0 0
    %322 = vmatprep.subr.bf16.mxu0 0
    %323 = vmatpush2.bf16.msra.mxu0 0
    %324 = vmatprep.subr.bf16.mxu0 0
    %325 = vmatpush2.bf16.msra.mxu0 0
    %326 = vmatprep.subr.bf16.mxu0 0
    %327 = vmatpush2.bf16.msra.mxu0 0
    %328 = vmatprep.subr.bf16.mxu0 0
    %329 = vmatpush2.bf16.msra.mxu0 0
    %330 = vmatprep.subr.bf16.mxu0 0
    %331 = vmatpush2.bf16.msra.mxu0 0
    %332 = vmatprep.mubr.bf16.mxu0 0
    %333 = vmatmul.mubr.bf16.gmra.mxu0 %v119
    %v334 = vpop.f32.mrf.mxu0
    %v335 = vadd.f32 %v160, %v334
    %v336 = vpop.f32.mrf.mxu0
    %v337 = vadd.f32 %v164, %v336
    %v338 = vpop.f32.mrf.mxu0
    %v339 = vadd.f32 %v160, %v338
    %v340 = vpop.f32.mrf.mxu0
    %v341 = vadd.f32 %v164, %v340
    %342 = vmatprep.mubr.bf16.mxu0 0
    %343 = vmatmul.mubr.bf16.gmra.mxu0 %v120
    %v344 = vpop.f32.mrf.mxu0
    %v345 = vadd.f32 %v160, %v344
    %v346 = vpop.f32.mrf.mxu0
    %v347 = vadd.f32 %v164, %v346
    %v348 = vpop.f32.mrf.mxu0
    %v349 = vadd.f32 %v160, %v348
    %v350 = vpop.f32.mrf.mxu0
    %v351 = vadd.f32 %v164, %v350
    %352 = vmatprep.mubr.bf16.mxu0 0
    %353 = vmatmul.mubr.bf16.gmra.mxu0 %v121
    %v354 = vpop.f32.mrf.mxu0
    %v355 = vadd.f32 %v160, %v354
    %v356 = vpop.f32.mrf.mxu0
    %v357 = vadd.f32 %v164, %v356
    %v358 = vpop.f32.mrf.mxu0
    %v359 = vadd.f32 %v160, %v358
    %v360 = vpop.f32.mrf.mxu0
    %v361 = vadd.f32 %v164, %v360
    %362 = vmatprep.mubr.bf16.mxu0 0
    %363 = vmatmul.mubr.bf16.gmra.mxu0 %v122
    %v364 = vpop.f32.mrf.mxu0
    %v365 = vadd.f32 %v160, %v364
    %v366 = vpop.f32.mrf.mxu0
    %v367 = vadd.f32 %v164, %v366
    %v368 = vpop.f32.mrf.mxu0
    %v369 = vadd.f32 %v160, %v368
    %v370 = vpop.f32.mrf.mxu0
    %v371 = vadd.f32 %v164, %v370
    %372 = vdwg.mxu0
    %373 = vmatprep.subr.bf16.mxu0 0
    %374 = vmatpush1.bf16.msra.mxu0 %v275
    %375 = vmatprep.subr.bf16.mxu0 0
    %376 = vmatpush1.bf16.msra.mxu0 %v272
    %377 = vmatprep.subr.bf16.mxu0 0
    %378 = vmatpush1.bf16.msra.mxu0 %v269
    %379 = vmatprep.subr.bf16.mxu0 0
    %380 = vmatpush1.bf16.msra.mxu0 %v266
    %381 = vmatprep.subr.bf16.mxu0 0
    %382 = vmatpush1.bf16.msra.mxu0 %v263
    %383 = vmatprep.subr.bf16.mxu0 0
    %384 = vmatpush1.bf16.msra.mxu0 %v260
    %385 = vmatprep.subr.bf16.mxu0 0
    %386 = vmatpush1.bf16.msra.mxu0 %v257
    %387 = vmatprep.subr.bf16.mxu0 0
    %388 = vmatpush1.bf16.msra.mxu0 %v254
    %389 = vmatprep.subr.bf16.mxu0 0
    %390 = vmatpush2.bf16.msra.mxu0 0
    %391 = vmatprep.subr.bf16.mxu0 0
    %392 = vmatpush2.bf16.msra.mxu0 0
    %393 = vmatprep.subr.bf16.mxu0 0
    %394 = vmatpush2.bf16.msra.mxu0 0
    %395 = vmatprep.subr.bf16.mxu0 0
    %396 = vmatpush2.bf16.msra.mxu0 0
    %397 = vmatprep.subr.bf16.mxu0 0
    %398 = vmatpush2.bf16.msra.mxu0 0
    %399 = vmatprep.subr.bf16.mxu0 0
    %400 = vmatpush2.bf16.msra.mxu0 0
    %401 = vmatprep.subr.bf16.mxu0 0
    %402 = vmatpush2.bf16.msra.mxu0 0
    %403 = vmatprep.subr.bf16.mxu0 0
    %404 = vmatpush2.bf16.msra.mxu0 0
    %405 = vmatprep.mubr.bf16.mxu0 0
    %406 = vmatmul.mubr.bf16.gmra.mxu0 %v119
    %v407 = vpop.f32.mrf.mxu0
    %v408 = vadd.f32 %v168, %v407
    %v409 = vpop.f32.mrf.mxu0
    %v410 = vpop.f32.mrf.mxu0
    %v411 = vadd.f32 %v168, %v410
    %v412 = vpop.f32.mrf.mxu0
    %413 = vmatprep.mubr.bf16.mxu0 0
    %414 = vmatmul.mubr.bf16.gmra.mxu0 %v120
    %v415 = vpop.f32.mrf.mxu0
    %v416 = vadd.f32 %v168, %v415
    %v417 = vpop.f32.mrf.mxu0
    %v418 = vpop.f32.mrf.mxu0
    %v419 = vadd.f32 %v168, %v418
    %v420 = vpop.f32.mrf.mxu0
    %421 = vmatprep.mubr.bf16.mxu0 0
    %422 = vmatmul.mubr.bf16.gmra.mxu0 %v121
    %v423 = vpop.f32.mrf.mxu0
    %v424 = vadd.f32 %v168, %v423
    %v425 = vpop.f32.mrf.mxu0
    %v426 = vpop.f32.mrf.mxu0
    %v427 = vadd.f32 %v168, %v426
    %v428 = vpop.f32.mrf.mxu0
    %429 = vmatprep.mubr.bf16.mxu0 0
    %430 = vmatmul.mubr.bf16.gmra.mxu0 %v122
    %v431 = vpop.f32.mrf.mxu0
    %v432 = vadd.f32 %v168, %v431
    %v433 = vpop.f32.mrf.mxu0
    %v434 = vpop.f32.mrf.mxu0
    %v435 = vadd.f32 %v168, %v434
    %v436 = vpop.f32.mrf.mxu0
    %437 = vdwg.mxu0
    %v438 = vmul.f32 %v335, 0.125
    %v439 = vmul.f32 %v339, 0.125
    %v440 = vmul.f32 %v345, 0.125
    %v441 = vmul.f32 %v349, 0.125
    %v442 = vmul.f32 %v355, 0.125
    %v443 = vmul.f32 %v359, 0.125
    %v444 = vmul.f32 %v365, 0.125
    %v445 = vmul.f32 %v369, 0.125
    %v446 = vpack.c.bf16 %v438, %v438
    %v447 = vpack.c.bf16 %v439, %v439
    %v448 = vpack.c.bf16 %v440, %v440
    %v449 = vpack.c.bf16 %v441, %v441
    %v450 = vpack.c.bf16 %v442, %v442
    %v451 = vpack.c.bf16 %v443, %v443
    %v452 = vpack.c.bf16 %v444, %v444
    %v453 = vpack.c.bf16 %v445, %v445
    %v454 = vpack.c.bf16 %v337, %v337
    %v455 = vpack.c.bf16 %v341, %v341
    %v456 = vpack.c.bf16 %v347, %v347
    %v457 = vpack.c.bf16 %v351, %v351
    %v458 = vpack.c.bf16 %v357, %v357
    %v459 = vpack.c.bf16 %v361, %v361
    %v460 = vpack.c.bf16 %v367, %v367
    %v461 = vpack.c.bf16 %v371, %v371
    %v462 = vpack.c.bf16 %v408, %v408
    %v463 = vpack.c.bf16 %v411, %v411
    %v464 = vpack.c.bf16 %v416, %v416
    %v465 = vpack.c.bf16 %v419, %v419
    %v466 = vpack.c.bf16 %v424, %v424
    %v467 = vpack.c.bf16 %v427, %v427
    %v468 = vpack.c.bf16 %v432, %v432
    %v469 = vpack.c.bf16 %v435, %v435
    %vm470 = vcmask 523264
    %v472 = vsel %vm470, %v446, 0
    %v475 = vsel %vm470, %v454, 0
    %477 = vmatprep.subr.bf16.mxu0 0
    %478 = vmatpush1.bf16.xpose.msra.mxu0 0
    %479 = vmatprep.subr.bf16.mxu0 0
    %480 = vmatpush1.bf16.xpose.msra.mxu0 0
    %481 = vmatprep.subr.bf16.mxu0 0
    %482 = vmatpush1.bf16.xpose.msra.mxu0 0
    %483 = vmatprep.subr.bf16.mxu0 0
    %484 = vmatpush1.bf16.xpose.msra.mxu0 0
    %485 = vmatprep.subr.bf16.mxu0 0
    %486 = vmatpush1.bf16.xpose.msra.mxu0 0
    %487 = vmatprep.subr.bf16.mxu0 0
    %488 = vmatpush1.bf16.xpose.msra.mxu0 0
    %489 = vmatprep.subr.bf16.mxu0 0
    %490 = vmatpush1.bf16.xpose.msra.mxu0 0
    %491 = vmatprep.subr.bf16.mxu0 0
    %492 = vmatpush1.bf16.xpose.msra.mxu0 %v475
    %493 = vmatprep.subr.bf16.mxu0 0
    %494 = vmatpush2.bf16.xpose.msra.mxu0 0
    %495 = vmatprep.subr.bf16.mxu0 0
    %496 = vmatpush2.bf16.xpose.msra.mxu0 0
    %497 = vmatprep.subr.bf16.mxu0 0
    %498 = vmatpush2.bf16.xpose.msra.mxu0 0
    %499 = vmatprep.subr.bf16.mxu0 0
    %500 = vmatpush2.bf16.xpose.msra.mxu0 0
    %501 = vmatprep.subr.bf16.mxu0 0
    %502 = vmatpush2.bf16.xpose.msra.mxu0 0
    %503 = vmatprep.subr.bf16.mxu0 0
    %504 = vmatpush2.bf16.xpose.msra.mxu0 0
    %505 = vmatprep.subr.bf16.mxu0 0
    %506 = vmatpush2.bf16.xpose.msra.mxu0 0
    %507 = vmatprep.subr.bf16.mxu0 0
    %508 = vmatpush2.bf16.xpose.msra.mxu0 0
    %509 = vmatprep.mubr.bf16.mxu0 0
    %510 = vmatmul.mubr.bf16.gmra.mxu0 %v472
    %v511 = vpop.f32.mrf.mxu0
    %v512 = vadd.f32 0.0, %v511
    %v513 = vpop.f32.mrf.mxu0
    %v514 = vpop.f32.mrf.mxu0
    %v515 = vpop.f32.mrf.mxu0
    %516 = vdwg.mxu0
    %v518 = vsel %vm470, %v447, 0
    %v521 = vsel %vm470, %v455, 0
    %523 = vmatprep.subr.bf16.mxu0 0
    %524 = vmatpush1.bf16.xpose.msra.mxu0 0
    %525 = vmatprep.subr.bf16.mxu0 0
    %526 = vmatpush1.bf16.xpose.msra.mxu0 0
    %527 = vmatprep.subr.bf16.mxu0 0
    %528 = vmatpush1.bf16.xpose.msra.mxu0 0
    %529 = vmatprep.subr.bf16.mxu0 0
    %530 = vmatpush1.bf16.xpose.msra.mxu0 0
    %531 = vmatprep.subr.bf16.mxu0 0
    %532 = vmatpush1.bf16.xpose.msra.mxu0 0
    %533 = vmatprep.subr.bf16.mxu0 0
    %534 = vmatpush1.bf16.xpose.msra.mxu0 0
    %535 = vmatprep.subr.bf16.mxu0 0
    %536 = vmatpush1.bf16.xpose.msra.mxu0 0
    %537 = vmatprep.subr.bf16.mxu0 0
    %538 = vmatpush1.bf16.xpose.msra.mxu0 %v521
    %539 = vmatprep.subr.bf16.mxu0 0
    %540 = vmatpush2.bf16.xpose.msra.mxu0 0
    %541 = vmatprep.subr.bf16.mxu0 0
    %542 = vmatpush2.bf16.xpose.msra.mxu0 0
    %543 = vmatprep.subr.bf16.mxu0 0
    %544 = vmatpush2.bf16.xpose.msra.mxu0 0
    %545 = vmatprep.subr.bf16.mxu0 0
    %546 = vmatpush2.bf16.xpose.msra.mxu0 0
    %547 = vmatprep.subr.bf16.mxu0 0
    %548 = vmatpush2.bf16.xpose.msra.mxu0 0
    %549 = vmatprep.subr.bf16.mxu0 0
    %550 = vmatpush2.bf16.xpose.msra.mxu0 0
    %551 = vmatprep.subr.bf16.mxu0 0
    %552 = vmatpush2.bf16.xpose.msra.mxu0 0
    %553 = vmatprep.subr.bf16.mxu0 0
    %554 = vmatpush2.bf16.xpose.msra.mxu0 0
    %555 = vmatprep.mubr.bf16.mxu0 0
    %556 = vmatmul.mubr.bf16.gmra.mxu0 %v518
    %v557 = vpop.f32.mrf.mxu0
    %v558 = vadd.f32 0.0, %v557
    %v559 = vpop.f32.mrf.mxu0
    %v560 = vpop.f32.mrf.mxu0
    %v561 = vpop.f32.mrf.mxu0
    %562 = vdwg.mxu0
    %v564 = vsel %vm470, %v448, 0
    %v567 = vsel %vm470, %v456, 0
    %569 = vmatprep.subr.bf16.mxu0 0
    %570 = vmatpush1.bf16.xpose.msra.mxu0 0
    %571 = vmatprep.subr.bf16.mxu0 0
    %572 = vmatpush1.bf16.xpose.msra.mxu0 0
    %573 = vmatprep.subr.bf16.mxu0 0
    %574 = vmatpush1.bf16.xpose.msra.mxu0 0
    %575 = vmatprep.subr.bf16.mxu0 0
    %576 = vmatpush1.bf16.xpose.msra.mxu0 0
    %577 = vmatprep.subr.bf16.mxu0 0
    %578 = vmatpush1.bf16.xpose.msra.mxu0 0
    %579 = vmatprep.subr.bf16.mxu0 0
    %580 = vmatpush1.bf16.xpose.msra.mxu0 0
    %581 = vmatprep.subr.bf16.mxu0 0
    %582 = vmatpush1.bf16.xpose.msra.mxu0 0
    %583 = vmatprep.subr.bf16.mxu0 0
    %584 = vmatpush1.bf16.xpose.msra.mxu0 %v567
    %585 = vmatprep.subr.bf16.mxu0 0
    %586 = vmatpush2.bf16.xpose.msra.mxu0 0
    %587 = vmatprep.subr.bf16.mxu0 0
    %588 = vmatpush2.bf16.xpose.msra.mxu0 0
    %589 = vmatprep.subr.bf16.mxu0 0
    %590 = vmatpush2.bf16.xpose.msra.mxu0 0
    %591 = vmatprep.subr.bf16.mxu0 0
    %592 = vmatpush2.bf16.xpose.msra.mxu0 0
    %593 = vmatprep.subr.bf16.mxu0 0
    %594 = vmatpush2.bf16.xpose.msra.mxu0 0
    %595 = vmatprep.subr.bf16.mxu0 0
    %596 = vmatpush2.bf16.xpose.msra.mxu0 0
    %597 = vmatprep.subr.bf16.mxu0 0
    %598 = vmatpush2.bf16.xpose.msra.mxu0 0
    %599 = vmatprep.subr.bf16.mxu0 0
    %600 = vmatpush2.bf16.xpose.msra.mxu0 0
    %601 = vmatprep.mubr.bf16.mxu0 0
    %602 = vmatmul.mubr.bf16.gmra.mxu0 %v564
    %v603 = vpop.f32.mrf.mxu0
    %v604 = vadd.f32 0.0, %v603
    %v605 = vpop.f32.mrf.mxu0
    %v606 = vpop.f32.mrf.mxu0
    %v607 = vpop.f32.mrf.mxu0
    %608 = vdwg.mxu0
    %v610 = vsel %vm470, %v449, 0
    %v613 = vsel %vm470, %v457, 0
    %615 = vmatprep.subr.bf16.mxu0 0
    %616 = vmatpush1.bf16.xpose.msra.mxu0 0
    %617 = vmatprep.subr.bf16.mxu0 0
    %618 = vmatpush1.bf16.xpose.msra.mxu0 0
    %619 = vmatprep.subr.bf16.mxu0 0
    %620 = vmatpush1.bf16.xpose.msra.mxu0 0
    %621 = vmatprep.subr.bf16.mxu0 0
    %622 = vmatpush1.bf16.xpose.msra.mxu0 0
    %623 = vmatprep.subr.bf16.mxu0 0
    %624 = vmatpush1.bf16.xpose.msra.mxu0 0
    %625 = vmatprep.subr.bf16.mxu0 0
    %626 = vmatpush1.bf16.xpose.msra.mxu0 0
    %627 = vmatprep.subr.bf16.mxu0 0
    %628 = vmatpush1.bf16.xpose.msra.mxu0 0
    %629 = vmatprep.subr.bf16.mxu0 0
    %630 = vmatpush1.bf16.xpose.msra.mxu0 %v613
    %631 = vmatprep.subr.bf16.mxu0 0
    %632 = vmatpush2.bf16.xpose.msra.mxu0 0
    %633 = vmatprep.subr.bf16.mxu0 0
    %634 = vmatpush2.bf16.xpose.msra.mxu0 0
    %635 = vmatprep.subr.bf16.mxu0 0
    %636 = vmatpush2.bf16.xpose.msra.mxu0 0
    %637 = vmatprep.subr.bf16.mxu0 0
    %638 = vmatpush2.bf16.xpose.msra.mxu0 0
    %639 = vmatprep.subr.bf16.mxu0 0
    %640 = vmatpush2.bf16.xpose.msra.mxu0 0
    %641 = vmatprep.subr.bf16.mxu0 0
    %642 = vmatpush2.bf16.xpose.msra.mxu0 0
    %643 = vmatprep.subr.bf16.mxu0 0
    %644 = vmatpush2.bf16.xpose.msra.mxu0 0
    %645 = vmatprep.subr.bf16.mxu0 0
    %646 = vmatpush2.bf16.xpose.msra.mxu0 0
    %647 = vmatprep.mubr.bf16.mxu0 0
    %648 = vmatmul.mubr.bf16.gmra.mxu0 %v610
    %v649 = vpop.f32.mrf.mxu0
    %v650 = vadd.f32 0.0, %v649
    %v651 = vpop.f32.mrf.mxu0
    %v652 = vpop.f32.mrf.mxu0
    %v653 = vpop.f32.mrf.mxu0
    %654 = vdwg.mxu0
    %v656 = vsel %vm470, %v450, 0
    %v659 = vsel %vm470, %v458, 0
    %661 = vmatprep.subr.bf16.mxu0 0
    %662 = vmatpush1.bf16.xpose.msra.mxu0 0
    %663 = vmatprep.subr.bf16.mxu0 0
    %664 = vmatpush1.bf16.xpose.msra.mxu0 0
    %665 = vmatprep.subr.bf16.mxu0 0
    %666 = vmatpush1.bf16.xpose.msra.mxu0 0
    %667 = vmatprep.subr.bf16.mxu0 0
    %668 = vmatpush1.bf16.xpose.msra.mxu0 0
    %669 = vmatprep.subr.bf16.mxu0 0
    %670 = vmatpush1.bf16.xpose.msra.mxu0 0
    %671 = vmatprep.subr.bf16.mxu0 0
    %672 = vmatpush1.bf16.xpose.msra.mxu0 0
    %673 = vmatprep.subr.bf16.mxu0 0
    %674 = vmatpush1.bf16.xpose.msra.mxu0 0
    %675 = vmatprep.subr.bf16.mxu0 0
    %676 = vmatpush1.bf16.xpose.msra.mxu0 %v659
    %677 = vmatprep.subr.bf16.mxu0 0
    %678 = vmatpush2.bf16.xpose.msra.mxu0 0
    %679 = vmatprep.subr.bf16.mxu0 0
    %680 = vmatpush2.bf16.xpose.msra.mxu0 0
    %681 = vmatprep.subr.bf16.mxu0 0
    %682 = vmatpush2.bf16.xpose.msra.mxu0 0
    %683 = vmatprep.subr.bf16.mxu0 0
    %684 = vmatpush2.bf16.xpose.msra.mxu0 0
    %685 = vmatprep.subr.bf16.mxu0 0
    %686 = vmatpush2.bf16.xpose.msra.mxu0 0
    %687 = vmatprep.subr.bf16.mxu0 0
    %688 = vmatpush2.bf16.xpose.msra.mxu0 0
    %689 = vmatprep.subr.bf16.mxu0 0
    %690 = vmatpush2.bf16.xpose.msra.mxu0 0
    %691 = vmatprep.subr.bf16.mxu0 0
    %692 = vmatpush2.bf16.xpose.msra.mxu0 0
    %693 = vmatprep.mubr.bf16.mxu0 0
    %694 = vmatmul.mubr.bf16.gmra.mxu0 %v656
    %v695 = vpop.f32.mrf.mxu0
    %v696 = vadd.f32 0.0, %v695
    %v697 = vpop.f32.mrf.mxu0
    %v698 = vpop.f32.mrf.mxu0
    %v699 = vpop.f32.mrf.mxu0
    %700 = vdwg.mxu0
    %v702 = vsel %vm470, %v451, 0
    %v705 = vsel %vm470, %v459, 0
    %707 = vmatprep.subr.bf16.mxu0 0
    %708 = vmatpush1.bf16.xpose.msra.mxu0 0
    %709 = vmatprep.subr.bf16.mxu0 0
    %710 = vmatpush1.bf16.xpose.msra.mxu0 0
    %711 = vmatprep.subr.bf16.mxu0 0
    %712 = vmatpush1.bf16.xpose.msra.mxu0 0
    %713 = vmatprep.subr.bf16.mxu0 0
    %714 = vmatpush1.bf16.xpose.msra.mxu0 0
    %715 = vmatprep.subr.bf16.mxu0 0
    %716 = vmatpush1.bf16.xpose.msra.mxu0 0
    %717 = vmatprep.subr.bf16.mxu0 0
    %718 = vmatpush1.bf16.xpose.msra.mxu0 0
    %719 = vmatprep.subr.bf16.mxu0 0
    %720 = vmatpush1.bf16.xpose.msra.mxu0 0
    %721 = vmatprep.subr.bf16.mxu0 0
    %722 = vmatpush1.bf16.xpose.msra.mxu0 %v705
    %723 = vmatprep.subr.bf16.mxu0 0
    %724 = vmatpush2.bf16.xpose.msra.mxu0 0
    %725 = vmatprep.subr.bf16.mxu0 0
    %726 = vmatpush2.bf16.xpose.msra.mxu0 0
    %727 = vmatprep.subr.bf16.mxu0 0
    %728 = vmatpush2.bf16.xpose.msra.mxu0 0
    %729 = vmatprep.subr.bf16.mxu0 0
    %730 = vmatpush2.bf16.xpose.msra.mxu0 0
    %731 = vmatprep.subr.bf16.mxu0 0
    %732 = vmatpush2.bf16.xpose.msra.mxu0 0
    %733 = vmatprep.subr.bf16.mxu0 0
    %734 = vmatpush2.bf16.xpose.msra.mxu0 0
    %735 = vmatprep.subr.bf16.mxu0 0
    %736 = vmatpush2.bf16.xpose.msra.mxu0 0
    %737 = vmatprep.subr.bf16.mxu0 0
    %738 = vmatpush2.bf16.xpose.msra.mxu0 0
    %739 = vmatprep.mubr.bf16.mxu0 0
    %740 = vmatmul.mubr.bf16.gmra.mxu0 %v702
    %v741 = vpop.f32.mrf.mxu0
    %v742 = vadd.f32 0.0, %v741
    %v743 = vpop.f32.mrf.mxu0
    %v744 = vpop.f32.mrf.mxu0
    %v745 = vpop.f32.mrf.mxu0
    %746 = vdwg.mxu0
    %v748 = vsel %vm470, %v452, 0
    %v751 = vsel %vm470, %v460, 0
    %753 = vmatprep.subr.bf16.mxu0 0
    %754 = vmatpush1.bf16.xpose.msra.mxu0 0
    %755 = vmatprep.subr.bf16.mxu0 0
    %756 = vmatpush1.bf16.xpose.msra.mxu0 0
    %757 = vmatprep.subr.bf16.mxu0 0
    %758 = vmatpush1.bf16.xpose.msra.mxu0 0
    %759 = vmatprep.subr.bf16.mxu0 0
    %760 = vmatpush1.bf16.xpose.msra.mxu0 0
    %761 = vmatprep.subr.bf16.mxu0 0
    %762 = vmatpush1.bf16.xpose.msra.mxu0 0
    %763 = vmatprep.subr.bf16.mxu0 0
    %764 = vmatpush1.bf16.xpose.msra.mxu0 0
    %765 = vmatprep.subr.bf16.mxu0 0
    %766 = vmatpush1.bf16.xpose.msra.mxu0 0
    %767 = vmatprep.subr.bf16.mxu0 0
    %768 = vmatpush1.bf16.xpose.msra.mxu0 %v751
    %769 = vmatprep.subr.bf16.mxu0 0
    %770 = vmatpush2.bf16.xpose.msra.mxu0 0
    %771 = vmatprep.subr.bf16.mxu0 0
    %772 = vmatpush2.bf16.xpose.msra.mxu0 0
    %773 = vmatprep.subr.bf16.mxu0 0
    %774 = vmatpush2.bf16.xpose.msra.mxu0 0
    %775 = vmatprep.subr.bf16.mxu0 0
    %776 = vmatpush2.bf16.xpose.msra.mxu0 0
    %777 = vmatprep.subr.bf16.mxu0 0
    %778 = vmatpush2.bf16.xpose.msra.mxu0 0
    %779 = vmatprep.subr.bf16.mxu0 0
    %780 = vmatpush2.bf16.xpose.msra.mxu0 0
    %781 = vmatprep.subr.bf16.mxu0 0
    %782 = vmatpush2.bf16.xpose.msra.mxu0 0
    %783 = vmatprep.subr.bf16.mxu0 0
    %784 = vmatpush2.bf16.xpose.msra.mxu0 0
    %785 = vmatprep.mubr.bf16.mxu0 0
    %786 = vmatmul.mubr.bf16.gmra.mxu0 %v748
    %v787 = vpop.f32.mrf.mxu0
    %v788 = vadd.f32 0.0, %v787
    %v789 = vpop.f32.mrf.mxu0
    %v790 = vpop.f32.mrf.mxu0
    %v791 = vpop.f32.mrf.mxu0
    %792 = vdwg.mxu0
    %v794 = vsel %vm470, %v453, 0
    %v797 = vsel %vm470, %v461, 0
    %799 = vmatprep.subr.bf16.mxu0 0
    %800 = vmatpush1.bf16.xpose.msra.mxu0 0
    %801 = vmatprep.subr.bf16.mxu0 0
    %802 = vmatpush1.bf16.xpose.msra.mxu0 0
    %803 = vmatprep.subr.bf16.mxu0 0
    %804 = vmatpush1.bf16.xpose.msra.mxu0 0
    %805 = vmatprep.subr.bf16.mxu0 0
    %806 = vmatpush1.bf16.xpose.msra.mxu0 0
    %807 = vmatprep.subr.bf16.mxu0 0
    %808 = vmatpush1.bf16.xpose.msra.mxu0 0
    %809 = vmatprep.subr.bf16.mxu0 0
    %810 = vmatpush1.bf16.xpose.msra.mxu0 0
    %811 = vmatprep.subr.bf16.mxu0 0
    %812 = vmatpush1.bf16.xpose.msra.mxu0 0
    %813 = vmatprep.subr.bf16.mxu0 0
    %814 = vmatpush1.bf16.xpose.msra.mxu0 %v797
    %815 = vmatprep.subr.bf16.mxu0 0
    %816 = vmatpush2.bf16.xpose.msra.mxu0 0
    %817 = vmatprep.subr.bf16.mxu0 0
    %818 = vmatpush2.bf16.xpose.msra.mxu0 0
    %819 = vmatprep.subr.bf16.mxu0 0
    %820 = vmatpush2.bf16.xpose.msra.mxu0 0
    %821 = vmatprep.subr.bf16.mxu0 0
    %822 = vmatpush2.bf16.xpose.msra.mxu0 0
    %823 = vmatprep.subr.bf16.mxu0 0
    %824 = vmatpush2.bf16.xpose.msra.mxu0 0
    %825 = vmatprep.subr.bf16.mxu0 0
    %826 = vmatpush2.bf16.xpose.msra.mxu0 0
    %827 = vmatprep.subr.bf16.mxu0 0
    %828 = vmatpush2.bf16.xpose.msra.mxu0 0
    %829 = vmatprep.subr.bf16.mxu0 0
    %830 = vmatpush2.bf16.xpose.msra.mxu0 0
    %831 = vmatprep.mubr.bf16.mxu0 0
    %832 = vmatmul.mubr.bf16.gmra.mxu0 %v794
    %v833 = vpop.f32.mrf.mxu0
    %v834 = vadd.f32 0.0, %v833
    %v835 = vpop.f32.mrf.mxu0
    %v836 = vpop.f32.mrf.mxu0
    %v837 = vpop.f32.mrf.mxu0
    %838 = vdwg.mxu0
    %vm839 = vcmask 64512
    %v840 = vsel %vm839, %v512, -inf
    %841 = vmax.xlane.f32.xlu0 %v840
    %v842 = vpop.xlane.xlu0 %841
    %v843 = vsel %vm839, %v558, -inf
    %844 = vmax.xlane.f32.xlu0 %v843
    %v845 = vpop.xlane.xlu0 %844
    %v846 = vsel %vm839, %v604, -inf
    %847 = vmax.xlane.f32.xlu0 %v846
    %v848 = vpop.xlane.xlu0 %847
    %v849 = vsel %vm839, %v650, -inf
    %850 = vmax.xlane.f32.xlu0 %v849
    %v851 = vpop.xlane.xlu0 %850
    %v852 = vsel %vm839, %v696, -inf
    %853 = vmax.xlane.f32.xlu0 %v852
    %v854 = vpop.xlane.xlu0 %853
    %v855 = vsel %vm839, %v742, -inf
    %856 = vmax.xlane.f32.xlu0 %v855
    %v857 = vpop.xlane.xlu0 %856
    %v858 = vsel %vm839, %v788, -inf
    %859 = vmax.xlane.f32.xlu0 %v858
    %v860 = vpop.xlane.xlu0 %859
    %v861 = vsel %vm839, %v834, -inf
    %862 = vmax.xlane.f32.xlu0 %v861
    %v863 = vpop.xlane.xlu0 %862
    %v864 = vsub.f32 %v512, %v842
    %v865 = vsub.f32 %v558, %v845
    %v866 = vsub.f32 %v604, %v848
    %v867 = vsub.f32 %v650, %v851
    %v868 = vsub.f32 %v696, %v854
    %v869 = vsub.f32 %v742, %v857
    %v870 = vsub.f32 %v788, %v860
    %v871 = vsub.f32 %v834, %v863
    %v872 = vmul.f32 %v864, 1.442695
    %v873 = vpow.pop %v872
    %v874 = vmul.f32 %v865, 1.442695
    %v875 = vpow.pop %v874
    %v876 = vmul.f32 %v866, 1.442695
    %v877 = vpow.pop %v876
    %v878 = vmul.f32 %v867, 1.442695
    %v879 = vpow.pop %v878
    %v880 = vmul.f32 %v868, 1.442695
    %v881 = vpow.pop %v880
    %v882 = vmul.f32 %v869, 1.442695
    %v883 = vpow.pop %v882
    %v884 = vmul.f32 %v870, 1.442695
    %v885 = vpow.pop %v884
    %v886 = vmul.f32 %v871, 1.442695
    %v887 = vpow.pop %v886
    %v888 = vsel %vm839, %v873, 0.0
    %889 = vadd.xlane.f32.xlu0 %v888
    %v890 = vpop.xlane.xlu0 %889
    %v891 = vsel %vm839, %v875, 0.0
    %892 = vadd.xlane.f32.xlu0 %v891
    %v893 = vpop.xlane.xlu0 %892
    %v894 = vsel %vm839, %v877, 0.0
    %895 = vadd.xlane.f32.xlu0 %v894
    %v896 = vpop.xlane.xlu0 %895
    %v897 = vsel %vm839, %v879, 0.0
    %898 = vadd.xlane.f32.xlu0 %v897
    %v899 = vpop.xlane.xlu0 %898
    %v900 = vsel %vm839, %v881, 0.0
    %901 = vadd.xlane.f32.xlu0 %v900
    %v902 = vpop.xlane.xlu0 %901
    %v903 = vsel %vm839, %v883, 0.0
    %904 = vadd.xlane.f32.xlu0 %v903
    %v905 = vpop.xlane.xlu0 %904
    %v906 = vsel %vm839, %v885, 0.0
    %907 = vadd.xlane.f32.xlu0 %v906
    %v908 = vpop.xlane.xlu0 %907
    %v909 = vsel %vm839, %v887, 0.0
    %910 = vadd.xlane.f32.xlu0 %v909
    %v911 = vpop.xlane.xlu0 %910
    %v912 = vrcp.pop %v890
    %v913 = vrcp.pop %v893
    %v914 = vrcp.pop %v896
    %v915 = vrcp.pop %v899
    %v916 = vrcp.pop %v902
    %v917 = vrcp.pop %v905
    %v918 = vrcp.pop %v908
    %v919 = vrcp.pop %v911
    %v920 = vmul.f32 %v873, %v912
    %v921 = vmul.f32 %v875, %v913
    %v922 = vmul.f32 %v877, %v914
    %v923 = vmul.f32 %v879, %v915
    %v924 = vmul.f32 %v881, %v916
    %v925 = vmul.f32 %v883, %v917
    %v926 = vmul.f32 %v885, %v918
    %v927 = vmul.f32 %v887, %v919
    %v928 = vpack.c.bf16 %v920, %v920
    %v929 = vpack.c.bf16 %v921, %v921
    %v930 = vpack.c.bf16 %v922, %v922
    %v931 = vpack.c.bf16 %v923, %v923
    %v932 = vpack.c.bf16 %v924, %v924
    %v933 = vpack.c.bf16 %v925, %v925
    %v934 = vpack.c.bf16 %v926, %v926
    %v935 = vpack.c.bf16 %v927, %v927
    %v937 = vsel %vm839, %v928, 0
    %vm939 = vcmask 1043456
    %v941 = vsel %vm939, %v462, 0
    %943 = vmatprep.subr.bf16.mxu0 0
    %944 = vmatpush1.bf16.msra.mxu0 0
    %945 = vmatprep.subr.bf16.mxu0 0
    %946 = vmatpush1.bf16.msra.mxu0 0
    %947 = vmatprep.subr.bf16.mxu0 0
    %948 = vmatpush1.bf16.msra.mxu0 0
    %949 = vmatprep.subr.bf16.mxu0 0
    %950 = vmatpush1.bf16.msra.mxu0 0
    %951 = vmatprep.subr.bf16.mxu0 0
    %952 = vmatpush1.bf16.msra.mxu0 0
    %953 = vmatprep.subr.bf16.mxu0 0
    %954 = vmatpush1.bf16.msra.mxu0 0
    %955 = vmatprep.subr.bf16.mxu0 0
    %956 = vmatpush1.bf16.msra.mxu0 0
    %957 = vmatprep.subr.bf16.mxu0 0
    %958 = vmatpush1.bf16.msra.mxu0 %v941
    %959 = vmatprep.subr.bf16.mxu0 0
    %960 = vmatpush2.bf16.msra.mxu0 0
    %961 = vmatprep.subr.bf16.mxu0 0
    %962 = vmatpush2.bf16.msra.mxu0 0
    %963 = vmatprep.subr.bf16.mxu0 0
    %964 = vmatpush2.bf16.msra.mxu0 0
    %965 = vmatprep.subr.bf16.mxu0 0
    %966 = vmatpush2.bf16.msra.mxu0 0
    %967 = vmatprep.subr.bf16.mxu0 0
    %968 = vmatpush2.bf16.msra.mxu0 0
    %969 = vmatprep.subr.bf16.mxu0 0
    %970 = vmatpush2.bf16.msra.mxu0 0
    %971 = vmatprep.subr.bf16.mxu0 0
    %972 = vmatpush2.bf16.msra.mxu0 0
    %973 = vmatprep.subr.bf16.mxu0 0
    %974 = vmatpush2.bf16.msra.mxu0 0
    %975 = vmatprep.mubr.bf16.mxu0 0
    %976 = vmatmul.mubr.bf16.gmra.mxu0 %v937
    %v977 = vpop.f32.mrf.mxu0
    %v978 = vadd.f32 0.0, %v977
    %v979 = vpop.f32.mrf.mxu0
    %v980 = vpop.f32.mrf.mxu0
    %v981 = vpop.f32.mrf.mxu0
    %982 = vdwg.mxu0
    %v984 = vsel %vm839, %v929, 0
    %v987 = vsel %vm939, %v463, 0
    %989 = vmatprep.subr.bf16.mxu0 0
    %990 = vmatpush1.bf16.msra.mxu0 0
    %991 = vmatprep.subr.bf16.mxu0 0
    %992 = vmatpush1.bf16.msra.mxu0 0
    %993 = vmatprep.subr.bf16.mxu0 0
    %994 = vmatpush1.bf16.msra.mxu0 0
    %995 = vmatprep.subr.bf16.mxu0 0
    %996 = vmatpush1.bf16.msra.mxu0 0
    %997 = vmatprep.subr.bf16.mxu0 0
    %998 = vmatpush1.bf16.msra.mxu0 0
    %999 = vmatprep.subr.bf16.mxu0 0
    %1000 = vmatpush1.bf16.msra.mxu0 0
    %1001 = vmatprep.subr.bf16.mxu0 0
    %1002 = vmatpush1.bf16.msra.mxu0 0
    %1003 = vmatprep.subr.bf16.mxu0 0
    %1004 = vmatpush1.bf16.msra.mxu0 %v987
    %1005 = vmatprep.subr.bf16.mxu0 0
    %1006 = vmatpush2.bf16.msra.mxu0 0
    %1007 = vmatprep.subr.bf16.mxu0 0
    %1008 = vmatpush2.bf16.msra.mxu0 0
    %1009 = vmatprep.subr.bf16.mxu0 0
    %1010 = vmatpush2.bf16.msra.mxu0 0
    %1011 = vmatprep.subr.bf16.mxu0 0
    %1012 = vmatpush2.bf16.msra.mxu0 0
    %1013 = vmatprep.subr.bf16.mxu0 0
    %1014 = vmatpush2.bf16.msra.mxu0 0
    %1015 = vmatprep.subr.bf16.mxu0 0
    %1016 = vmatpush2.bf16.msra.mxu0 0
    %1017 = vmatprep.subr.bf16.mxu0 0
    %1018 = vmatpush2.bf16.msra.mxu0 0
    %1019 = vmatprep.subr.bf16.mxu0 0
    %1020 = vmatpush2.bf16.msra.mxu0 0
    %1021 = vmatprep.mubr.bf16.mxu0 0
    %1022 = vmatmul.mubr.bf16.gmra.mxu0 %v984
    %v1023 = vpop.f32.mrf.mxu0
    %v1024 = vadd.f32 0.0, %v1023
    %v1025 = vpop.f32.mrf.mxu0
    %v1026 = vpop.f32.mrf.mxu0
    %v1027 = vpop.f32.mrf.mxu0
    %1028 = vdwg.mxu0
    %v1030 = vsel %vm839, %v930, 0
    %v1033 = vsel %vm939, %v464, 0
    %1035 = vmatprep.subr.bf16.mxu0 0
    %1036 = vmatpush1.bf16.msra.mxu0 0
    %1037 = vmatprep.subr.bf16.mxu0 0
    %1038 = vmatpush1.bf16.msra.mxu0 0
    %1039 = vmatprep.subr.bf16.mxu0 0
    %1040 = vmatpush1.bf16.msra.mxu0 0
    %1041 = vmatprep.subr.bf16.mxu0 0
    %1042 = vmatpush1.bf16.msra.mxu0 0
    %1043 = vmatprep.subr.bf16.mxu0 0
    %1044 = vmatpush1.bf16.msra.mxu0 0
    %1045 = vmatprep.subr.bf16.mxu0 0
    %1046 = vmatpush1.bf16.msra.mxu0 0
    %1047 = vmatprep.subr.bf16.mxu0 0
    %1048 = vmatpush1.bf16.msra.mxu0 0
    %1049 = vmatprep.subr.bf16.mxu0 0
    %1050 = vmatpush1.bf16.msra.mxu0 %v1033
    %1051 = vmatprep.subr.bf16.mxu0 0
    %1052 = vmatpush2.bf16.msra.mxu0 0
    %1053 = vmatprep.subr.bf16.mxu0 0
    %1054 = vmatpush2.bf16.msra.mxu0 0
    %1055 = vmatprep.subr.bf16.mxu0 0
    %1056 = vmatpush2.bf16.msra.mxu0 0
    %1057 = vmatprep.subr.bf16.mxu0 0
    %1058 = vmatpush2.bf16.msra.mxu0 0
    %1059 = vmatprep.subr.bf16.mxu0 0
    %1060 = vmatpush2.bf16.msra.mxu0 0
    %1061 = vmatprep.subr.bf16.mxu0 0
    %1062 = vmatpush2.bf16.msra.mxu0 0
    %1063 = vmatprep.subr.bf16.mxu0 0
    %1064 = vmatpush2.bf16.msra.mxu0 0
    %1065 = vmatprep.subr.bf16.mxu0 0
    %1066 = vmatpush2.bf16.msra.mxu0 0
    %1067 = vmatprep.mubr.bf16.mxu0 0
    %1068 = vmatmul.mubr.bf16.gmra.mxu0 %v1030
    %v1069 = vpop.f32.mrf.mxu0
    %v1070 = vadd.f32 0.0, %v1069
    %v1071 = vpop.f32.mrf.mxu0
    %v1072 = vpop.f32.mrf.mxu0
    %v1073 = vpop.f32.mrf.mxu0
    %1074 = vdwg.mxu0
    %v1076 = vsel %vm839, %v931, 0
    %v1079 = vsel %vm939, %v465, 0
    %1081 = vmatprep.subr.bf16.mxu0 0
    %1082 = vmatpush1.bf16.msra.mxu0 0
    %1083 = vmatprep.subr.bf16.mxu0 0
    %1084 = vmatpush1.bf16.msra.mxu0 0
    %1085 = vmatprep.subr.bf16.mxu0 0
    %1086 = vmatpush1.bf16.msra.mxu0 0
    %1087 = vmatprep.subr.bf16.mxu0 0
    %1088 = vmatpush1.bf16.msra.mxu0 0
    %1089 = vmatprep.subr.bf16.mxu0 0
    %1090 = vmatpush1.bf16.msra.mxu0 0
    %1091 = vmatprep.subr.bf16.mxu0 0
    %1092 = vmatpush1.bf16.msra.mxu0 0
    %1093 = vmatprep.subr.bf16.mxu0 0
    %1094 = vmatpush1.bf16.msra.mxu0 0
    %1095 = vmatprep.subr.bf16.mxu0 0
    %1096 = vmatpush1.bf16.msra.mxu0 %v1079
    %1097 = vmatprep.subr.bf16.mxu0 0
    %1098 = vmatpush2.bf16.msra.mxu0 0
    %1099 = vmatprep.subr.bf16.mxu0 0
    %1100 = vmatpush2.bf16.msra.mxu0 0
    %1101 = vmatprep.subr.bf16.mxu0 0
    %1102 = vmatpush2.bf16.msra.mxu0 0
    %1103 = vmatprep.subr.bf16.mxu0 0
    %1104 = vmatpush2.bf16.msra.mxu0 0
    %1105 = vmatprep.subr.bf16.mxu0 0
    %1106 = vmatpush2.bf16.msra.mxu0 0
    %1107 = vmatprep.subr.bf16.mxu0 0
    %1108 = vmatpush2.bf16.msra.mxu0 0
    %1109 = vmatprep.subr.bf16.mxu0 0
    %1110 = vmatpush2.bf16.msra.mxu0 0
    %1111 = vmatprep.subr.bf16.mxu0 0
    %1112 = vmatpush2.bf16.msra.mxu0 0
    %1113 = vmatprep.mubr.bf16.mxu0 0
    %1114 = vmatmul.mubr.bf16.gmra.mxu0 %v1076
    %v1115 = vpop.f32.mrf.mxu0
    %v1116 = vadd.f32 0.0, %v1115
    %v1117 = vpop.f32.mrf.mxu0
    %v1118 = vpop.f32.mrf.mxu0
    %v1119 = vpop.f32.mrf.mxu0
    %1120 = vdwg.mxu0
    %v1122 = vsel %vm839, %v932, 0
    %v1125 = vsel %vm939, %v466, 0
    %1127 = vmatprep.subr.bf16.mxu0 0
    %1128 = vmatpush1.bf16.msra.mxu0 0
    %1129 = vmatprep.subr.bf16.mxu0 0
    %1130 = vmatpush1.bf16.msra.mxu0 0
    %1131 = vmatprep.subr.bf16.mxu0 0
    %1132 = vmatpush1.bf16.msra.mxu0 0
    %1133 = vmatprep.subr.bf16.mxu0 0
    %1134 = vmatpush1.bf16.msra.mxu0 0
    %1135 = vmatprep.subr.bf16.mxu0 0
    %1136 = vmatpush1.bf16.msra.mxu0 0
    %1137 = vmatprep.subr.bf16.mxu0 0
    %1138 = vmatpush1.bf16.msra.mxu0 0
    %1139 = vmatprep.subr.bf16.mxu0 0
    %1140 = vmatpush1.bf16.msra.mxu0 0
    %1141 = vmatprep.subr.bf16.mxu0 0
    %1142 = vmatpush1.bf16.msra.mxu0 %v1125
    %1143 = vmatprep.subr.bf16.mxu0 0
    %1144 = vmatpush2.bf16.msra.mxu0 0
    %1145 = vmatprep.subr.bf16.mxu0 0
    %1146 = vmatpush2.bf16.msra.mxu0 0
    %1147 = vmatprep.subr.bf16.mxu0 0
    %1148 = vmatpush2.bf16.msra.mxu0 0
    %1149 = vmatprep.subr.bf16.mxu0 0
    %1150 = vmatpush2.bf16.msra.mxu0 0
    %1151 = vmatprep.subr.bf16.mxu0 0
    %1152 = vmatpush2.bf16.msra.mxu0 0
    %1153 = vmatprep.subr.bf16.mxu0 0
    %1154 = vmatpush2.bf16.msra.mxu0 0
    %1155 = vmatprep.subr.bf16.mxu0 0
    %1156 = vmatpush2.bf16.msra.mxu0 0
    %1157 = vmatprep.subr.bf16.mxu0 0
    %1158 = vmatpush2.bf16.msra.mxu0 0
    %1159 = vmatprep.mubr.bf16.mxu0 0
    %1160 = vmatmul.mubr.bf16.gmra.mxu0 %v1122
    %v1161 = vpop.f32.mrf.mxu0
    %v1162 = vadd.f32 0.0, %v1161
    %v1163 = vpop.f32.mrf.mxu0
    %v1164 = vpop.f32.mrf.mxu0
    %v1165 = vpop.f32.mrf.mxu0
    %1166 = vdwg.mxu0
    %v1168 = vsel %vm839, %v933, 0
    %v1171 = vsel %vm939, %v467, 0
    %1173 = vmatprep.subr.bf16.mxu0 0
    %1174 = vmatpush1.bf16.msra.mxu0 0
    %1175 = vmatprep.subr.bf16.mxu0 0
    %1176 = vmatpush1.bf16.msra.mxu0 0
    %1177 = vmatprep.subr.bf16.mxu0 0
    %1178 = vmatpush1.bf16.msra.mxu0 0
    %1179 = vmatprep.subr.bf16.mxu0 0
    %1180 = vmatpush1.bf16.msra.mxu0 0
    %1181 = vmatprep.subr.bf16.mxu0 0
    %1182 = vmatpush1.bf16.msra.mxu0 0
    %1183 = vmatprep.subr.bf16.mxu0 0
    %1184 = vmatpush1.bf16.msra.mxu0 0
    %1185 = vmatprep.subr.bf16.mxu0 0
    %1186 = vmatpush1.bf16.msra.mxu0 0
    %1187 = vmatprep.subr.bf16.mxu0 0
    %1188 = vmatpush1.bf16.msra.mxu0 %v1171
    %1189 = vmatprep.subr.bf16.mxu0 0
    %1190 = vmatpush2.bf16.msra.mxu0 0
    %1191 = vmatprep.subr.bf16.mxu0 0
    %1192 = vmatpush2.bf16.msra.mxu0 0
    %1193 = vmatprep.subr.bf16.mxu0 0
    %1194 = vmatpush2.bf16.msra.mxu0 0
    %1195 = vmatprep.subr.bf16.mxu0 0
    %1196 = vmatpush2.bf16.msra.mxu0 0
    %1197 = vmatprep.subr.bf16.mxu0 0
    %1198 = vmatpush2.bf16.msra.mxu0 0
    %1199 = vmatprep.subr.bf16.mxu0 0
    %1200 = vmatpush2.bf16.msra.mxu0 0
    %1201 = vmatprep.subr.bf16.mxu0 0
    %1202 = vmatpush2.bf16.msra.mxu0 0
    %1203 = vmatprep.subr.bf16.mxu0 0
    %1204 = vmatpush2.bf16.msra.mxu0 0
    %1205 = vmatprep.mubr.bf16.mxu0 0
    %1206 = vmatmul.mubr.bf16.gmra.mxu0 %v1168
    %v1207 = vpop.f32.mrf.mxu0
    %v1208 = vadd.f32 0.0, %v1207
    %v1209 = vpop.f32.mrf.mxu0
    %v1210 = vpop.f32.mrf.mxu0
    %v1211 = vpop.f32.mrf.mxu0
    %1212 = vdwg.mxu0
    %v1214 = vsel %vm839, %v934, 0
    %v1217 = vsel %vm939, %v468, 0
    %1219 = vmatprep.subr.bf16.mxu0 0
    %1220 = vmatpush1.bf16.msra.mxu0 0
    %1221 = vmatprep.subr.bf16.mxu0 0
    %1222 = vmatpush1.bf16.msra.mxu0 0
    %1223 = vmatprep.subr.bf16.mxu0 0
    %1224 = vmatpush1.bf16.msra.mxu0 0
    %1225 = vmatprep.subr.bf16.mxu0 0
    %1226 = vmatpush1.bf16.msra.mxu0 0
    %1227 = vmatprep.subr.bf16.mxu0 0
    %1228 = vmatpush1.bf16.msra.mxu0 0
    %1229 = vmatprep.subr.bf16.mxu0 0
    %1230 = vmatpush1.bf16.msra.mxu0 0
    %1231 = vmatprep.subr.bf16.mxu0 0
    %1232 = vmatpush1.bf16.msra.mxu0 0
    %1233 = vmatprep.subr.bf16.mxu0 0
    %1234 = vmatpush1.bf16.msra.mxu0 %v1217
    %1235 = vmatprep.subr.bf16.mxu0 0
    %1236 = vmatpush2.bf16.msra.mxu0 0
    %1237 = vmatprep.subr.bf16.mxu0 0
    %1238 = vmatpush2.bf16.msra.mxu0 0
    %1239 = vmatprep.subr.bf16.mxu0 0
    %1240 = vmatpush2.bf16.msra.mxu0 0
    %1241 = vmatprep.subr.bf16.mxu0 0
    %1242 = vmatpush2.bf16.msra.mxu0 0
    %1243 = vmatprep.subr.bf16.mxu0 0
    %1244 = vmatpush2.bf16.msra.mxu0 0
    %1245 = vmatprep.subr.bf16.mxu0 0
    %1246 = vmatpush2.bf16.msra.mxu0 0
    %1247 = vmatprep.subr.bf16.mxu0 0
    %1248 = vmatpush2.bf16.msra.mxu0 0
    %1249 = vmatprep.subr.bf16.mxu0 0
    %1250 = vmatpush2.bf16.msra.mxu0 0
    %1251 = vmatprep.mubr.bf16.mxu0 0
    %1252 = vmatmul.mubr.bf16.gmra.mxu0 %v1214
    %v1253 = vpop.f32.mrf.mxu0
    %v1254 = vadd.f32 0.0, %v1253
    %v1255 = vpop.f32.mrf.mxu0
    %v1256 = vpop.f32.mrf.mxu0
    %v1257 = vpop.f32.mrf.mxu0
    %1258 = vdwg.mxu0
    %v1260 = vsel %vm839, %v935, 0
    %v1263 = vsel %vm939, %v469, 0
    %1265 = vmatprep.subr.bf16.mxu0 0
    %1266 = vmatpush1.bf16.msra.mxu0 0
    %1267 = vmatprep.subr.bf16.mxu0 0
    %1268 = vmatpush1.bf16.msra.mxu0 0
    %1269 = vmatprep.subr.bf16.mxu0 0
    %1270 = vmatpush1.bf16.msra.mxu0 0
    %1271 = vmatprep.subr.bf16.mxu0 0
    %1272 = vmatpush1.bf16.msra.mxu0 0
    %1273 = vmatprep.subr.bf16.mxu0 0
    %1274 = vmatpush1.bf16.msra.mxu0 0
    %1275 = vmatprep.subr.bf16.mxu0 0
    %1276 = vmatpush1.bf16.msra.mxu0 0
    %1277 = vmatprep.subr.bf16.mxu0 0
    %1278 = vmatpush1.bf16.msra.mxu0 0
    %1279 = vmatprep.subr.bf16.mxu0 0
    %1280 = vmatpush1.bf16.msra.mxu0 %v1263
    %1281 = vmatprep.subr.bf16.mxu0 0
    %1282 = vmatpush2.bf16.msra.mxu0 0
    %1283 = vmatprep.subr.bf16.mxu0 0
    %1284 = vmatpush2.bf16.msra.mxu0 0
    %1285 = vmatprep.subr.bf16.mxu0 0
    %1286 = vmatpush2.bf16.msra.mxu0 0
    %1287 = vmatprep.subr.bf16.mxu0 0
    %1288 = vmatpush2.bf16.msra.mxu0 0
    %1289 = vmatprep.subr.bf16.mxu0 0
    %1290 = vmatpush2.bf16.msra.mxu0 0
    %1291 = vmatprep.subr.bf16.mxu0 0
    %1292 = vmatpush2.bf16.msra.mxu0 0
    %1293 = vmatprep.subr.bf16.mxu0 0
    %1294 = vmatpush2.bf16.msra.mxu0 0
    %1295 = vmatprep.subr.bf16.mxu0 0
    %1296 = vmatpush2.bf16.msra.mxu0 0
    %1297 = vmatprep.mubr.bf16.mxu0 0
    %1298 = vmatmul.mubr.bf16.gmra.mxu0 %v1260
    %v1299 = vpop.f32.mrf.mxu0
    %v1300 = vadd.f32 0.0, %v1299
    %v1301 = vpop.f32.mrf.mxu0
    %v1302 = vpop.f32.mrf.mxu0
    %v1303 = vpop.f32.mrf.mxu0
    %1304 = vdwg.mxu0
    %v1305 = vpack.c.bf16 %v978, %v978
    %v1306 = vpack.c.bf16 %v1024, %v1024
    %v1307 = vpack.c.bf16 %v1070, %v1070
    %v1308 = vpack.c.bf16 %v1116, %v1116
    %v1309 = vpack.c.bf16 %v1162, %v1162
    %v1310 = vpack.c.bf16 %v1208, %v1208
    %v1311 = vpack.c.bf16 %v1254, %v1254
    %v1312 = vpack.c.bf16 %v1300, %v1300
    %vm1313 = vcmask 519168
    %1314 = vst.msk [vmem:[#allocation3] sm:$0xf] %vm1313, %v1305
    %1315 = vst.msk [vmem:[#allocation3 + $0x4] sm:$0xf] %vm1313, %v1306
    %1316 = vst.msk [vmem:[#allocation3 + $0x8] sm:$0xf] %vm1313, %v1307
    %1317 = vst.msk [vmem:[#allocation3 + $0xc] sm:$0xf] %vm1313, %v1308
    %1318 = vst.msk [vmem:[#allocation3 + $0x10] sm:$0xf] %vm1313, %v1309
    %1319 = vst.msk [vmem:[#allocation3 + $0x14] sm:$0xf] %vm1313, %v1310
    %1320 = vst.msk [vmem:[#allocation3 + $0x18] sm:$0xf] %vm1313, %v1311
    %1321 = vst.msk [vmem:[#allocation3 + $0x1c] sm:$0xf] %vm1313, %v1312
    %1323 = vrot.lane.b32.xlu0 %v446, 64
    %v1324 = vpop.permute.xlu0 %1323
    %1326 = vrot.lane.b32.xlu0 %v454, 64
    %v1327 = vpop.permute.xlu0 %1326
    %v1329 = vsel %vm470, %v1324, 0
    %v1332 = vsel %vm470, %v1327, 0
    %1334 = vmatprep.subr.bf16.mxu0 0
    %1335 = vmatpush1.bf16.xpose.msra.mxu0 0
    %1336 = vmatprep.subr.bf16.mxu0 0
    %1337 = vmatpush1.bf16.xpose.msra.mxu0 0
    %1338 = vmatprep.subr.bf16.mxu0 0
    %1339 = vmatpush1.bf16.xpose.msra.mxu0 0
    %1340 = vmatprep.subr.bf16.mxu0 0
    %1341 = vmatpush1.bf16.xpose.msra.mxu0 0
    %1342 = vmatprep.subr.bf16.mxu0 0
    %1343 = vmatpush1.bf16.xpose.msra.mxu0 0
    %1344 = vmatprep.subr.bf16.mxu0 0
    %1345 = vmatpush1.bf16.xpose.msra.mxu0 0
    %1346 = vmatprep.subr.bf16.mxu0 0
    %1347 = vmatpush1.bf16.xpose.msra.mxu0 0
    %1348 = vmatprep.subr.bf16.mxu0 0
    %1349 = vmatpush1.bf16.xpose.msra.mxu0 %v1332
    %1350 = vmatprep.subr.bf16.mxu0 0
    %1351 = vmatpush2.bf16.xpose.msra.mxu0 0
    %1352 = vmatprep.subr.bf16.mxu0 0
    %1353 = vmatpush2.bf16.xpose.msra.mxu0 0
    %1354 = vmatprep.subr.bf16.mxu0 0
    %1355 = vmatpush2.bf16.xpose.msra.mxu0 0
    %1356 = vmatprep.subr.bf16.mxu0 0
    %1357 = vmatpush2.bf16.xpose.msra.mxu0 0
    %1358 = vmatprep.subr.bf16.mxu0 0
    %1359 = vmatpush2.bf16.xpose.msra.mxu0 0
    %1360 = vmatprep.subr.bf16.mxu0 0
    %1361 = vmatpush2.bf16.xpose.msra.mxu0 0
    %1362 = vmatprep.subr.bf16.mxu0 0
    %1363 = vmatpush2.bf16.xpose.msra.mxu0 0
    %1364 = vmatprep.subr.bf16.mxu0 0
    %1365 = vmatpush2.bf16.xpose.msra.mxu0 0
    %1366 = vmatprep.mubr.bf16.mxu0 0
    %1367 = vmatmul.mubr.bf16.gmra.mxu0 %v1329
    %v1368 = vpop.f32.mrf.mxu0
    %v1369 = vadd.f32 0.0, %v1368
    %v1370 = vpop.f32.mrf.mxu0
    %v1371 = vpop.f32.mrf.mxu0
    %v1372 = vpop.f32.mrf.mxu0
    %1373 = vdwg.mxu0
    %1375 = vrot.lane.b32.xlu0 %v447, 64
    %v1376 = vpop.permute.xlu0 %1375
    %1378 = vrot.lane.b32.xlu0 %v455, 64
    %v1379 = vpop.permute.xlu0 %1378
    %v1381 = vsel %vm470, %v1376, 0
    %v1384 = vsel %vm470, %v1379, 0
    %1386 = vmatprep.subr.bf16.mxu0 0
    %1387 = vmatpush1.bf16.xpose.msra.mxu0 0
    %1388 = vmatprep.subr.bf16.mxu0 0
    %1389 = vmatpush1.bf16.xpose.msra.mxu0 0
    %1390 = vmatprep.subr.bf16.mxu0 0
    %1391 = vmatpush1.bf16.xpose.msra.mxu0 0
    %1392 = vmatprep.subr.bf16.mxu0 0
    %1393 = vmatpush1.bf16.xpose.msra.mxu0 0
    %1394 = vmatprep.subr.bf16.mxu0 0
    %1395 = vmatpush1.bf16.xpose.msra.mxu0 0
    %1396 = vmatprep.subr.bf16.mxu0 0
    %1397 = vmatpush1.bf16.xpose.msra.mxu0 0
    %1398 = vmatprep.subr.bf16.mxu0 0
    %1399 = vmatpush1.bf16.xpose.msra.mxu0 0
    %1400 = vmatprep.subr.bf16.mxu0 0
    %1401 = vmatpush1.bf16.xpose.msra.mxu0 %v1384
    %1402 = vmatprep.subr.bf16.mxu0 0
    %1403 = vmatpush2.bf16.xpose.msra.mxu0 0
    %1404 = vmatprep.subr.bf16.mxu0 0
    %1405 = vmatpush2.bf16.xpose.msra.mxu0 0
    %1406 = vmatprep.subr.bf16.mxu0 0
    %1407 = vmatpush2.bf16.xpose.msra.mxu0 0
    %1408 = vmatprep.subr.bf16.mxu0 0
    %1409 = vmatpush2.bf16.xpose.msra.mxu0 0
    %1410 = vmatprep.subr.bf16.mxu0 0
    %1411 = vmatpush2.bf16.xpose.msra.mxu0 0
    %1412 = vmatprep.subr.bf16.mxu0 0
    %1413 = vmatpush2.bf16.xpose.msra.mxu0 0
    %1414 = vmatprep.subr.bf16.mxu0 0
    %1415 = vmatpush2.bf16.xpose.msra.mxu0 0
    %1416 = vmatprep.subr.bf16.mxu0 0
    %1417 = vmatpush2.bf16.xpose.msra.mxu0 0
    %1418 = vmatprep.mubr.bf16.mxu0 0
    %1419 = vmatmul.mubr.bf16.gmra.mxu0 %v1381
    %v1420 = vpop.f32.mrf.mxu0
    %v1421 = vadd.f32 0.0, %v1420
    %v1422 = vpop.f32.mrf.mxu0
    %v1423 = vpop.f32.mrf.mxu0
    %v1424 = vpop.f32.mrf.mxu0
    %1425 = vdwg.mxu0
    %1427 = vrot.lane.b32.xlu0 %v448, 64
    %v1428 = vpop.permute.xlu0 %1427
    %1430 = vrot.lane.b32.xlu0 %v456, 64
    %v1431 = vpop.permute.xlu0 %1430
    %v1433 = vsel %vm470, %v1428, 0
    %v1436 = vsel %vm470, %v1431, 0
    %1438 = vmatprep.subr.bf16.mxu0 0
    %1439 = vmatpush1.bf16.xpose.msra.mxu0 0
    %1440 = vmatprep.subr.bf16.mxu0 0
    %1441 = vmatpush1.bf16.xpose.msra.mxu0 0
    %1442 = vmatprep.subr.bf16.mxu0 0
    %1443 = vmatpush1.bf16.xpose.msra.mxu0 0
    %1444 = vmatprep.subr.bf16.mxu0 0
    %1445 = vmatpush1.bf16.xpose.msra.mxu0 0
    %1446 = vmatprep.subr.bf16.mxu0 0
    %1447 = vmatpush1.bf16.xpose.msra.mxu0 0
    %1448 = vmatprep.subr.bf16.mxu0 0
    %1449 = vmatpush1.bf16.xpose.msra.mxu0 0
    %1450 = vmatprep.subr.bf16.mxu0 0
    %1451 = vmatpush1.bf16.xpose.msra.mxu0 0
    %1452 = vmatprep.subr.bf16.mxu0 0
    %1453 = vmatpush1.bf16.xpose.msra.mxu0 %v1436
    %1454 = vmatprep.subr.bf16.mxu0 0
    %1455 = vmatpush2.bf16.xpose.msra.mxu0 0
    %1456 = vmatprep.subr.bf16.mxu0 0
    %1457 = vmatpush2.bf16.xpose.msra.mxu0 0
    %1458 = vmatprep.subr.bf16.mxu0 0
    %1459 = vmatpush2.bf16.xpose.msra.mxu0 0
    %1460 = vmatprep.subr.bf16.mxu0 0
    %1461 = vmatpush2.bf16.xpose.msra.mxu0 0
    %1462 = vmatprep.subr.bf16.mxu0 0
    %1463 = vmatpush2.bf16.xpose.msra.mxu0 0
    %1464 = vmatprep.subr.bf16.mxu0 0
    %1465 = vmatpush2.bf16.xpose.msra.mxu0 0
    %1466 = vmatprep.subr.bf16.mxu0 0
    %1467 = vmatpush2.bf16.xpose.msra.mxu0 0
    %1468 = vmatprep.subr.bf16.mxu0 0
    %1469 = vmatpush2.bf16.xpose.msra.mxu0 0
    %1470 = vmatprep.mubr.bf16.mxu0 0
    %1471 = vmatmul.mubr.bf16.gmra.mxu0 %v1433
    %v1472 = vpop.f32.mrf.mxu0
    %v1473 = vadd.f32 0.0, %v1472
    %v1474 = vpop.f32.mrf.mxu0
    %v1475 = vpop.f32.mrf.mxu0
    %v1476 = vpop.f32.mrf.mxu0
    %1477 = vdwg.mxu0
    %1479 = vrot.lane.b32.xlu0 %v449, 64
    %v1480 = vpop.permute.xlu0 %1479
    %1482 = vrot.lane.b32.xlu0 %v457, 64
    %v1483 = vpop.permute.xlu0 %1482
    %v1485 = vsel %vm470, %v1480, 0
    %v1488 = vsel %vm470, %v1483, 0
    %1490 = vmatprep.subr.bf16.mxu0 0
    %1491 = vmatpush1.bf16.xpose.msra.mxu0 0
    %1492 = vmatprep.subr.bf16.mxu0 0
    %1493 = vmatpush1.bf16.xpose.msra.mxu0 0
    %1494 = vmatprep.subr.bf16.mxu0 0
    %1495 = vmatpush1.bf16.xpose.msra.mxu0 0
    %1496 = vmatprep.subr.bf16.mxu0 0
    %1497 = vmatpush1.bf16.xpose.msra.mxu0 0
    %1498 = vmatprep.subr.bf16.mxu0 0
    %1499 = vmatpush1.bf16.xpose.msra.mxu0 0
    %1500 = vmatprep.subr.bf16.mxu0 0
    %1501 = vmatpush1.bf16.xpose.msra.mxu0 0
    %1502 = vmatprep.subr.bf16.mxu0 0
    %1503 = vmatpush1.bf16.xpose.msra.mxu0 0
    %1504 = vmatprep.subr.bf16.mxu0 0
    %1505 = vmatpush1.bf16.xpose.msra.mxu0 %v1488
    %1506 = vmatprep.subr.bf16.mxu0 0
    %1507 = vmatpush2.bf16.xpose.msra.mxu0 0
    %1508 = vmatprep.subr.bf16.mxu0 0
    %1509 = vmatpush2.bf16.xpose.msra.mxu0 0
    %1510 = vmatprep.subr.bf16.mxu0 0
    %1511 = vmatpush2.bf16.xpose.msra.mxu0 0
    %1512 = vmatprep.subr.bf16.mxu0 0
    %1513 = vmatpush2.bf16.xpose.msra.mxu0 0
    %1514 = vmatprep.subr.bf16.mxu0 0
    %1515 = vmatpush2.bf16.xpose.msra.mxu0 0
    %1516 = vmatprep.subr.bf16.mxu0 0
    %1517 = vmatpush2.bf16.xpose.msra.mxu0 0
    %1518 = vmatprep.subr.bf16.mxu0 0
    %1519 = vmatpush2.bf16.xpose.msra.mxu0 0
    %1520 = vmatprep.subr.bf16.mxu0 0
    %1521 = vmatpush2.bf16.xpose.msra.mxu0 0
    %1522 = vmatprep.mubr.bf16.mxu0 0
    %1523 = vmatmul.mubr.bf16.gmra.mxu0 %v1485
    %v1524 = vpop.f32.mrf.mxu0
    %v1525 = vadd.f32 0.0, %v1524
    %v1526 = vpop.f32.mrf.mxu0
    %v1527 = vpop.f32.mrf.mxu0
    %v1528 = vpop.f32.mrf.mxu0
    %1529 = vdwg.mxu0
    %1531 = vrot.lane.b32.xlu0 %v450, 64
    %v1532 = vpop.permute.xlu0 %1531
    %1534 = vrot.lane.b32.xlu0 %v458, 64
    %v1535 = vpop.permute.xlu0 %1534
    %v1537 = vsel %vm470, %v1532, 0
    %v1540 = vsel %vm470, %v1535, 0
    %1542 = vmatprep.subr.bf16.mxu0 0
    %1543 = vmatpush1.bf16.xpose.msra.mxu0 0
    %1544 = vmatprep.subr.bf16.mxu0 0
    %1545 = vmatpush1.bf16.xpose.msra.mxu0 0
    %1546 = vmatprep.subr.bf16.mxu0 0
    %1547 = vmatpush1.bf16.xpose.msra.mxu0 0
    %1548 = vmatprep.subr.bf16.mxu0 0
    %1549 = vmatpush1.bf16.xpose.msra.mxu0 0
    %1550 = vmatprep.subr.bf16.mxu0 0
    %1551 = vmatpush1.bf16.xpose.msra.mxu0 0
    %1552 = vmatprep.subr.bf16.mxu0 0
    %1553 = vmatpush1.bf16.xpose.msra.mxu0 0
    %1554 = vmatprep.subr.bf16.mxu0 0
    %1555 = vmatpush1.bf16.xpose.msra.mxu0 0
    %1556 = vmatprep.subr.bf16.mxu0 0
    %1557 = vmatpush1.bf16.xpose.msra.mxu0 %v1540
    %1558 = vmatprep.subr.bf16.mxu0 0
    %1559 = vmatpush2.bf16.xpose.msra.mxu0 0
    %1560 = vmatprep.subr.bf16.mxu0 0
    %1561 = vmatpush2.bf16.xpose.msra.mxu0 0
    %1562 = vmatprep.subr.bf16.mxu0 0
    %1563 = vmatpush2.bf16.xpose.msra.mxu0 0
    %1564 = vmatprep.subr.bf16.mxu0 0
    %1565 = vmatpush2.bf16.xpose.msra.mxu0 0
    %1566 = vmatprep.subr.bf16.mxu0 0
    %1567 = vmatpush2.bf16.xpose.msra.mxu0 0
    %1568 = vmatprep.subr.bf16.mxu0 0
    %1569 = vmatpush2.bf16.xpose.msra.mxu0 0
    %1570 = vmatprep.subr.bf16.mxu0 0
    %1571 = vmatpush2.bf16.xpose.msra.mxu0 0
    %1572 = vmatprep.subr.bf16.mxu0 0
    %1573 = vmatpush2.bf16.xpose.msra.mxu0 0
    %1574 = vmatprep.mubr.bf16.mxu0 0
    %1575 = vmatmul.mubr.bf16.gmra.mxu0 %v1537
    %v1576 = vpop.f32.mrf.mxu0
    %v1577 = vadd.f32 0.0, %v1576
    %v1578 = vpop.f32.mrf.mxu0
    %v1579 = vpop.f32.mrf.mxu0
    %v1580 = vpop.f32.mrf.mxu0
    %1581 = vdwg.mxu0
    %1583 = vrot.lane.b32.xlu0 %v451, 64
    %v1584 = vpop.permute.xlu0 %1583
    %1586 = vrot.lane.b32.xlu0 %v459, 64
    %v1587 = vpop.permute.xlu0 %1586
    %v1589 = vsel %vm470, %v1584, 0
    %v1592 = vsel %vm470, %v1587, 0
    %1594 = vmatprep.subr.bf16.mxu0 0
    %1595 = vmatpush1.bf16.xpose.msra.mxu0 0
    %1596 = vmatprep.subr.bf16.mxu0 0
    %1597 = vmatpush1.bf16.xpose.msra.mxu0 0
    %1598 = vmatprep.subr.bf16.mxu0 0
    %1599 = vmatpush1.bf16.xpose.msra.mxu0 0
    %1600 = vmatprep.subr.bf16.mxu0 0
    %1601 = vmatpush1.bf16.xpose.msra.mxu0 0
    %1602 = vmatprep.subr.bf16.mxu0 0
    %1603 = vmatpush1.bf16.xpose.msra.mxu0 0
    %1604 = vmatprep.subr.bf16.mxu0 0
    %1605 = vmatpush1.bf16.xpose.msra.mxu0 0
    %1606 = vmatprep.subr.bf16.mxu0 0
    %1607 = vmatpush1.bf16.xpose.msra.mxu0 0
    %1608 = vmatprep.subr.bf16.mxu0 0
    %1609 = vmatpush1.bf16.xpose.msra.mxu0 %v1592
    %1610 = vmatprep.subr.bf16.mxu0 0
    %1611 = vmatpush2.bf16.xpose.msra.mxu0 0
    %1612 = vmatprep.subr.bf16.mxu0 0
    %1613 = vmatpush2.bf16.xpose.msra.mxu0 0
    %1614 = vmatprep.subr.bf16.mxu0 0
    %1615 = vmatpush2.bf16.xpose.msra.mxu0 0
    %1616 = vmatprep.subr.bf16.mxu0 0
    %1617 = vmatpush2.bf16.xpose.msra.mxu0 0
    %1618 = vmatprep.subr.bf16.mxu0 0
    %1619 = vmatpush2.bf16.xpose.msra.mxu0 0
    %1620 = vmatprep.subr.bf16.mxu0 0
    %1621 = vmatpush2.bf16.xpose.msra.mxu0 0
    %1622 = vmatprep.subr.bf16.mxu0 0
    %1623 = vmatpush2.bf16.xpose.msra.mxu0 0
    %1624 = vmatprep.subr.bf16.mxu0 0
    %1625 = vmatpush2.bf16.xpose.msra.mxu0 0
    %1626 = vmatprep.mubr.bf16.mxu0 0
    %1627 = vmatmul.mubr.bf16.gmra.mxu0 %v1589
    %v1628 = vpop.f32.mrf.mxu0
    %v1629 = vadd.f32 0.0, %v1628
    %v1630 = vpop.f32.mrf.mxu0
    %v1631 = vpop.f32.mrf.mxu0
    %v1632 = vpop.f32.mrf.mxu0
    %1633 = vdwg.mxu0
    %1635 = vrot.lane.b32.xlu0 %v452, 64
    %v1636 = vpop.permute.xlu0 %1635
    %1638 = vrot.lane.b32.xlu0 %v460, 64
    %v1639 = vpop.permute.xlu0 %1638
    %v1641 = vsel %vm470, %v1636, 0
    %v1644 = vsel %vm470, %v1639, 0
    %1646 = vmatprep.subr.bf16.mxu0 0
    %1647 = vmatpush1.bf16.xpose.msra.mxu0 0
    %1648 = vmatprep.subr.bf16.mxu0 0
    %1649 = vmatpush1.bf16.xpose.msra.mxu0 0
    %1650 = vmatprep.subr.bf16.mxu0 0
    %1651 = vmatpush1.bf16.xpose.msra.mxu0 0
    %1652 = vmatprep.subr.bf16.mxu0 0
    %1653 = vmatpush1.bf16.xpose.msra.mxu0 0
    %1654 = vmatprep.subr.bf16.mxu0 0
    %1655 = vmatpush1.bf16.xpose.msra.mxu0 0
    %1656 = vmatprep.subr.bf16.mxu0 0
    %1657 = vmatpush1.bf16.xpose.msra.mxu0 0
    %1658 = vmatprep.subr.bf16.mxu0 0
    %1659 = vmatpush1.bf16.xpose.msra.mxu0 0
    %1660 = vmatprep.subr.bf16.mxu0 0
    %1661 = vmatpush1.bf16.xpose.msra.mxu0 %v1644
    %1662 = vmatprep.subr.bf16.mxu0 0
    %1663 = vmatpush2.bf16.xpose.msra.mxu0 0
    %1664 = vmatprep.subr.bf16.mxu0 0
    %1665 = vmatpush2.bf16.xpose.msra.mxu0 0
    %1666 = vmatprep.subr.bf16.mxu0 0
    %1667 = vmatpush2.bf16.xpose.msra.mxu0 0
    %1668 = vmatprep.subr.bf16.mxu0 0
    %1669 = vmatpush2.bf16.xpose.msra.mxu0 0
    %1670 = vmatprep.subr.bf16.mxu0 0
    %1671 = vmatpush2.bf16.xpose.msra.mxu0 0
    %1672 = vmatprep.subr.bf16.mxu0 0
    %1673 = vmatpush2.bf16.xpose.msra.mxu0 0
    %1674 = vmatprep.subr.bf16.mxu0 0
    %1675 = vmatpush2.bf16.xpose.msra.mxu0 0
    %1676 = vmatprep.subr.bf16.mxu0 0
    %1677 = vmatpush2.bf16.xpose.msra.mxu0 0
    %1678 = vmatprep.mubr.bf16.mxu0 0
    %1679 = vmatmul.mubr.bf16.gmra.mxu0 %v1641
    %v1680 = vpop.f32.mrf.mxu0
    %v1681 = vadd.f32 0.0, %v1680
    %v1682 = vpop.f32.mrf.mxu0
    %v1683 = vpop.f32.mrf.mxu0
    %v1684 = vpop.f32.mrf.mxu0
    %1685 = vdwg.mxu0
    %1687 = vrot.lane.b32.xlu0 %v453, 64
    %v1688 = vpop.permute.xlu0 %1687
    %1690 = vrot.lane.b32.xlu0 %v461, 64
    %v1691 = vpop.permute.xlu0 %1690
    %v1693 = vsel %vm470, %v1688, 0
    %v1696 = vsel %vm470, %v1691, 0
    %1698 = vmatprep.subr.bf16.mxu0 0
    %1699 = vmatpush1.bf16.xpose.msra.mxu0 0
    %1700 = vmatprep.subr.bf16.mxu0 0
    %1701 = vmatpush1.bf16.xpose.msra.mxu0 0
    %1702 = vmatprep.subr.bf16.mxu0 0
    %1703 = vmatpush1.bf16.xpose.msra.mxu0 0
    %1704 = vmatprep.subr.bf16.mxu0 0
    %1705 = vmatpush1.bf16.xpose.msra.mxu0 0
    %1706 = vmatprep.subr.bf16.mxu0 0
    %1707 = vmatpush1.bf16.xpose.msra.mxu0 0
    %1708 = vmatprep.subr.bf16.mxu0 0
    %1709 = vmatpush1.bf16.xpose.msra.mxu0 0
    %1710 = vmatprep.subr.bf16.mxu0 0
    %1711 = vmatpush1.bf16.xpose.msra.mxu0 0
    %1712 = vmatprep.subr.bf16.mxu0 0
    %1713 = vmatpush1.bf16.xpose.msra.mxu0 %v1696
    %1714 = vmatprep.subr.bf16.mxu0 0
    %1715 = vmatpush2.bf16.xpose.msra.mxu0 0
    %1716 = vmatprep.subr.bf16.mxu0 0
    %1717 = vmatpush2.bf16.xpose.msra.mxu0 0
    %1718 = vmatprep.subr.bf16.mxu0 0
    %1719 = vmatpush2.bf16.xpose.msra.mxu0 0
    %1720 = vmatprep.subr.bf16.mxu0 0
    %1721 = vmatpush2.bf16.xpose.msra.mxu0 0
    %1722 = vmatprep.subr.bf16.mxu0 0
    %1723 = vmatpush2.bf16.xpose.msra.mxu0 0
    %1724 = vmatprep.subr.bf16.mxu0 0
    %1725 = vmatpush2.bf16.xpose.msra.mxu0 0
    %1726 = vmatprep.subr.bf16.mxu0 0
    %1727 = vmatpush2.bf16.xpose.msra.mxu0 0
    %1728 = vmatprep.subr.bf16.mxu0 0
    %1729 = vmatpush2.bf16.xpose.msra.mxu0 0
    %1730 = vmatprep.mubr.bf16.mxu0 0
    %1731 = vmatmul.mubr.bf16.gmra.mxu0 %v1693
    %v1732 = vpop.f32.mrf.mxu0
    %v1733 = vadd.f32 0.0, %v1732
    %v1734 = vpop.f32.mrf.mxu0
    %v1735 = vpop.f32.mrf.mxu0
    %v1736 = vpop.f32.mrf.mxu0
    %1737 = vdwg.mxu0
    %v1738 = vsel %vm839, %v1369, -inf
    %1739 = vmax.xlane.f32.xlu0 %v1738
    %v1740 = vpop.xlane.xlu0 %1739
    %v1741 = vsel %vm839, %v1421, -inf
    %1742 = vmax.xlane.f32.xlu0 %v1741
    %v1743 = vpop.xlane.xlu0 %1742
    %v1744 = vsel %vm839, %v1473, -inf
    %1745 = vmax.xlane.f32.xlu0 %v1744
    %v1746 = vpop.xlane.xlu0 %1745
    %v1747 = vsel %vm839, %v1525, -inf
    %1748 = vmax.xlane.f32.xlu0 %v1747
    %v1749 = vpop.xlane.xlu0 %1748
    %v1750 = vsel %vm839, %v1577, -inf
    %1751 = vmax.xlane.f32.xlu0 %v1750
    %v1752 = vpop.xlane.xlu0 %1751
    %v1753 = vsel %vm839, %v1629, -inf
    %1754 = vmax.xlane.f32.xlu0 %v1753
    %v1755 = vpop.xlane.xlu0 %1754
    %v1756 = vsel %vm839, %v1681, -inf
    %1757 = vmax.xlane.f32.xlu0 %v1756
    %v1758 = vpop.xlane.xlu0 %1757
    %v1759 = vsel %vm839, %v1733, -inf
    %1760 = vmax.xlane.f32.xlu0 %v1759
    %v1761 = vpop.xlane.xlu0 %1760
    %v1762 = vsub.f32 %v1369, %v1740
    %v1763 = vsub.f32 %v1421, %v1743
    %v1764 = vsub.f32 %v1473, %v1746
    %v1765 = vsub.f32 %v1525, %v1749
    %v1766 = vsub.f32 %v1577, %v1752
    %v1767 = vsub.f32 %v1629, %v1755
    %v1768 = vsub.f32 %v1681, %v1758
    %v1769 = vsub.f32 %v1733, %v1761
    %v1770 = vmul.f32 %v1762, 1.442695
    %v1771 = vpow.pop %v1770
    %v1772 = vmul.f32 %v1763, 1.442695
    %v1773 = vpow.pop %v1772
    %v1774 = vmul.f32 %v1764, 1.442695
    %v1775 = vpow.pop %v1774
    %v1776 = vmul.f32 %v1765, 1.442695
    %v1777 = vpow.pop %v1776
    %v1778 = vmul.f32 %v1766, 1.442695
    %v1779 = vpow.pop %v1778
    %v1780 = vmul.f32 %v1767, 1.442695
    %v1781 = vpow.pop %v1780
    %v1782 = vmul.f32 %v1768, 1.442695
    %v1783 = vpow.pop %v1782
    %v1784 = vmul.f32 %v1769, 1.442695
    %v1785 = vpow.pop %v1784
    %v1786 = vsel %vm839, %v1771, 0.0
    %1787 = vadd.xlane.f32.xlu0 %v1786
    %v1788 = vpop.xlane.xlu0 %1787
    %v1789 = vsel %vm839, %v1773, 0.0
    %1790 = vadd.xlane.f32.xlu0 %v1789
    %v1791 = vpop.xlane.xlu0 %1790
    %v1792 = vsel %vm839, %v1775, 0.0
    %1793 = vadd.xlane.f32.xlu0 %v1792
    %v1794 = vpop.xlane.xlu0 %1793
    %v1795 = vsel %vm839, %v1777, 0.0
    %1796 = vadd.xlane.f32.xlu0 %v1795
    %v1797 = vpop.xlane.xlu0 %1796
    %v1798 = vsel %vm839, %v1779, 0.0
    %1799 = vadd.xlane.f32.xlu0 %v1798
    %v1800 = vpop.xlane.xlu0 %1799
    %v1801 = vsel %vm839, %v1781, 0.0
    %1802 = vadd.xlane.f32.xlu0 %v1801
    %v1803 = vpop.xlane.xlu0 %1802
    %v1804 = vsel %vm839, %v1783, 0.0
    %1805 = vadd.xlane.f32.xlu0 %v1804
    %v1806 = vpop.xlane.xlu0 %1805
    %v1807 = vsel %vm839, %v1785, 0.0
    %1808 = vadd.xlane.f32.xlu0 %v1807
    %v1809 = vpop.xlane.xlu0 %1808
    %v1810 = vrcp.pop %v1788
    %v1811 = vrcp.pop %v1791
    %v1812 = vrcp.pop %v1794
    %v1813 = vrcp.pop %v1797
    %v1814 = vrcp.pop %v1800
    %v1815 = vrcp.pop %v1803
    %v1816 = vrcp.pop %v1806
    %v1817 = vrcp.pop %v1809
    %v1818 = vmul.f32 %v1771, %v1810
    %v1819 = vmul.f32 %v1773, %v1811
    %v1820 = vmul.f32 %v1775, %v1812
    %v1821 = vmul.f32 %v1777, %v1813
    %v1822 = vmul.f32 %v1779, %v1814
    %v1823 = vmul.f32 %v1781, %v1815
    %v1824 = vmul.f32 %v1783, %v1816
    %v1825 = vmul.f32 %v1785, %v1817
    %v1826 = vpack.c.bf16 %v1818, %v1818
    %v1827 = vpack.c.bf16 %v1819, %v1819
    %v1828 = vpack.c.bf16 %v1820, %v1820
    %v1829 = vpack.c.bf16 %v1821, %v1821
    %v1830 = vpack.c.bf16 %v1822, %v1822
    %v1831 = vpack.c.bf16 %v1823, %v1823
    %v1832 = vpack.c.bf16 %v1824, %v1824
    %v1833 = vpack.c.bf16 %v1825, %v1825
    %1835 = vrot.lane.b32.xlu0 %v462, 64
    %v1836 = vpop.permute.xlu0 %1835
    %v1838 = vsel %vm839, %v1826, 0
    %v1841 = vsel %vm939, %v1836, 0
    %1843 = vmatprep.subr.bf16.mxu0 0
    %1844 = vmatpush1.bf16.msra.mxu0 0
    %1845 = vmatprep.subr.bf16.mxu0 0
    %1846 = vmatpush1.bf16.msra.mxu0 0
    %1847 = vmatprep.subr.bf16.mxu0 0
    %1848 = vmatpush1.bf16.msra.mxu0 0
    %1849 = vmatprep.subr.bf16.mxu0 0
    %1850 = vmatpush1.bf16.msra.mxu0 0
    %1851 = vmatprep.subr.bf16.mxu0 0
    %1852 = vmatpush1.bf16.msra.mxu0 0
    %1853 = vmatprep.subr.bf16.mxu0 0
    %1854 = vmatpush1.bf16.msra.mxu0 0
    %1855 = vmatprep.subr.bf16.mxu0 0
    %1856 = vmatpush1.bf16.msra.mxu0 0
    %1857 = vmatprep.subr.bf16.mxu0 0
    %1858 = vmatpush1.bf16.msra.mxu0 %v1841
    %1859 = vmatprep.subr.bf16.mxu0 0
    %1860 = vmatpush2.bf16.msra.mxu0 0
    %1861 = vmatprep.subr.bf16.mxu0 0
    %1862 = vmatpush2.bf16.msra.mxu0 0
    %1863 = vmatprep.subr.bf16.mxu0 0
    %1864 = vmatpush2.bf16.msra.mxu0 0
    %1865 = vmatprep.subr.bf16.mxu0 0
    %1866 = vmatpush2.bf16.msra.mxu0 0
    %1867 = vmatprep.subr.bf16.mxu0 0
    %1868 = vmatpush2.bf16.msra.mxu0 0
    %1869 = vmatprep.subr.bf16.mxu0 0
    %1870 = vmatpush2.bf16.msra.mxu0 0
    %1871 = vmatprep.subr.bf16.mxu0 0
    %1872 = vmatpush2.bf16.msra.mxu0 0
    %1873 = vmatprep.subr.bf16.mxu0 0
    %1874 = vmatpush2.bf16.msra.mxu0 0
    %1875 = vmatprep.mubr.bf16.mxu0 0
    %1876 = vmatmul.mubr.bf16.gmra.mxu0 %v1838
    %v1877 = vpop.f32.mrf.mxu0
    %v1878 = vadd.f32 0.0, %v1877
    %v1879 = vpop.f32.mrf.mxu0
    %v1880 = vpop.f32.mrf.mxu0
    %v1881 = vpop.f32.mrf.mxu0
    %1882 = vdwg.mxu0
    %1884 = vrot.lane.b32.xlu0 %v463, 64
    %v1885 = vpop.permute.xlu0 %1884
    %v1887 = vsel %vm839, %v1827, 0
    %v1890 = vsel %vm939, %v1885, 0
    %1892 = vmatprep.subr.bf16.mxu0 0
    %1893 = vmatpush1.bf16.msra.mxu0 0
    %1894 = vmatprep.subr.bf16.mxu0 0
    %1895 = vmatpush1.bf16.msra.mxu0 0
    %1896 = vmatprep.subr.bf16.mxu0 0
    %1897 = vmatpush1.bf16.msra.mxu0 0
    %1898 = vmatprep.subr.bf16.mxu0 0
    %1899 = vmatpush1.bf16.msra.mxu0 0
    %1900 = vmatprep.subr.bf16.mxu0 0
    %1901 = vmatpush1.bf16.msra.mxu0 0
    %1902 = vmatprep.subr.bf16.mxu0 0
    %1903 = vmatpush1.bf16.msra.mxu0 0
    %1904 = vmatprep.subr.bf16.mxu0 0
    %1905 = vmatpush1.bf16.msra.mxu0 0
    %1906 = vmatprep.subr.bf16.mxu0 0
    %1907 = vmatpush1.bf16.msra.mxu0 %v1890
    %1908 = vmatprep.subr.bf16.mxu0 0
    %1909 = vmatpush2.bf16.msra.mxu0 0
    %1910 = vmatprep.subr.bf16.mxu0 0
    %1911 = vmatpush2.bf16.msra.mxu0 0
    %1912 = vmatprep.subr.bf16.mxu0 0
    %1913 = vmatpush2.bf16.msra.mxu0 0
    %1914 = vmatprep.subr.bf16.mxu0 0
    %1915 = vmatpush2.bf16.msra.mxu0 0
    %1916 = vmatprep.subr.bf16.mxu0 0
    %1917 = vmatpush2.bf16.msra.mxu0 0
    %1918 = vmatprep.subr.bf16.mxu0 0
    %1919 = vmatpush2.bf16.msra.mxu0 0
    %1920 = vmatprep.subr.bf16.mxu0 0
    %1921 = vmatpush2.bf16.msra.mxu0 0
    %1922 = vmatprep.subr.bf16.mxu0 0
    %1923 = vmatpush2.bf16.msra.mxu0 0
    %1924 = vmatprep.mubr.bf16.mxu0 0
    %1925 = vmatmul.mubr.bf16.gmra.mxu0 %v1887
    %v1926 = vpop.f32.mrf.mxu0
    %v1927 = vadd.f32 0.0, %v1926
    %v1928 = vpop.f32.mrf.mxu0
    %v1929 = vpop.f32.mrf.mxu0
    %v1930 = vpop.f32.mrf.mxu0
    %1931 = vdwg.mxu0
    %1933 = vrot.lane.b32.xlu0 %v464, 64
    %v1934 = vpop.permute.xlu0 %1933
    %v1936 = vsel %vm839, %v1828, 0
    %v1939 = vsel %vm939, %v1934, 0
    %1941 = vmatprep.subr.bf16.mxu0 0
    %1942 = vmatpush1.bf16.msra.mxu0 0
    %1943 = vmatprep.subr.bf16.mxu0 0
    %1944 = vmatpush1.bf16.msra.mxu0 0
    %1945 = vmatprep.subr.bf16.mxu0 0
    %1946 = vmatpush1.bf16.msra.mxu0 0
    %1947 = vmatprep.subr.bf16.mxu0 0
    %1948 = vmatpush1.bf16.msra.mxu0 0
    %1949 = vmatprep.subr.bf16.mxu0 0
    %1950 = vmatpush1.bf16.msra.mxu0 0
    %1951 = vmatprep.subr.bf16.mxu0 0
    %1952 = vmatpush1.bf16.msra.mxu0 0
    %1953 = vmatprep.subr.bf16.mxu0 0
    %1954 = vmatpush1.bf16.msra.mxu0 0
    %1955 = vmatprep.subr.bf16.mxu0 0
    %1956 = vmatpush1.bf16.msra.mxu0 %v1939
    %1957 = vmatprep.subr.bf16.mxu0 0
    %1958 = vmatpush2.bf16.msra.mxu0 0
    %1959 = vmatprep.subr.bf16.mxu0 0
    %1960 = vmatpush2.bf16.msra.mxu0 0
    %1961 = vmatprep.subr.bf16.mxu0 0
    %1962 = vmatpush2.bf16.msra.mxu0 0
    %1963 = vmatprep.subr.bf16.mxu0 0
    %1964 = vmatpush2.bf16.msra.mxu0 0
    %1965 = vmatprep.subr.bf16.mxu0 0
    %1966 = vmatpush2.bf16.msra.mxu0 0
    %1967 = vmatprep.subr.bf16.mxu0 0
    %1968 = vmatpush2.bf16.msra.mxu0 0
    %1969 = vmatprep.subr.bf16.mxu0 0
    %1970 = vmatpush2.bf16.msra.mxu0 0
    %1971 = vmatprep.subr.bf16.mxu0 0
    %1972 = vmatpush2.bf16.msra.mxu0 0
    %1973 = vmatprep.mubr.bf16.mxu0 0
    %1974 = vmatmul.mubr.bf16.gmra.mxu0 %v1936
    %v1975 = vpop.f32.mrf.mxu0
    %v1976 = vadd.f32 0.0, %v1975
    %v1977 = vpop.f32.mrf.mxu0
    %v1978 = vpop.f32.mrf.mxu0
    %v1979 = vpop.f32.mrf.mxu0
    %1980 = vdwg.mxu0
    %1982 = vrot.lane.b32.xlu0 %v465, 64
    %v1983 = vpop.permute.xlu0 %1982
    %v1985 = vsel %vm839, %v1829, 0
    %v1988 = vsel %vm939, %v1983, 0
    %1990 = vmatprep.subr.bf16.mxu0 0
    %1991 = vmatpush1.bf16.msra.mxu0 0
    %1992 = vmatprep.subr.bf16.mxu0 0
    %1993 = vmatpush1.bf16.msra.mxu0 0
    %1994 = vmatprep.subr.bf16.mxu0 0
    %1995 = vmatpush1.bf16.msra.mxu0 0
    %1996 = vmatprep.subr.bf16.mxu0 0
    %1997 = vmatpush1.bf16.msra.mxu0 0
    %1998 = vmatprep.subr.bf16.mxu0 0
    %1999 = vmatpush1.bf16.msra.mxu0 0
    %2000 = vmatprep.subr.bf16.mxu0 0
    %2001 = vmatpush1.bf16.msra.mxu0 0
    %2002 = vmatprep.subr.bf16.mxu0 0
    %2003 = vmatpush1.bf16.msra.mxu0 0
    %2004 = vmatprep.subr.bf16.mxu0 0
    %2005 = vmatpush1.bf16.msra.mxu0 %v1988
    %2006 = vmatprep.subr.bf16.mxu0 0
    %2007 = vmatpush2.bf16.msra.mxu0 0
    %2008 = vmatprep.subr.bf16.mxu0 0
    %2009 = vmatpush2.bf16.msra.mxu0 0
    %2010 = vmatprep.subr.bf16.mxu0 0
    %2011 = vmatpush2.bf16.msra.mxu0 0
    %2012 = vmatprep.subr.bf16.mxu0 0
    %2013 = vmatpush2.bf16.msra.mxu0 0
    %2014 = vmatprep.subr.bf16.mxu0 0
    %2015 = vmatpush2.bf16.msra.mxu0 0
    %2016 = vmatprep.subr.bf16.mxu0 0
    %2017 = vmatpush2.bf16.msra.mxu0 0
    %2018 = vmatprep.subr.bf16.mxu0 0
    %2019 = vmatpush2.bf16.msra.mxu0 0
    %2020 = vmatprep.subr.bf16.mxu0 0
    %2021 = vmatpush2.bf16.msra.mxu0 0
    %2022 = vmatprep.mubr.bf16.mxu0 0
    %2023 = vmatmul.mubr.bf16.gmra.mxu0 %v1985
    %v2024 = vpop.f32.mrf.mxu0
    %v2025 = vadd.f32 0.0, %v2024
    %v2026 = vpop.f32.mrf.mxu0
    %v2027 = vpop.f32.mrf.mxu0
    %v2028 = vpop.f32.mrf.mxu0
    %2029 = vdwg.mxu0
    %2031 = vrot.lane.b32.xlu0 %v466, 64
    %v2032 = vpop.permute.xlu0 %2031
    %v2034 = vsel %vm839, %v1830, 0
    %v2037 = vsel %vm939, %v2032, 0
    %2039 = vmatprep.subr.bf16.mxu0 0
    %2040 = vmatpush1.bf16.msra.mxu0 0
    %2041 = vmatprep.subr.bf16.mxu0 0
    %2042 = vmatpush1.bf16.msra.mxu0 0
    %2043 = vmatprep.subr.bf16.mxu0 0
    %2044 = vmatpush1.bf16.msra.mxu0 0
    %2045 = vmatprep.subr.bf16.mxu0 0
    %2046 = vmatpush1.bf16.msra.mxu0 0
    %2047 = vmatprep.subr.bf16.mxu0 0
    %2048 = vmatpush1.bf16.msra.mxu0 0
    %2049 = vmatprep.subr.bf16.mxu0 0
    %2050 = vmatpush1.bf16.msra.mxu0 0
    %2051 = vmatprep.subr.bf16.mxu0 0
    %2052 = vmatpush1.bf16.msra.mxu0 0
    %2053 = vmatprep.subr.bf16.mxu0 0
    %2054 = vmatpush1.bf16.msra.mxu0 %v2037
    %2055 = vmatprep.subr.bf16.mxu0 0
    %2056 = vmatpush2.bf16.msra.mxu0 0
    %2057 = vmatprep.subr.bf16.mxu0 0
    %2058 = vmatpush2.bf16.msra.mxu0 0
    %2059 = vmatprep.subr.bf16.mxu0 0
    %2060 = vmatpush2.bf16.msra.mxu0 0
    %2061 = vmatprep.subr.bf16.mxu0 0
    %2062 = vmatpush2.bf16.msra.mxu0 0
    %2063 = vmatprep.subr.bf16.mxu0 0
    %2064 = vmatpush2.bf16.msra.mxu0 0
    %2065 = vmatprep.subr.bf16.mxu0 0
    %2066 = vmatpush2.bf16.msra.mxu0 0
    %2067 = vmatprep.subr.bf16.mxu0 0
    %2068 = vmatpush2.bf16.msra.mxu0 0
    %2069 = vmatprep.subr.bf16.mxu0 0
    %2070 = vmatpush2.bf16.msra.mxu0 0
    %2071 = vmatprep.mubr.bf16.mxu0 0
    %2072 = vmatmul.mubr.bf16.gmra.mxu0 %v2034
    %v2073 = vpop.f32.mrf.mxu0
    %v2074 = vadd.f32 0.0, %v2073
    %v2075 = vpop.f32.mrf.mxu0
    %v2076 = vpop.f32.mrf.mxu0
    %v2077 = vpop.f32.mrf.mxu0
    %2078 = vdwg.mxu0
    %2080 = vrot.lane.b32.xlu0 %v467, 64
    %v2081 = vpop.permute.xlu0 %2080
    %v2083 = vsel %vm839, %v1831, 0
    %v2086 = vsel %vm939, %v2081, 0
    %2088 = vmatprep.subr.bf16.mxu0 0
    %2089 = vmatpush1.bf16.msra.mxu0 0
    %2090 = vmatprep.subr.bf16.mxu0 0
    %2091 = vmatpush1.bf16.msra.mxu0 0
    %2092 = vmatprep.subr.bf16.mxu0 0
    %2093 = vmatpush1.bf16.msra.mxu0 0
    %2094 = vmatprep.subr.bf16.mxu0 0
    %2095 = vmatpush1.bf16.msra.mxu0 0
    %2096 = vmatprep.subr.bf16.mxu0 0
    %2097 = vmatpush1.bf16.msra.mxu0 0
    %2098 = vmatprep.subr.bf16.mxu0 0
    %2099 = vmatpush1.bf16.msra.mxu0 0
    %2100 = vmatprep.subr.bf16.mxu0 0
    %2101 = vmatpush1.bf16.msra.mxu0 0
    %2102 = vmatprep.subr.bf16.mxu0 0
    %2103 = vmatpush1.bf16.msra.mxu0 %v2086
    %2104 = vmatprep.subr.bf16.mxu0 0
    %2105 = vmatpush2.bf16.msra.mxu0 0
    %2106 = vmatprep.subr.bf16.mxu0 0
    %2107 = vmatpush2.bf16.msra.mxu0 0
    %2108 = vmatprep.subr.bf16.mxu0 0
    %2109 = vmatpush2.bf16.msra.mxu0 0
    %2110 = vmatprep.subr.bf16.mxu0 0
    %2111 = vmatpush2.bf16.msra.mxu0 0
    %2112 = vmatprep.subr.bf16.mxu0 0
    %2113 = vmatpush2.bf16.msra.mxu0 0
    %2114 = vmatprep.subr.bf16.mxu0 0
    %2115 = vmatpush2.bf16.msra.mxu0 0
    %2116 = vmatprep.subr.bf16.mxu0 0
    %2117 = vmatpush2.bf16.msra.mxu0 0
    %2118 = vmatprep.subr.bf16.mxu0 0
    %2119 = vmatpush2.bf16.msra.mxu0 0
    %2120 = vmatprep.mubr.bf16.mxu0 0
    %2121 = vmatmul.mubr.bf16.gmra.mxu0 %v2083
    %v2122 = vpop.f32.mrf.mxu0
    %v2123 = vadd.f32 0.0, %v2122
    %v2124 = vpop.f32.mrf.mxu0
    %v2125 = vpop.f32.mrf.mxu0
    %v2126 = vpop.f32.mrf.mxu0
    %2127 = vdwg.mxu0
    %2129 = vrot.lane.b32.xlu0 %v468, 64
    %v2130 = vpop.permute.xlu0 %2129
    %v2132 = vsel %vm839, %v1832, 0
    %v2135 = vsel %vm939, %v2130, 0
    %2137 = vmatprep.subr.bf16.mxu0 0
    %2138 = vmatpush1.bf16.msra.mxu0 0
    %2139 = vmatprep.subr.bf16.mxu0 0
    %2140 = vmatpush1.bf16.msra.mxu0 0
    %2141 = vmatprep.subr.bf16.mxu0 0
    %2142 = vmatpush1.bf16.msra.mxu0 0
    %2143 = vmatprep.subr.bf16.mxu0 0
    %2144 = vmatpush1.bf16.msra.mxu0 0
    %2145 = vmatprep.subr.bf16.mxu0 0
    %2146 = vmatpush1.bf16.msra.mxu0 0
    %2147 = vmatprep.subr.bf16.mxu0 0
    %2148 = vmatpush1.bf16.msra.mxu0 0
    %2149 = vmatprep.subr.bf16.mxu0 0
    %2150 = vmatpush1.bf16.msra.mxu0 0
    %2151 = vmatprep.subr.bf16.mxu0 0
    %2152 = vmatpush1.bf16.msra.mxu0 %v2135
    %2153 = vmatprep.subr.bf16.mxu0 0
    %2154 = vmatpush2.bf16.msra.mxu0 0
    %2155 = vmatprep.subr.bf16.mxu0 0
    %2156 = vmatpush2.bf16.msra.mxu0 0
    %2157 = vmatprep.subr.bf16.mxu0 0
    %2158 = vmatpush2.bf16.msra.mxu0 0
    %2159 = vmatprep.subr.bf16.mxu0 0
    %2160 = vmatpush2.bf16.msra.mxu0 0
    %2161 = vmatprep.subr.bf16.mxu0 0
    %2162 = vmatpush2.bf16.msra.mxu0 0
    %2163 = vmatprep.subr.bf16.mxu0 0
    %2164 = vmatpush2.bf16.msra.mxu0 0
    %2165 = vmatprep.subr.bf16.mxu0 0
    %2166 = vmatpush2.bf16.msra.mxu0 0
    %2167 = vmatprep.subr.bf16.mxu0 0
    %2168 = vmatpush2.bf16.msra.mxu0 0
    %2169 = vmatprep.mubr.bf16.mxu0 0
    %2170 = vmatmul.mubr.bf16.gmra.mxu0 %v2132
    %v2171 = vpop.f32.mrf.mxu0
    %v2172 = vadd.f32 0.0, %v2171
    %v2173 = vpop.f32.mrf.mxu0
    %v2174 = vpop.f32.mrf.mxu0
    %v2175 = vpop.f32.mrf.mxu0
    %2176 = vdwg.mxu0
    %2178 = vrot.lane.b32.xlu0 %v469, 64
    %v2179 = vpop.permute.xlu0 %2178
    %v2181 = vsel %vm839, %v1833, 0
    %v2184 = vsel %vm939, %v2179, 0
    %2186 = vmatprep.subr.bf16.mxu0 0
    %2187 = vmatpush1.bf16.msra.mxu0 0
    %2188 = vmatprep.subr.bf16.mxu0 0
    %2189 = vmatpush1.bf16.msra.mxu0 0
    %2190 = vmatprep.subr.bf16.mxu0 0
    %2191 = vmatpush1.bf16.msra.mxu0 0
    %2192 = vmatprep.subr.bf16.mxu0 0
    %2193 = vmatpush1.bf16.msra.mxu0 0
    %2194 = vmatprep.subr.bf16.mxu0 0
    %2195 = vmatpush1.bf16.msra.mxu0 0
    %2196 = vmatprep.subr.bf16.mxu0 0
    %2197 = vmatpush1.bf16.msra.mxu0 0
    %2198 = vmatprep.subr.bf16.mxu0 0
    %2199 = vmatpush1.bf16.msra.mxu0 0
    %2200 = vmatprep.subr.bf16.mxu0 0
    %2201 = vmatpush1.bf16.msra.mxu0 %v2184
    %2202 = vmatprep.subr.bf16.mxu0 0
    %2203 = vmatpush2.bf16.msra.mxu0 0
    %2204 = vmatprep.subr.bf16.mxu0 0
    %2205 = vmatpush2.bf16.msra.mxu0 0
    %2206 = vmatprep.subr.bf16.mxu0 0
    %2207 = vmatpush2.bf16.msra.mxu0 0
    %2208 = vmatprep.subr.bf16.mxu0 0
    %2209 = vmatpush2.bf16.msra.mxu0 0
    %2210 = vmatprep.subr.bf16.mxu0 0
    %2211 = vmatpush2.bf16.msra.mxu0 0
    %2212 = vmatprep.subr.bf16.mxu0 0
    %2213 = vmatpush2.bf16.msra.mxu0 0
    %2214 = vmatprep.subr.bf16.mxu0 0
    %2215 = vmatpush2.bf16.msra.mxu0 0
    %2216 = vmatprep.subr.bf16.mxu0 0
    %2217 = vmatpush2.bf16.msra.mxu0 0
    %2218 = vmatprep.mubr.bf16.mxu0 0
    %2219 = vmatmul.mubr.bf16.gmra.mxu0 %v2181
    %v2220 = vpop.f32.mrf.mxu0
    %v2221 = vadd.f32 0.0, %v2220
    %v2222 = vpop.f32.mrf.mxu0
    %v2223 = vpop.f32.mrf.mxu0
    %v2224 = vpop.f32.mrf.mxu0
    %2225 = vdwg.mxu0
    %v2226 = vpack.c.bf16 %v1878, %v1878
    %v2227 = vpack.c.bf16 %v1927, %v1927
    %v2228 = vpack.c.bf16 %v1976, %v1976
    %v2229 = vpack.c.bf16 %v2025, %v2025
    %v2230 = vpack.c.bf16 %v2074, %v2074
    %v2231 = vpack.c.bf16 %v2123, %v2123
    %v2232 = vpack.c.bf16 %v2172, %v2172
    %v2233 = vpack.c.bf16 %v2221, %v2221
    %v2242 = vunpack.c.l.b16 %v2226
    %v2243 = vunpack.c.l.b16 %v2227
    %v2244 = vunpack.c.l.b16 %v2228
    %v2245 = vunpack.c.l.b16 %v2229
    %v2246 = vunpack.c.l.b16 %v2230
    %v2247 = vunpack.c.l.b16 %v2231
    %v2248 = vunpack.c.l.b16 %v2232
    %v2249 = vunpack.c.l.b16 %v2233
    %v2250 = vpack.c.b16 %v2242, %v2242
    %v2251 = vpack.c.b16 %v2243, %v2243
    %v2252 = vpack.c.b16 %v2244, %v2244
    %v2253 = vpack.c.b16 %v2245, %v2245
    %v2254 = vpack.c.b16 %v2246, %v2246
    %v2255 = vpack.c.b16 %v2247, %v2247
    %v2256 = vpack.c.b16 %v2248, %v2248
    %v2257 = vpack.c.b16 %v2249, %v2249
    %2258 = vrot.lane.b32.xlu0 %v2250, 64
    %v2259 = vpop.permute.xlu0 %2258
    %2260 = vrot.lane.b32.xlu0 %v2251, 64
    %v2261 = vpop.permute.xlu0 %2260
    %2262 = vrot.lane.b32.xlu0 %v2252, 64
    %v2263 = vpop.permute.xlu0 %2262
    %2264 = vrot.lane.b32.xlu0 %v2253, 64
    %v2265 = vpop.permute.xlu0 %2264
    %2266 = vrot.lane.b32.xlu0 %v2254, 64
    %v2267 = vpop.permute.xlu0 %2266
    %2268 = vrot.lane.b32.xlu0 %v2255, 64
    %v2269 = vpop.permute.xlu0 %2268
    %2270 = vrot.lane.b32.xlu0 %v2256, 64
    %v2271 = vpop.permute.xlu0 %2270
    %2272 = vrot.lane.b32.xlu0 %v2257, 64
    %v2273 = vpop.permute.xlu0 %2272
    %vm2282 = vcmask 1043968
    %2283 = vst.msk [vmem:[#allocation3] sm:$0xf] %vm2282, %v2259
    %2284 = vst.msk [vmem:[#allocation3 + $0x4] sm:$0xf] %vm2282, %v2261
    %2285 = vst.msk [vmem:[#allocation3 + $0x8] sm:$0xf] %vm2282, %v2263
    %2286 = vst.msk [vmem:[#allocation3 + $0xc] sm:$0xf] %vm2282, %v2265
    %2287 = vst.msk [vmem:[#allocation3 + $0x10] sm:$0xf] %vm2282, %v2267
    %2288 = vst.msk [vmem:[#allocation3 + $0x14] sm:$0xf] %vm2282, %v2269
    %2289 = vst.msk [vmem:[#allocation3 + $0x18] sm:$0xf] %vm2282, %v2271
    %2290 = vst.msk [vmem:[#allocation3 + $0x1c] sm:$0xf] %vm2282, %v2273
    %v2291 = vld [vmem:[#allocation3] sm:$0xf]
    %v2292 = vld [vmem:[#allocation3 + $0x4] sm:$0xf]
    %v2293 = vld [vmem:[#allocation3 + $0x8] sm:$0xf]
    %v2294 = vld [vmem:[#allocation3 + $0xc] sm:$0xf]
    %v2295 = vld [vmem:[#allocation3 + $0x10] sm:$0xf]
    %v2296 = vld [vmem:[#allocation3 + $0x14] sm:$0xf]
    %v2297 = vld [vmem:[#allocation3 + $0x18] sm:$0xf]
    %v2298 = vld [vmem:[#allocation3 + $0x1c] sm:$0xf]
    %v2299 = vld [vmem:[%s3] sm:$0xf]
    %v2300 = vld [vmem:[%s3 + $0x4] sm:$0xf]
    %v2301 = vld [vmem:[%s3 + $0x8] sm:$0xf]
    %v2302 = vld [vmem:[%s3 + $0xc] sm:$0xf]
    %v2303 = vld [vmem:[%s3 + $0x10] sm:$0xf]
    %v2304 = vld [vmem:[%s3 + $0x14] sm:$0xf]
    %v2305 = vld [vmem:[%s3 + $0x18] sm:$0xf]
    %v2306 = vld [vmem:[%s3 + $0x1c] sm:$0xf]
    %v2307 = vld [vmem:[%s3 + $0x20] sm:$0xf]
    %v2308 = vld [vmem:[%s3 + $0x24] sm:$0xf]
    %v2309 = vld [vmem:[%s3 + $0x28] sm:$0xf]
    %v2310 = vld [vmem:[%s3 + $0x2c] sm:$0xf]
    %v2311 = vld [vmem:[%s3 + $0x30] sm:$0xf]
    %v2312 = vld [vmem:[%s3 + $0x34] sm:$0xf]
    %v2313 = vld [vmem:[%s3 + $0x38] sm:$0xf]
    %v2314 = vld [vmem:[%s3 + $0x3c] sm:$0xf]
    %v2315 = vld [vmem:[%s4] sm:$0x1]
    %v2317 = vlaneseq
    %v2318 = vshrl.u32 %v2317, 7
    %v2319 = vsub.s32 0, %v2318
    %v2320 = vrot.slane %v2315, %v2319
    %v2330 = vunpack.c.l.b16 %v2291
    %v2331 = vunpack.c.l.b16 %v2292
    %v2332 = vunpack.c.l.b16 %v2293
    %v2333 = vunpack.c.l.b16 %v2294
    %v2334 = vunpack.c.l.b16 %v2295
    %v2335 = vunpack.c.l.b16 %v2296
    %v2336 = vunpack.c.l.b16 %v2297
    %v2337 = vunpack.c.l.b16 %v2298
    %v2338 = vpack.c.b16 %v2331, %v2330
    %v2339 = vpack.c.b16 %v2333, %v2332
    %v2340 = vpack.c.b16 %v2335, %v2334
    %v2341 = vpack.c.b16 %v2337, %v2336
    %v2362 = vunpack.c.l.b16 %v2299
    %v2363 = vunpack.c.l.b16 %v2300
    %v2364 = vunpack.c.l.b16 %v2301
    %v2365 = vunpack.c.l.b16 %v2302
    %v2366 = vunpack.c.l.b16 %v2303
    %v2367 = vunpack.c.l.b16 %v2304
    %v2368 = vunpack.c.l.b16 %v2305
    %v2369 = vunpack.c.l.b16 %v2306
    %v2370 = vunpack.c.l.b16 %v2307
    %v2371 = vunpack.c.l.b16 %v2308
    %v2372 = vunpack.c.l.b16 %v2309
    %v2373 = vunpack.c.l.b16 %v2310
    %v2374 = vunpack.c.l.b16 %v2311
    %v2375 = vunpack.c.l.b16 %v2312
    %v2376 = vunpack.c.l.b16 %v2313
    %v2377 = vunpack.c.l.b16 %v2314
    %v2378 = vpack.c.b16 %v2363, %v2362
    %v2379 = vpack.c.b16 %v2365, %v2364
    %v2380 = vpack.c.b16 %v2367, %v2366
    %v2381 = vpack.c.b16 %v2369, %v2368
    %v2382 = vpack.c.b16 %v2371, %v2370
    %v2383 = vpack.c.b16 %v2373, %v2372
    %v2384 = vpack.c.b16 %v2375, %v2374
    %v2385 = vpack.c.b16 %v2377, %v2376
    %2394 = vmatprep.subr.bf16.mxu0 0
    %2395 = vmatpush1.bf16.msra.mxu0 %v2385
    %2396 = vmatprep.subr.bf16.mxu0 0
    %2397 = vmatpush1.bf16.msra.mxu0 %v2384
    %2398 = vmatprep.subr.bf16.mxu0 0
    %2399 = vmatpush1.bf16.msra.mxu0 %v2383
    %2400 = vmatprep.subr.bf16.mxu0 0
    %2401 = vmatpush1.bf16.msra.mxu0 %v2382
    %2402 = vmatprep.subr.bf16.mxu0 0
    %2403 = vmatpush1.bf16.msra.mxu0 %v2381
    %2404 = vmatprep.subr.bf16.mxu0 0
    %2405 = vmatpush1.bf16.msra.mxu0 %v2380
    %2406 = vmatprep.subr.bf16.mxu0 0
    %2407 = vmatpush1.bf16.msra.mxu0 %v2379
    %2408 = vmatprep.subr.bf16.mxu0 0
    %2409 = vmatpush1.bf16.msra.mxu0 %v2378
    %2410 = vmatprep.subr.bf16.mxu0 0
    %2411 = vmatpush2.bf16.msra.mxu0 0
    %2412 = vmatprep.subr.bf16.mxu0 0
    %2413 = vmatpush2.bf16.msra.mxu0 0
    %2414 = vmatprep.subr.bf16.mxu0 0
    %2415 = vmatpush2.bf16.msra.mxu0 0
    %2416 = vmatprep.subr.bf16.mxu0 0
    %2417 = vmatpush2.bf16.msra.mxu0 0
    %2418 = vmatprep.subr.bf16.mxu0 0
    %2419 = vmatpush2.bf16.msra.mxu0 0
    %2420 = vmatprep.subr.bf16.mxu0 0
    %2421 = vmatpush2.bf16.msra.mxu0 0
    %2422 = vmatprep.subr.bf16.mxu0 0
    %2423 = vmatpush2.bf16.msra.mxu0 0
    %2424 = vmatprep.subr.bf16.mxu0 0
    %2425 = vmatpush2.bf16.msra.mxu0 0
    %2426 = vmatprep.mubr.bf16.mxu0 0
    %2427 = vmatmul.mubr.bf16.gmra.mxu0 %v2338
    %v2428 = vpop.f32.mrf.mxu0
    %v2429 = vadd.f32 %v2320, %v2428
    %v2430 = vpop.f32.mrf.mxu0
    %v2431 = vpop.f32.mrf.mxu0
    %v2432 = vadd.f32 %v2320, %v2431
    %v2433 = vpop.f32.mrf.mxu0
    %2434 = vmatprep.mubr.bf16.mxu0 0
    %2435 = vmatmul.mubr.bf16.gmra.mxu0 %v2339
    %v2436 = vpop.f32.mrf.mxu0
    %v2437 = vadd.f32 %v2320, %v2436
    %v2438 = vpop.f32.mrf.mxu0
    %v2439 = vpop.f32.mrf.mxu0
    %v2440 = vadd.f32 %v2320, %v2439
    %v2441 = vpop.f32.mrf.mxu0
    %2442 = vmatprep.mubr.bf16.mxu0 0
    %2443 = vmatmul.mubr.bf16.gmra.mxu0 %v2340
    %v2444 = vpop.f32.mrf.mxu0
    %v2445 = vadd.f32 %v2320, %v2444
    %v2446 = vpop.f32.mrf.mxu0
    %v2447 = vpop.f32.mrf.mxu0
    %v2448 = vadd.f32 %v2320, %v2447
    %v2449 = vpop.f32.mrf.mxu0
    %2450 = vmatprep.mubr.bf16.mxu0 0
    %2451 = vmatmul.mubr.bf16.gmra.mxu0 %v2341
    %v2452 = vpop.f32.mrf.mxu0
    %v2453 = vadd.f32 %v2320, %v2452
    %v2454 = vpop.f32.mrf.mxu0
    %v2455 = vpop.f32.mrf.mxu0
    %v2456 = vadd.f32 %v2320, %v2455
    %v2457 = vpop.f32.mrf.mxu0
    %2458 = vdwg.mxu0
    %v2459 = vadd.f32 %v111, %v2429
    %v2460 = vadd.f32 %v112, %v2432
    %v2461 = vadd.f32 %v113, %v2437
    %v2462 = vadd.f32 %v114, %v2440
    %v2463 = vadd.f32 %v115, %v2445
    %v2464 = vadd.f32 %v116, %v2448
    %v2465 = vadd.f32 %v117, %v2453
    %v2466 = vadd.f32 %v118, %v2456
    %v2467 = vld [vmem:[%s5] sm:$0x1]
    %v2468 = vld [vmem:[%s6] sm:$0x1]
    %2469 = vadd.xlane.f32.xlu0 %v2459
    %v2470 = vpop.xlane.xlu0 %2469
    %2471 = vadd.xlane.f32.xlu0 %v2460
    %v2472 = vpop.xlane.xlu0 %2471
    %2473 = vadd.xlane.f32.xlu0 %v2461
    %v2474 = vpop.xlane.xlu0 %2473
    %2475 = vadd.xlane.f32.xlu0 %v2462
    %v2476 = vpop.xlane.xlu0 %2475
    %2477 = vadd.xlane.f32.xlu0 %v2463
    %v2478 = vpop.xlane.xlu0 %2477
    %2479 = vadd.xlane.f32.xlu0 %v2464
    %v2480 = vpop.xlane.xlu0 %2479
    %2481 = vadd.xlane.f32.xlu0 %v2465
    %v2482 = vpop.xlane.xlu0 %2481
    %2483 = vadd.xlane.f32.xlu0 %v2466
    %v2484 = vpop.xlane.xlu0 %2483
    %v2485 = vrcp.pop 128.0
    %v2486 = vmul.f32 %v2470, %v2485
    %v2487 = vmul.f32 %v2472, %v2485
    %v2488 = vmul.f32 %v2474, %v2485
    %v2489 = vmul.f32 %v2476, %v2485
    %v2490 = vmul.f32 %v2478, %v2485
    %v2491 = vmul.f32 %v2480, %v2485
    %v2492 = vmul.f32 %v2482, %v2485
    %v2493 = vmul.f32 %v2484, %v2485
    %v2494 = vsub.f32 %v2459, %v2486
    %v2495 = vsub.f32 %v2460, %v2487
    %v2496 = vsub.f32 %v2461, %v2488
    %v2497 = vsub.f32 %v2462, %v2489
    %v2498 = vsub.f32 %v2463, %v2490
    %v2499 = vsub.f32 %v2464, %v2491
    %v2500 = vsub.f32 %v2465, %v2492
    %v2501 = vsub.f32 %v2466, %v2493
    %v2502 = vmul.f32 %v2494, %v2494
    %v2503 = vmul.f32 %v2495, %v2495
    %v2504 = vmul.f32 %v2496, %v2496
    %v2505 = vmul.f32 %v2497, %v2497
    %v2506 = vmul.f32 %v2498, %v2498
    %v2507 = vmul.f32 %v2499, %v2499
    %v2508 = vmul.f32 %v2500, %v2500
    %v2509 = vmul.f32 %v2501, %v2501
    %2510 = vadd.xlane.f32.xlu0 %v2502
    %v2511 = vpop.xlane.xlu0 %2510
    %2512 = vadd.xlane.f32.xlu0 %v2503
    %v2513 = vpop.xlane.xlu0 %2512
    %2514 = vadd.xlane.f32.xlu0 %v2504
    %v2515 = vpop.xlane.xlu0 %2514
    %2516 = vadd.xlane.f32.xlu0 %v2505
    %v2517 = vpop.xlane.xlu0 %2516
    %2518 = vadd.xlane.f32.xlu0 %v2506
    %v2519 = vpop.xlane.xlu0 %2518
    %2520 = vadd.xlane.f32.xlu0 %v2507
    %v2521 = vpop.xlane.xlu0 %2520
    %2522 = vadd.xlane.f32.xlu0 %v2508
    %v2523 = vpop.xlane.xlu0 %2522
    %2524 = vadd.xlane.f32.xlu0 %v2509
    %v2525 = vpop.xlane.xlu0 %2524
    %v2526 = vmul.f32 %v2511, %v2485
    %v2527 = vmul.f32 %v2513, %v2485
    %v2528 = vmul.f32 %v2515, %v2485
    %v2529 = vmul.f32 %v2517, %v2485
    %v2530 = vmul.f32 %v2519, %v2485
    %v2531 = vmul.f32 %v2521, %v2485
    %v2532 = vmul.f32 %v2523, %v2485
    %v2533 = vmul.f32 %v2525, %v2485
    %v2534 = vadd.f32 %v2526, 1e-05
    %v2535 = vadd.f32 %v2527, 1e-05
    %v2536 = vadd.f32 %v2528, 1e-05
    %v2537 = vadd.f32 %v2529, 1e-05
    %v2538 = vadd.f32 %v2530, 1e-05
    %v2539 = vadd.f32 %v2531, 1e-05
    %v2540 = vadd.f32 %v2532, 1e-05
    %v2541 = vadd.f32 %v2533, 1e-05
    %v2542 = vrsqrt.pop %v2534
    %v2543 = vrsqrt.pop %v2535
    %v2544 = vrsqrt.pop %v2536
    %v2545 = vrsqrt.pop %v2537
    %v2546 = vrsqrt.pop %v2538
    %v2547 = vrsqrt.pop %v2539
    %v2548 = vrsqrt.pop %v2540
    %v2549 = vrsqrt.pop %v2541
    %v2550 = vmul.f32 %v2494, %v2542
    %v2551 = vmul.f32 %v2495, %v2543
    %v2552 = vmul.f32 %v2496, %v2544
    %v2553 = vmul.f32 %v2497, %v2545
    %v2554 = vmul.f32 %v2498, %v2546
    %v2555 = vmul.f32 %v2499, %v2547
    %v2556 = vmul.f32 %v2500, %v2548
    %v2557 = vmul.f32 %v2501, %v2549
    %v2559 = vlaneseq
    %v2560 = vshrl.u32 %v2559, 7
    %v2561 = vsub.s32 0, %v2560
    %v2562 = vrot.slane %v2467, %v2561
    %v2564 = vmul.f32 %v2550, %v2562
    %v2565 = vmul.f32 %v2551, %v2562
    %v2566 = vmul.f32 %v2552, %v2562
    %v2567 = vmul.f32 %v2553, %v2562
    %v2568 = vmul.f32 %v2554, %v2562
    %v2569 = vmul.f32 %v2555, %v2562
    %v2570 = vmul.f32 %v2556, %v2562
    %v2571 = vmul.f32 %v2557, %v2562
    %v2573 = vlaneseq
    %v2574 = vshrl.u32 %v2573, 7
    %v2575 = vsub.s32 0, %v2574
    %v2576 = vrot.slane %v2468, %v2575
    %v2578 = vadd.f32 %v2564, %v2576
    %v2579 = vadd.f32 %v2565, %v2576
    %v2580 = vadd.f32 %v2566, %v2576
    %v2581 = vadd.f32 %v2567, %v2576
    %v2582 = vadd.f32 %v2568, %v2576
    %v2583 = vadd.f32 %v2569, %v2576
    %v2584 = vadd.f32 %v2570, %v2576
    %v2585 = vadd.f32 %v2571, %v2576
    %v2586 = vpack.c.bf16 %v2579, %v2578
    %v2587 = vpack.c.bf16 %v2581, %v2580
    %v2588 = vpack.c.bf16 %v2583, %v2582
    %v2589 = vpack.c.bf16 %v2585, %v2584
    %v2590 = vld [vmem:[#allocation7] sm:$0xff]
    %v2591 = vld [vmem:[#allocation7 + $0x8] sm:$0xff]
    %v2592 = vld [vmem:[#allocation7 + $0x40] sm:$0xff]
    %v2593 = vld [vmem:[#allocation7 + $0x48] sm:$0xff]
    %v2594 = vld [vmem:[#allocation7 + $0x80] sm:$0xff]
    %v2595 = vld [vmem:[#allocation7 + $0x88] sm:$0xff]
    %v2596 = vld [vmem:[#allocation7 + $0xc0] sm:$0xff]
    %v2597 = vld [vmem:[#allocation7 + $0xc8] sm:$0xff]
    %v2598 = vld [vmem:[#allocation7 + $0x100] sm:$0xff]
    %v2599 = vld [vmem:[#allocation7 + $0x108] sm:$0xff]
    %v2600 = vld [vmem:[#allocation7 + $0x140] sm:$0xff]
    %v2601 = vld [vmem:[#allocation7 + $0x148] sm:$0xff]
    %v2602 = vld [vmem:[#allocation7 + $0x180] sm:$0xff]
    %v2603 = vld [vmem:[#allocation7 + $0x188] sm:$0xff]
    %v2604 = vld [vmem:[#allocation7 + $0x1c0] sm:$0xff]
    %v2605 = vld [vmem:[#allocation7 + $0x1c8] sm:$0xff]
    %v2606 = vld [vmem:[#allocation7 + $0x200] sm:$0xff]
    %v2607 = vld [vmem:[#allocation7 + $0x208] sm:$0xff]
    %v2608 = vld [vmem:[#allocation7 + $0x240] sm:$0xff]
    %v2609 = vld [vmem:[#allocation7 + $0x248] sm:$0xff]
    %v2610 = vld [vmem:[#allocation7 + $0x280] sm:$0xff]
    %v2611 = vld [vmem:[#allocation7 + $0x288] sm:$0xff]
    %v2612 = vld [vmem:[#allocation7 + $0x2c0] sm:$0xff]
    %v2613 = vld [vmem:[#allocation7 + $0x2c8] sm:$0xff]
    %v2614 = vld [vmem:[#allocation7 + $0x300] sm:$0xff]
    %v2615 = vld [vmem:[#allocation7 + $0x308] sm:$0xff]
    %v2616 = vld [vmem:[#allocation7 + $0x340] sm:$0xff]
    %v2617 = vld [vmem:[#allocation7 + $0x348] sm:$0xff]
    %v2618 = vld [vmem:[#allocation7 + $0x380] sm:$0xff]
    %v2619 = vld [vmem:[#allocation7 + $0x388] sm:$0xff]
    %v2620 = vld [vmem:[#allocation7 + $0x3c0] sm:$0xff]
    %v2621 = vld [vmem:[#allocation7 + $0x3c8] sm:$0xff]
    %v2622 = vld [vmem:[%s8] sm:$0xf]
    %v2624 = vlaneseq
    %v2625 = vshrl.u32 %v2624, 7
    %v2626 = vsub.s32 0, %v2625
    %v2627 = vrot.slane %v2622, %v2626
    %v2628 = vlaneseq
    %v2629 = vshrl.u32 %v2628, 7
    %v2630 = vsub.s32 1, %v2629
    %v2631 = vrot.slane %v2622, %v2630
    %v2632 = vlaneseq
    %v2633 = vshrl.u32 %v2632, 7
    %v2634 = vsub.s32 2, %v2633
    %v2635 = vrot.slane %v2622, %v2634
    %v2636 = vlaneseq
    %v2637 = vshrl.u32 %v2636, 7
    %v2638 = vsub.s32 3, %v2637
    %v2639 = vrot.slane %v2622, %v2638
    %v2676 = vunpack.c.l.b16 %v2590
    %v2677 = vunpack.c.h.b16 %v2590
    %v2678 = vunpack.c.l.b16 %v2591
    %v2679 = vunpack.c.h.b16 %v2591
    %v2680 = vunpack.c.l.b16 %v2592
    %v2681 = vunpack.c.h.b16 %v2592
    %v2682 = vunpack.c.l.b16 %v2593
    %v2683 = vunpack.c.h.b16 %v2593
    %v2684 = vunpack.c.l.b16 %v2594
    %v2685 = vunpack.c.h.b16 %v2594
    %v2686 = vunpack.c.l.b16 %v2595
    %v2687 = vunpack.c.h.b16 %v2595
    %v2688 = vunpack.c.l.b16 %v2596
    %v2689 = vunpack.c.h.b16 %v2596
    %v2690 = vunpack.c.l.b16 %v2597
    %v2691 = vunpack.c.h.b16 %v2597
    %v2692 = vunpack.c.l.b16 %v2598
    %v2693 = vunpack.c.h.b16 %v2598
    %v2694 = vunpack.c.l.b16 %v2599
    %v2695 = vunpack.c.h.b16 %v2599
    %v2696 = vunpack.c.l.b16 %v2600
    %v2697 = vunpack.c.h.b16 %v2600
    %v2698 = vunpack.c.l.b16 %v2601
    %v2699 = vunpack.c.h.b16 %v2601
    %v2700 = vunpack.c.l.b16 %v2602
    %v2701 = vunpack.c.h.b16 %v2602
    %v2702 = vunpack.c.l.b16 %v2603
    %v2703 = vunpack.c.h.b16 %v2603
    %v2704 = vunpack.c.l.b16 %v2604
    %v2705 = vunpack.c.h.b16 %v2604
    %v2706 = vunpack.c.l.b16 %v2605
    %v2707 = vunpack.c.h.b16 %v2605
    %v2708 = vunpack.c.l.b16 %v2606
    %v2709 = vunpack.c.h.b16 %v2606
    %v2710 = vunpack.c.l.b16 %v2607
    %v2711 = vunpack.c.h.b16 %v2607
    %v2712 = vunpack.c.l.b16 %v2608
    %v2713 = vunpack.c.h.b16 %v2608
    %v2714 = vunpack.c.l.b16 %v2609
    %v2715 = vunpack.c.h.b16 %v2609
    %v2716 = vunpack.c.l.b16 %v2610
    %v2717 = vunpack.c.h.b16 %v2610
    %v2718 = vunpack.c.l.b16 %v2611
    %v2719 = vunpack.c.h.b16 %v2611
    %v2720 = vunpack.c.l.b16 %v2612
    %v2721 = vunpack.c.h.b16 %v2612
    %v2722 = vunpack.c.l.b16 %v2613
    %v2723 = vunpack.c.h.b16 %v2613
    %v2724 = vunpack.c.l.b16 %v2614
    %v2725 = vunpack.c.h.b16 %v2614
    %v2726 = vunpack.c.l.b16 %v2615
    %v2727 = vunpack.c.h.b16 %v2615
    %v2728 = vunpack.c.l.b16 %v2616
    %v2729 = vunpack.c.h.b16 %v2616
    %v2730 = vunpack.c.l.b16 %v2617
    %v2731 = vunpack.c.h.b16 %v2617
    %v2732 = vunpack.c.l.b16 %v2618
    %v2733 = vunpack.c.h.b16 %v2618
    %v2734 = vunpack.c.l.b16 %v2619
    %v2735 = vunpack.c.h.b16 %v2619
    %v2736 = vunpack.c.l.b16 %v2620
    %v2737 = vunpack.c.h.b16 %v2620
    %v2738 = vunpack.c.l.b16 %v2621
    %v2739 = vunpack.c.h.b16 %v2621
    %v2740 = vpack.c.b16 %v2680, %v2676
    %v2741 = vpack.c.b16 %v2681, %v2677
    %v2742 = vpack.c.b16 %v2682, %v2678
    %v2743 = vpack.c.b16 %v2683, %v2679
    %v2744 = vpack.c.b16 %v2688, %v2684
    %v2745 = vpack.c.b16 %v2689, %v2685
    %v2746 = vpack.c.b16 %v2690, %v2686
    %v2747 = vpack.c.b16 %v2691, %v2687
    %v2748 = vpack.c.b16 %v2696, %v2692
    %v2749 = vpack.c.b16 %v2697, %v2693
    %v2750 = vpack.c.b16 %v2698, %v2694
    %v2751 = vpack.c.b16 %v2699, %v2695
    %v2752 = vpack.c.b16 %v2704, %v2700
    %v2753 = vpack.c.b16 %v2705, %v2701
    %v2754 = vpack.c.b16 %v2706, %v2702
    %v2755 = vpack.c.b16 %v2707, %v2703
    %v2756 = vpack.c.b16 %v2712, %v2708
    %v2757 = vpack.c.b16 %v2713, %v2709
    %v2758 = vpack.c.b16 %v2714, %v2710
    %v2759 = vpack.c.b16 %v2715, %v2711
    %v2760 = vpack.c.b16 %v2720, %v2716
    %v2761 = vpack.c.b16 %v2721, %v2717
    %v2762 = vpack.c.b16 %v2722, %v2718
    %v2763 = vpack.c.b16 %v2723, %v2719
    %v2764 = vpack.c.b16 %v2728, %v2724
    %v2765 = vpack.c.b16 %v2729, %v2725
    %v2766 = vpack.c.b16 %v2730, %v2726
    %v2767 = vpack.c.b16 %v2731, %v2727
    %v2768 = vpack.c.b16 %v2736, %v2732
    %v2769 = vpack.c.b16 %v2737, %v2733
    %v2770 = vpack.c.b16 %v2738, %v2734
    %v2771 = vpack.c.b16 %v2739, %v2735
    %2804 = vmatprep.subr.bf16.mxu0 %v2769
    %2805 = vmatpush1.bf16.msra.mxu0 %v2768
    %2806 = vmatprep.subr.bf16.mxu0 %v2765
    %2807 = vmatpush1.bf16.msra.mxu0 %v2764
    %2808 = vmatprep.subr.bf16.mxu0 %v2761
    %2809 = vmatpush1.bf16.msra.mxu0 %v2760
    %2810 = vmatprep.subr.bf16.mxu0 %v2757
    %2811 = vmatpush1.bf16.msra.mxu0 %v2756
    %2812 = vmatprep.subr.bf16.mxu0 %v2753
    %2813 = vmatpush1.bf16.msra.mxu0 %v2752
    %2814 = vmatprep.subr.bf16.mxu0 %v2749
    %2815 = vmatpush1.bf16.msra.mxu0 %v2748
    %2816 = vmatprep.subr.bf16.mxu0 %v2745
    %2817 = vmatpush1.bf16.msra.mxu0 %v2744
    %2818 = vmatprep.subr.bf16.mxu0 %v2741
    %2819 = vmatpush1.bf16.msra.mxu0 %v2740
    %2820 = vmatprep.subr.bf16.mxu0 0
    %2821 = vmatpush2.bf16.msra.mxu0 0
    %2822 = vmatprep.subr.bf16.mxu0 0
    %2823 = vmatpush2.bf16.msra.mxu0 0
    %2824 = vmatprep.subr.bf16.mxu0 0
    %2825 = vmatpush2.bf16.msra.mxu0 0
    %2826 = vmatprep.subr.bf16.mxu0 0
    %2827 = vmatpush2.bf16.msra.mxu0 0
    %2828 = vmatprep.subr.bf16.mxu0 0
    %2829 = vmatpush2.bf16.msra.mxu0 0
    %2830 = vmatprep.subr.bf16.mxu0 0
    %2831 = vmatpush2.bf16.msra.mxu0 0
    %2832 = vmatprep.subr.bf16.mxu0 0
    %2833 = vmatpush2.bf16.msra.mxu0 0
    %2834 = vmatprep.subr.bf16.mxu0 0
    %2835 = vmatpush2.bf16.msra.mxu0 0
    %2836 = vmatprep.mubr.bf16.mxu0 0
    %2837 = vmatmul.mubr.bf16.gmra.mxu0 %v2586
    %v2838 = vpop.f32.mrf.mxu0
    %v2839 = vadd.f32 %v2627, %v2838
    %v2840 = vpop.f32.mrf.mxu0
    %v2841 = vadd.f32 %v2631, %v2840
    %v2842 = vpop.f32.mrf.mxu0
    %v2843 = vadd.f32 %v2627, %v2842
    %v2844 = vpop.f32.mrf.mxu0
    %v2845 = vadd.f32 %v2631, %v2844
    %2846 = vmatprep.mubr.bf16.mxu0 0
    %2847 = vmatmul.mubr.bf16.gmra.mxu0 %v2587
    %v2848 = vpop.f32.mrf.mxu0
    %v2849 = vadd.f32 %v2627, %v2848
    %v2850 = vpop.f32.mrf.mxu0
    %v2851 = vadd.f32 %v2631, %v2850
    %v2852 = vpop.f32.mrf.mxu0
    %v2853 = vadd.f32 %v2627, %v2852
    %v2854 = vpop.f32.mrf.mxu0
    %v2855 = vadd.f32 %v2631, %v2854
    %2856 = vmatprep.mubr.bf16.mxu0 0
    %2857 = vmatmul.mubr.bf16.gmra.mxu0 %v2588
    %v2858 = vpop.f32.mrf.mxu0
    %v2859 = vadd.f32 %v2627, %v2858
    %v2860 = vpop.f32.mrf.mxu0
    %v2861 = vadd.f32 %v2631, %v2860
    %v2862 = vpop.f32.mrf.mxu0
    %v2863 = vadd.f32 %v2627, %v2862
    %v2864 = vpop.f32.mrf.mxu0
    %v2865 = vadd.f32 %v2631, %v2864
    %2866 = vmatprep.mubr.bf16.mxu0 0
    %2867 = vmatmul.mubr.bf16.gmra.mxu0 %v2589
    %v2868 = vpop.f32.mrf.mxu0
    %v2869 = vadd.f32 %v2627, %v2868
    %v2870 = vpop.f32.mrf.mxu0
    %v2871 = vadd.f32 %v2631, %v2870
    %v2872 = vpop.f32.mrf.mxu0
    %v2873 = vadd.f32 %v2627, %v2872
    %v2874 = vpop.f32.mrf.mxu0
    %v2875 = vadd.f32 %v2631, %v2874
    %2876 = vdwg.mxu0
    %2877 = vmatprep.subr.bf16.mxu0 %v2771
    %2878 = vmatpush1.bf16.msra.mxu0 %v2770
    %2879 = vmatprep.subr.bf16.mxu0 %v2767
    %2880 = vmatpush1.bf16.msra.mxu0 %v2766
    %2881 = vmatprep.subr.bf16.mxu0 %v2763
    %2882 = vmatpush1.bf16.msra.mxu0 %v2762
    %2883 = vmatprep.subr.bf16.mxu0 %v2759
    %2884 = vmatpush1.bf16.msra.mxu0 %v2758
    %2885 = vmatprep.subr.bf16.mxu0 %v2755
    %2886 = vmatpush1.bf16.msra.mxu0 %v2754
    %2887 = vmatprep.subr.bf16.mxu0 %v2751
    %2888 = vmatpush1.bf16.msra.mxu0 %v2750
    %2889 = vmatprep.subr.bf16.mxu0 %v2747
    %2890 = vmatpush1.bf16.msra.mxu0 %v2746
    %2891 = vmatprep.subr.bf16.mxu0 %v2743
    %2892 = vmatpush1.bf16.msra.mxu0 %v2742
    %2893 = vmatprep.subr.bf16.mxu0 0
    %2894 = vmatpush2.bf16.msra.mxu0 0
    %2895 = vmatprep.subr.bf16.mxu0 0
    %2896 = vmatpush2.bf16.msra.mxu0 0
    %2897 = vmatprep.subr.bf16.mxu0 0
    %2898 = vmatpush2.bf16.msra.mxu0 0
    %2899 = vmatprep.subr.bf16.mxu0 0
    %2900 = vmatpush2.bf16.msra.mxu0 0
    %2901 = vmatprep.subr.bf16.mxu0 0
    %2902 = vmatpush2.bf16.msra.mxu0 0
    %2903 = vmatprep.subr.bf16.mxu0 0
    %2904 = vmatpush2.bf16.msra.mxu0 0
    %2905 = vmatprep.subr.bf16.mxu0 0
    %2906 = vmatpush2.bf16.msra.mxu0 0
    %2907 = vmatprep.subr.bf16.mxu0 0
    %2908 = vmatpush2.bf16.msra.mxu0 0
    %2909 = vmatprep.mubr.bf16.mxu0 0
    %2910 = vmatmul.mubr.bf16.gmra.mxu0 %v2586
    %v2911 = vpop.f32.mrf.mxu0
    %v2912 = vadd.f32 %v2635, %v2911
    %v2913 = vpop.f32.mrf.mxu0
    %v2914 = vadd.f32 %v2639, %v2913
    %v2915 = vpop.f32.mrf.mxu0
    %v2916 = vadd.f32 %v2635, %v2915
    %v2917 = vpop.f32.mrf.mxu0
    %v2918 = vadd.f32 %v2639, %v2917
    %2919 = vmatprep.mubr.bf16.mxu0 0
    %2920 = vmatmul.mubr.bf16.gmra.mxu0 %v2587
    %v2921 = vpop.f32.mrf.mxu0
    %v2922 = vadd.f32 %v2635, %v2921
    %v2923 = vpop.f32.mrf.mxu0
    %v2924 = vadd.f32 %v2639, %v2923
    %v2925 = vpop.f32.mrf.mxu0
    %v2926 = vadd.f32 %v2635, %v2925
    %v2927 = vpop.f32.mrf.mxu0
    %v2928 = vadd.f32 %v2639, %v2927
    %2929 = vmatprep.mubr.bf16.mxu0 0
    %2930 = vmatmul.mubr.bf16.gmra.mxu0 %v2588
    %v2931 = vpop.f32.mrf.mxu0
    %v2932 = vadd.f32 %v2635, %v2931
    %v2933 = vpop.f32.mrf.mxu0
    %v2934 = vadd.f32 %v2639, %v2933
    %v2935 = vpop.f32.mrf.mxu0
    %v2936 = vadd.f32 %v2635, %v2935
    %v2937 = vpop.f32.mrf.mxu0
    %v2938 = vadd.f32 %v2639, %v2937
    %2939 = vmatprep.mubr.bf16.mxu0 0
    %2940 = vmatmul.mubr.bf16.gmra.mxu0 %v2589
    %v2941 = vpop.f32.mrf.mxu0
    %v2942 = vadd.f32 %v2635, %v2941
    %v2943 = vpop.f32.mrf.mxu0
    %v2944 = vadd.f32 %v2639, %v2943
    %v2945 = vpop.f32.mrf.mxu0
    %v2946 = vadd.f32 %v2635, %v2945
    %v2947 = vpop.f32.mrf.mxu0
    %v2948 = vadd.f32 %v2639, %v2947
    %2949 = vdwg.mxu0
    %v2950 = vmax.f32 %v2839, 0.0
    %v2951 = vmax.f32 %v2841, 0.0
    %v2952 = vmax.f32 %v2912, 0.0
    %v2953 = vmax.f32 %v2914, 0.0
    %v2954 = vmax.f32 %v2843, 0.0
    %v2955 = vmax.f32 %v2845, 0.0
    %v2956 = vmax.f32 %v2916, 0.0
    %v2957 = vmax.f32 %v2918, 0.0
    %v2958 = vmax.f32 %v2849, 0.0
    %v2959 = vmax.f32 %v2851, 0.0
    %v2960 = vmax.f32 %v2922, 0.0
    %v2961 = vmax.f32 %v2924, 0.0
    %v2962 = vmax.f32 %v2853, 0.0
    %v2963 = vmax.f32 %v2855, 0.0
    %v2964 = vmax.f32 %v2926, 0.0
    %v2965 = vmax.f32 %v2928, 0.0
    %v2966 = vmax.f32 %v2859, 0.0
    %v2967 = vmax.f32 %v2861, 0.0
    %v2968 = vmax.f32 %v2932, 0.0
    %v2969 = vmax.f32 %v2934, 0.0
    %v2970 = vmax.f32 %v2863, 0.0
    %v2971 = vmax.f32 %v2865, 0.0
    %v2972 = vmax.f32 %v2936, 0.0
    %v2973 = vmax.f32 %v2938, 0.0
    %v2974 = vmax.f32 %v2869, 0.0
    %v2975 = vmax.f32 %v2871, 0.0
    %v2976 = vmax.f32 %v2942, 0.0
    %v2977 = vmax.f32 %v2944, 0.0
    %v2978 = vmax.f32 %v2873, 0.0
    %v2979 = vmax.f32 %v2875, 0.0
    %v2980 = vmax.f32 %v2946, 0.0
    %v2981 = vmax.f32 %v2948, 0.0
    %v2982 = vpack.c.bf16 %v2954, %v2950
    %v2983 = vpack.c.bf16 %v2955, %v2951
    %v2984 = vpack.c.bf16 %v2956, %v2952
    %v2985 = vpack.c.bf16 %v2957, %v2953
    %v2986 = vpack.c.bf16 %v2962, %v2958
    %v2987 = vpack.c.bf16 %v2963, %v2959
    %v2988 = vpack.c.bf16 %v2964, %v2960
    %v2989 = vpack.c.bf16 %v2965, %v2961
    %v2990 = vpack.c.bf16 %v2970, %v2966
    %v2991 = vpack.c.bf16 %v2971, %v2967
    %v2992 = vpack.c.bf16 %v2972, %v2968
    %v2993 = vpack.c.bf16 %v2973, %v2969
    %v2994 = vpack.c.bf16 %v2978, %v2974
    %v2995 = vpack.c.bf16 %v2979, %v2975
    %v2996 = vpack.c.bf16 %v2980, %v2976
    %v2997 = vpack.c.bf16 %v2981, %v2977
    %v2998 = vld [vmem:[#allocation9] sm:$0xf]
    %v2999 = vld [vmem:[#allocation9 + $0x4] sm:$0xf]
    %v3000 = vld [vmem:[#allocation9 + $0x8] sm:$0xf]
    %v3001 = vld [vmem:[#allocation9 + $0xc] sm:$0xf]
    %v3002 = vld [vmem:[#allocation9 + $0x10] sm:$0xf]
    %v3003 = vld [vmem:[#allocation9 + $0x14] sm:$0xf]
    %v3004 = vld [vmem:[#allocation9 + $0x18] sm:$0xf]
    %v3005 = vld [vmem:[#allocation9 + $0x1c] sm:$0xf]
    %v3006 = vld [vmem:[#allocation9 + $0x20] sm:$0xf]
    %v3007 = vld [vmem:[#allocation9 + $0x24] sm:$0xf]
    %v3008 = vld [vmem:[#allocation9 + $0x28] sm:$0xf]
    %v3009 = vld [vmem:[#allocation9 + $0x2c] sm:$0xf]
    %v3010 = vld [vmem:[#allocation9 + $0x30] sm:$0xf]
    %v3011 = vld [vmem:[#allocation9 + $0x34] sm:$0xf]
    %v3012 = vld [vmem:[#allocation9 + $0x38] sm:$0xf]
    %v3013 = vld [vmem:[#allocation9 + $0x3c] sm:$0xf]
    %v3014 = vld [vmem:[#allocation9 + $0x40] sm:$0xf]
    %v3015 = vld [vmem:[#allocation9 + $0x44] sm:$0xf]
    %v3016 = vld [vmem:[#allocation9 + $0x48] sm:$0xf]
    %v3017 = vld [vmem:[#allocation9 + $0x4c] sm:$0xf]
    %v3018 = vld [vmem:[#allocation9 + $0x50] sm:$0xf]
    %v3019 = vld [vmem:[#allocation9 + $0x54] sm:$0xf]
    %v3020 = vld [vmem:[#allocation9 + $0x58] sm:$0xf]
    %v3021 = vld [vmem:[#allocation9 + $0x5c] sm:$0xf]
    %v3022 = vld [vmem:[#allocation9 + $0x60] sm:$0xf]
    %v3023 = vld [vmem:[#allocation9 + $0x64] sm:$0xf]
    %v3024 = vld [vmem:[#allocation9 + $0x68] sm:$0xf]
    %v3025 = vld [vmem:[#allocation9 + $0x6c] sm:$0xf]
    %v3026 = vld [vmem:[#allocation9 + $0x70] sm:$0xf]
    %v3027 = vld [vmem:[#allocation9 + $0x74] sm:$0xf]
    %v3028 = vld [vmem:[#allocation9 + $0x78] sm:$0xf]
    %v3029 = vld [vmem:[#allocation9 + $0x7c] sm:$0xf]
    %v3030 = vld [vmem:[#allocation9 + $0x80] sm:$0xf]
    %v3031 = vld [vmem:[#allocation9 + $0x84] sm:$0xf]
    %v3032 = vld [vmem:[#allocation9 + $0x88] sm:$0xf]
    %v3033 = vld [vmem:[#allocation9 + $0x8c] sm:$0xf]
    %v3034 = vld [vmem:[#allocation9 + $0x90] sm:$0xf]
    %v3035 = vld [vmem:[#allocation9 + $0x94] sm:$0xf]
    %v3036 = vld [vmem:[#allocation9 + $0x98] sm:$0xf]
    %v3037 = vld [vmem:[#allocation9 + $0x9c] sm:$0xf]
    %v3038 = vld [vmem:[#allocation9 + $0xa0] sm:$0xf]
    %v3039 = vld [vmem:[#allocation9 + $0xa4] sm:$0xf]
    %v3040 = vld [vmem:[#allocation9 + $0xa8] sm:$0xf]
    %v3041 = vld [vmem:[#allocation9 + $0xac] sm:$0xf]
    %v3042 = vld [vmem:[#allocation9 + $0xb0] sm:$0xf]
    %v3043 = vld [vmem:[#allocation9 + $0xb4] sm:$0xf]
    %v3044 = vld [vmem:[#allocation9 + $0xb8] sm:$0xf]
    %v3045 = vld [vmem:[#allocation9 + $0xbc] sm:$0xf]
    %v3046 = vld [vmem:[#allocation9 + $0xc0] sm:$0xf]
    %v3047 = vld [vmem:[#allocation9 + $0xc4] sm:$0xf]
    %v3048 = vld [vmem:[#allocation9 + $0xc8] sm:$0xf]
    %v3049 = vld [vmem:[#allocation9 + $0xcc] sm:$0xf]
    %v3050 = vld [vmem:[#allocation9 + $0xd0] sm:$0xf]
    %v3051 = vld [vmem:[#allocation9 + $0xd4] sm:$0xf]
    %v3052 = vld [vmem:[#allocation9 + $0xd8] sm:$0xf]
    %v3053 = vld [vmem:[#allocation9 + $0xdc] sm:$0xf]
    %v3054 = vld [vmem:[#allocation9 + $0xe0] sm:$0xf]
    %v3055 = vld [vmem:[#allocation9 + $0xe4] sm:$0xf]
    %v3056 = vld [vmem:[#allocation9 + $0xe8] sm:$0xf]
    %v3057 = vld [vmem:[#allocation9 + $0xec] sm:$0xf]
    %v3058 = vld [vmem:[#allocation9 + $0xf0] sm:$0xf]
    %v3059 = vld [vmem:[#allocation9 + $0xf4] sm:$0xf]
    %v3060 = vld [vmem:[#allocation9 + $0xf8] sm:$0xf]
    %v3061 = vld [vmem:[#allocation9 + $0xfc] sm:$0xf]
    %v3062 = vld [vmem:[#allocation7 + $0x10] sm:$0xff]
    %v3063 = vld [vmem:[#allocation7 + $0x18] sm:$0xff]
    %v3064 = vld [vmem:[#allocation7 + $0x50] sm:$0xff]
    %v3065 = vld [vmem:[#allocation7 + $0x58] sm:$0xff]
    %v3066 = vld [vmem:[#allocation7 + $0x90] sm:$0xff]
    %v3067 = vld [vmem:[#allocation7 + $0x98] sm:$0xff]
    %v3068 = vld [vmem:[#allocation7 + $0xd0] sm:$0xff]
    %v3069 = vld [vmem:[#allocation7 + $0xd8] sm:$0xff]
    %v3070 = vld [vmem:[#allocation7 + $0x110] sm:$0xff]
    %v3071 = vld [vmem:[#allocation7 + $0x118] sm:$0xff]
    %v3072 = vld [vmem:[#allocation7 + $0x150] sm:$0xff]
    %v3073 = vld [vmem:[#allocation7 + $0x158] sm:$0xff]
    %v3074 = vld [vmem:[#allocation7 + $0x190] sm:$0xff]
    %v3075 = vld [vmem:[#allocation7 + $0x198] sm:$0xff]
    %v3076 = vld [vmem:[#allocation7 + $0x1d0] sm:$0xff]
    %v3077 = vld [vmem:[#allocation7 + $0x1d8] sm:$0xff]
    %v3078 = vld [vmem:[#allocation7 + $0x210] sm:$0xff]
    %v3079 = vld [vmem:[#allocation7 + $0x218] sm:$0xff]
    %v3080 = vld [vmem:[#allocation7 + $0x250] sm:$0xff]
    %v3081 = vld [vmem:[#allocation7 + $0x258] sm:$0xff]
    %v3082 = vld [vmem:[#allocation7 + $0x290] sm:$0xff]
    %v3083 = vld [vmem:[#allocation7 + $0x298] sm:$0xff]
    %v3084 = vld [vmem:[#allocation7 + $0x2d0] sm:$0xff]
    %v3085 = vld [vmem:[#allocation7 + $0x2d8] sm:$0xff]
    %v3086 = vld [vmem:[#allocation7 + $0x310] sm:$0xff]
    %v3087 = vld [vmem:[#allocation7 + $0x318] sm:$0xff]
    %v3088 = vld [vmem:[#allocation7 + $0x350] sm:$0xff]
    %v3089 = vld [vmem:[#allocation7 + $0x358] sm:$0xff]
    %v3090 = vld [vmem:[#allocation7 + $0x390] sm:$0xff]
    %v3091 = vld [vmem:[#allocation7 + $0x398] sm:$0xff]
    %v3092 = vld [vmem:[#allocation7 + $0x3d0] sm:$0xff]
    %v3093 = vld [vmem:[#allocation7 + $0x3d8] sm:$0xff]
    %v3094 = vld [vmem:[%s8 + $0x4] sm:$0xf]
    %v3096 = vlaneseq
    %v3097 = vshrl.u32 %v3096, 7
    %v3098 = vsub.s32 0, %v3097
    %v3099 = vrot.slane %v3094, %v3098
    %v3100 = vlaneseq
    %v3101 = vshrl.u32 %v3100, 7
    %v3102 = vsub.s32 1, %v3101
    %v3103 = vrot.slane %v3094, %v3102
    %v3104 = vlaneseq
    %v3105 = vshrl.u32 %v3104, 7
    %v3106 = vsub.s32 2, %v3105
    %v3107 = vrot.slane %v3094, %v3106
    %v3108 = vlaneseq
    %v3109 = vshrl.u32 %v3108, 7
    %v3110 = vsub.s32 3, %v3109
    %v3111 = vrot.slane %v3094, %v3110
    %v3148 = vunpack.c.l.b16 %v3062
    %v3149 = vunpack.c.h.b16 %v3062
    %v3150 = vunpack.c.l.b16 %v3063
    %v3151 = vunpack.c.h.b16 %v3063
    %v3152 = vunpack.c.l.b16 %v3064
    %v3153 = vunpack.c.h.b16 %v3064
    %v3154 = vunpack.c.l.b16 %v3065
    %v3155 = vunpack.c.h.b16 %v3065
    %v3156 = vunpack.c.l.b16 %v3066
    %v3157 = vunpack.c.h.b16 %v3066
    %v3158 = vunpack.c.l.b16 %v3067
    %v3159 = vunpack.c.h.b16 %v3067
    %v3160 = vunpack.c.l.b16 %v3068
    %v3161 = vunpack.c.h.b16 %v3068
    %v3162 = vunpack.c.l.b16 %v3069
    %v3163 = vunpack.c.h.b16 %v3069
    %v3164 = vunpack.c.l.b16 %v3070
    %v3165 = vunpack.c.h.b16 %v3070
    %v3166 = vunpack.c.l.b16 %v3071
    %v3167 = vunpack.c.h.b16 %v3071
    %v3168 = vunpack.c.l.b16 %v3072
    %v3169 = vunpack.c.h.b16 %v3072
    %v3170 = vunpack.c.l.b16 %v3073
    %v3171 = vunpack.c.h.b16 %v3073
    %v3172 = vunpack.c.l.b16 %v3074
    %v3173 = vunpack.c.h.b16 %v3074
    %v3174 = vunpack.c.l.b16 %v3075
    %v3175 = vunpack.c.h.b16 %v3075
    %v3176 = vunpack.c.l.b16 %v3076
    %v3177 = vunpack.c.h.b16 %v3076
    %v3178 = vunpack.c.l.b16 %v3077
    %v3179 = vunpack.c.h.b16 %v3077
    %v3180 = vunpack.c.l.b16 %v3078
    %v3181 = vunpack.c.h.b16 %v3078
    %v3182 = vunpack.c.l.b16 %v3079
    %v3183 = vunpack.c.h.b16 %v3079
    %v3184 = vunpack.c.l.b16 %v3080
    %v3185 = vunpack.c.h.b16 %v3080
    %v3186 = vunpack.c.l.b16 %v3081
    %v3187 = vunpack.c.h.b16 %v3081
    %v3188 = vunpack.c.l.b16 %v3082
    %v3189 = vunpack.c.h.b16 %v3082
    %v3190 = vunpack.c.l.b16 %v3083
    %v3191 = vunpack.c.h.b16 %v3083
    %v3192 = vunpack.c.l.b16 %v3084
    %v3193 = vunpack.c.h.b16 %v3084
    %v3194 = vunpack.c.l.b16 %v3085
    %v3195 = vunpack.c.h.b16 %v3085
    %v3196 = vunpack.c.l.b16 %v3086
    %v3197 = vunpack.c.h.b16 %v3086
    %v3198 = vunpack.c.l.b16 %v3087
    %v3199 = vunpack.c.h.b16 %v3087
    %v3200 = vunpack.c.l.b16 %v3088
    %v3201 = vunpack.c.h.b16 %v3088
    %v3202 = vunpack.c.l.b16 %v3089
    %v3203 = vunpack.c.h.b16 %v3089
    %v3204 = vunpack.c.l.b16 %v3090
    %v3205 = vunpack.c.h.b16 %v3090
    %v3206 = vunpack.c.l.b16 %v3091
    %v3207 = vunpack.c.h.b16 %v3091
    %v3208 = vunpack.c.l.b16 %v3092
    %v3209 = vunpack.c.h.b16 %v3092
    %v3210 = vunpack.c.l.b16 %v3093
    %v3211 = vunpack.c.h.b16 %v3093
    %v3212 = vpack.c.b16 %v3152, %v3148
    %v3213 = vpack.c.b16 %v3153, %v3149
    %v3214 = vpack.c.b16 %v3154, %v3150
    %v3215 = vpack.c.b16 %v3155, %v3151
    %v3216 = vpack.c.b16 %v3160, %v3156
    %v3217 = vpack.c.b16 %v3161, %v3157
    %v3218 = vpack.c.b16 %v3162, %v3158
    %v3219 = vpack.c.b16 %v3163, %v3159
    %v3220 = vpack.c.b16 %v3168, %v3164
    %v3221 = vpack.c.b16 %v3169, %v3165
    %v3222 = vpack.c.b16 %v3170, %v3166
    %v3223 = vpack.c.b16 %v3171, %v3167
    %v3224 = vpack.c.b16 %v3176, %v3172
    %v3225 = vpack.c.b16 %v3177, %v3173
    %v3226 = vpack.c.b16 %v3178, %v3174
    %v3227 = vpack.c.b16 %v3179, %v3175
    %v3228 = vpack.c.b16 %v3184, %v3180
    %v3229 = vpack.c.b16 %v3185, %v3181
    %v3230 = vpack.c.b16 %v3186, %v3182
    %v3231 = vpack.c.b16 %v3187, %v3183
    %v3232 = vpack.c.b16 %v3192, %v3188
    %v3233 = vpack.c.b16 %v3193, %v3189
    %v3234 = vpack.c.b16 %v3194, %v3190
    %v3235 = vpack.c.b16 %v3195, %v3191
    %v3236 = vpack.c.b16 %v3200, %v3196
    %v3237 = vpack.c.b16 %v3201, %v3197
    %v3238 = vpack.c.b16 %v3202, %v3198
    %v3239 = vpack.c.b16 %v3203, %v3199
    %v3240 = vpack.c.b16 %v3208, %v3204
    %v3241 = vpack.c.b16 %v3209, %v3205
    %v3242 = vpack.c.b16 %v3210, %v3206
    %v3243 = vpack.c.b16 %v3211, %v3207
    %3276 = vmatprep.subr.bf16.mxu0 %v3241
    %3277 = vmatpush1.bf16.msra.mxu0 %v3240
    %3278 = vmatprep.subr.bf16.mxu0 %v3237
    %3279 = vmatpush1.bf16.msra.mxu0 %v3236
    %3280 = vmatprep.subr.bf16.mxu0 %v3233
    %3281 = vmatpush1.bf16.msra.mxu0 %v3232
    %3282 = vmatprep.subr.bf16.mxu0 %v3229
    %3283 = vmatpush1.bf16.msra.mxu0 %v3228
    %3284 = vmatprep.subr.bf16.mxu0 %v3225
    %3285 = vmatpush1.bf16.msra.mxu0 %v3224
    %3286 = vmatprep.subr.bf16.mxu0 %v3221
    %3287 = vmatpush1.bf16.msra.mxu0 %v3220
    %3288 = vmatprep.subr.bf16.mxu0 %v3217
    %3289 = vmatpush1.bf16.msra.mxu0 %v3216
    %3290 = vmatprep.subr.bf16.mxu0 %v3213
    %3291 = vmatpush1.bf16.msra.mxu0 %v3212
    %3292 = vmatprep.subr.bf16.mxu0 0
    %3293 = vmatpush2.bf16.msra.mxu0 0
    %3294 = vmatprep.subr.bf16.mxu0 0
    %3295 = vmatpush2.bf16.msra.mxu0 0
    %3296 = vmatprep.subr.bf16.mxu0 0
    %3297 = vmatpush2.bf16.msra.mxu0 0
    %3298 = vmatprep.subr.bf16.mxu0 0
    %3299 = vmatpush2.bf16.msra.mxu0 0
    %3300 = vmatprep.subr.bf16.mxu0 0
    %3301 = vmatpush2.bf16.msra.mxu0 0
    %3302 = vmatprep.subr.bf16.mxu0 0
    %3303 = vmatpush2.bf16.msra.mxu0 0
    %3304 = vmatprep.subr.bf16.mxu0 0
    %3305 = vmatpush2.bf16.msra.mxu0 0
    %3306 = vmatprep.subr.bf16.mxu0 0
    %3307 = vmatpush2.bf16.msra.mxu0 0
    %3308 = vmatprep.mubr.bf16.mxu0 0
    %3309 = vmatmul.mubr.bf16.gmra.mxu0 %v2586
    %v3310 = vpop.f32.mrf.mxu0
    %v3311 = vadd.f32 %v3099, %v3310
    %v3312 = vpop.f32.mrf.mxu0
    %v3313 = vadd.f32 %v3103, %v3312
    %v3314 = vpop.f32.mrf.mxu0
    %v3315 = vadd.f32 %v3099, %v3314
    %v3316 = vpop.f32.mrf.mxu0
    %v3317 = vadd.f32 %v3103, %v3316
    %3318 = vmatprep.mubr.bf16.mxu0 0
    %3319 = vmatmul.mubr.bf16.gmra.mxu0 %v2587
    %v3320 = vpop.f32.mrf.mxu0
    %v3321 = vadd.f32 %v3099, %v3320
    %v3322 = vpop.f32.mrf.mxu0
    %v3323 = vadd.f32 %v3103, %v3322
    %v3324 = vpop.f32.mrf.mxu0
    %v3325 = vadd.f32 %v3099, %v3324
    %v3326 = vpop.f32.mrf.mxu0
    %v3327 = vadd.f32 %v3103, %v3326
    %3328 = vmatprep.mubr.bf16.mxu0 0
    %3329 = vmatmul.mubr.bf16.gmra.mxu0 %v2588
    %v3330 = vpop.f32.mrf.mxu0
    %v3331 = vadd.f32 %v3099, %v3330
    %v3332 = vpop.f32.mrf.mxu0
    %v3333 = vadd.f32 %v3103, %v3332
    %v3334 = vpop.f32.mrf.mxu0
    %v3335 = vadd.f32 %v3099, %v3334
    %v3336 = vpop.f32.mrf.mxu0
    %v3337 = vadd.f32 %v3103, %v3336
    %3338 = vmatprep.mubr.bf16.mxu0 0
    %3339 = vmatmul.mubr.bf16.gmra.mxu0 %v2589
    %v3340 = vpop.f32.mrf.mxu0
    %v3341 = vadd.f32 %v3099, %v3340
    %v3342 = vpop.f32.mrf.mxu0
    %v3343 = vadd.f32 %v3103, %v3342
    %v3344 = vpop.f32.mrf.mxu0
    %v3345 = vadd.f32 %v3099, %v3344
    %v3346 = vpop.f32.mrf.mxu0
    %v3347 = vadd.f32 %v3103, %v3346
    %3348 = vdwg.mxu0
    %3349 = vmatprep.subr.bf16.mxu0 %v3243
    %3350 = vmatpush1.bf16.msra.mxu0 %v3242
    %3351 = vmatprep.subr.bf16.mxu0 %v3239
    %3352 = vmatpush1.bf16.msra.mxu0 %v3238
    %3353 = vmatprep.subr.bf16.mxu0 %v3235
    %3354 = vmatpush1.bf16.msra.mxu0 %v3234
    %3355 = vmatprep.subr.bf16.mxu0 %v3231
    %3356 = vmatpush1.bf16.msra.mxu0 %v3230
    %3357 = vmatprep.subr.bf16.mxu0 %v3227
    %3358 = vmatpush1.bf16.msra.mxu0 %v3226
    %3359 = vmatprep.subr.bf16.mxu0 %v3223
    %3360 = vmatpush1.bf16.msra.mxu0 %v3222
    %3361 = vmatprep.subr.bf16.mxu0 %v3219
    %3362 = vmatpush1.bf16.msra.mxu0 %v3218
    %3363 = vmatprep.subr.bf16.mxu0 %v3215
    %3364 = vmatpush1.bf16.msra.mxu0 %v3214
    %3365 = vmatprep.subr.bf16.mxu0 0
    %3366 = vmatpush2.bf16.msra.mxu0 0
    %3367 = vmatprep.subr.bf16.mxu0 0
    %3368 = vmatpush2.bf16.msra.mxu0 0
    %3369 = vmatprep.subr.bf16.mxu0 0
    %3370 = vmatpush2.bf16.msra.mxu0 0
    %3371 = vmatprep.subr.bf16.mxu0 0
    %3372 = vmatpush2.bf16.msra.mxu0 0
    %3373 = vmatprep.subr.bf16.mxu0 0
    %3374 = vmatpush2.bf16.msra.mxu0 0
    %3375 = vmatprep.subr.bf16.mxu0 0
    %3376 = vmatpush2.bf16.msra.mxu0 0
    %3377 = vmatprep.subr.bf16.mxu0 0
    %3378 = vmatpush2.bf16.msra.mxu0 0
    %3379 = vmatprep.subr.bf16.mxu0 0
    %3380 = vmatpush2.bf16.msra.mxu0 0
    %3381 = vmatprep.mubr.bf16.mxu0 0
    %3382 = vmatmul.mubr.bf16.gmra.mxu0 %v2586
    %v3383 = vpop.f32.mrf.mxu0
    %v3384 = vadd.f32 %v3107, %v3383
    %v3385 = vpop.f32.mrf.mxu0
    %v3386 = vadd.f32 %v3111, %v3385
    %v3387 = vpop.f32.mrf.mxu0
    %v3388 = vadd.f32 %v3107, %v3387
    %v3389 = vpop.f32.mrf.mxu0
    %v3390 = vadd.f32 %v3111, %v3389
    %3391 = vmatprep.mubr.bf16.mxu0 0
    %3392 = vmatmul.mubr.bf16.gmra.mxu0 %v2587
    %v3393 = vpop.f32.mrf.mxu0
    %v3394 = vadd.f32 %v3107, %v3393
    %v3395 = vpop.f32.mrf.mxu0
    %v3396 = vadd.f32 %v3111, %v3395
    %v3397 = vpop.f32.mrf.mxu0
    %v3398 = vadd.f32 %v3107, %v3397
    %v3399 = vpop.f32.mrf.mxu0
    %v3400 = vadd.f32 %v3111, %v3399
    %3401 = vmatprep.mubr.bf16.mxu0 0
    %3402 = vmatmul.mubr.bf16.gmra.mxu0 %v2588
    %v3403 = vpop.f32.mrf.mxu0
    %v3404 = vadd.f32 %v3107, %v3403
    %v3405 = vpop.f32.mrf.mxu0
    %v3406 = vadd.f32 %v3111, %v3405
    %v3407 = vpop.f32.mrf.mxu0
    %v3408 = vadd.f32 %v3107, %v3407
    %v3409 = vpop.f32.mrf.mxu0
    %v3410 = vadd.f32 %v3111, %v3409
    %3411 = vmatprep.mubr.bf16.mxu0 0
    %3412 = vmatmul.mubr.bf16.gmra.mxu0 %v2589
    %v3413 = vpop.f32.mrf.mxu0
    %v3414 = vadd.f32 %v3107, %v3413
    %v3415 = vpop.f32.mrf.mxu0
    %v3416 = vadd.f32 %v3111, %v3415
    %v3417 = vpop.f32.mrf.mxu0
    %v3418 = vadd.f32 %v3107, %v3417
    %v3419 = vpop.f32.mrf.mxu0
    %v3420 = vadd.f32 %v3111, %v3419
    %3421 = vdwg.mxu0
    %v3422 = vmax.f32 %v3311, 0.0
    %v3423 = vmax.f32 %v3313, 0.0
    %v3424 = vmax.f32 %v3384, 0.0
    %v3425 = vmax.f32 %v3386, 0.0
    %v3426 = vmax.f32 %v3315, 0.0
    %v3427 = vmax.f32 %v3317, 0.0
    %v3428 = vmax.f32 %v3388, 0.0
    %v3429 = vmax.f32 %v3390, 0.0
    %v3430 = vmax.f32 %v3321, 0.0
    %v3431 = vmax.f32 %v3323, 0.0
    %v3432 = vmax.f32 %v3394, 0.0
    %v3433 = vmax.f32 %v3396, 0.0
    %v3434 = vmax.f32 %v3325, 0.0
    %v3435 = vmax.f32 %v3327, 0.0
    %v3436 = vmax.f32 %v3398, 0.0
    %v3437 = vmax.f32 %v3400, 0.0
    %v3438 = vmax.f32 %v3331, 0.0
    %v3439 = vmax.f32 %v3333, 0.0
    %v3440 = vmax.f32 %v3404, 0.0
    %v3441 = vmax.f32 %v3406, 0.0
    %v3442 = vmax.f32 %v3335, 0.0
    %v3443 = vmax.f32 %v3337, 0.0
    %v3444 = vmax.f32 %v3408, 0.0
    %v3445 = vmax.f32 %v3410, 0.0
    %v3446 = vmax.f32 %v3341, 0.0
    %v3447 = vmax.f32 %v3343, 0.0
    %v3448 = vmax.f32 %v3414, 0.0
    %v3449 = vmax.f32 %v3416, 0.0
    %v3450 = vmax.f32 %v3345, 0.0
    %v3451 = vmax.f32 %v3347, 0.0
    %v3452 = vmax.f32 %v3418, 0.0
    %v3453 = vmax.f32 %v3420, 0.0
    %v3454 = vpack.c.bf16 %v3426, %v3422
    %v3455 = vpack.c.bf16 %v3427, %v3423
    %v3456 = vpack.c.bf16 %v3428, %v3424
    %v3457 = vpack.c.bf16 %v3429, %v3425
    %v3458 = vpack.c.bf16 %v3434, %v3430
    %v3459 = vpack.c.bf16 %v3435, %v3431
    %v3460 = vpack.c.bf16 %v3436, %v3432
    %v3461 = vpack.c.bf16 %v3437, %v3433
    %v3462 = vpack.c.bf16 %v3442, %v3438
    %v3463 = vpack.c.bf16 %v3443, %v3439
    %v3464 = vpack.c.bf16 %v3444, %v3440
    %v3465 = vpack.c.bf16 %v3445, %v3441
    %v3466 = vpack.c.bf16 %v3450, %v3446
    %v3467 = vpack.c.bf16 %v3451, %v3447
    %v3468 = vpack.c.bf16 %v3452, %v3448
    %v3469 = vpack.c.bf16 %v3453, %v3449
    %v3470 = vld [vmem:[#allocation9 + $0x100] sm:$0xf]
    %v3471 = vld [vmem:[#allocation9 + $0x104] sm:$0xf]
    %v3472 = vld [vmem:[#allocation9 + $0x108] sm:$0xf]
    %v3473 = vld [vmem:[#allocation9 + $0x10c] sm:$0xf]
    %v3474 = vld [vmem:[#allocation9 + $0x110] sm:$0xf]
    %v3475 = vld [vmem:[#allocation9 + $0x114] sm:$0xf]
    %v3476 = vld [vmem:[#allocation9 + $0x118] sm:$0xf]
    %v3477 = vld [vmem:[#allocation9 + $0x11c] sm:$0xf]
    %v3478 = vld [vmem:[#allocation9 + $0x120] sm:$0xf]
    %v3479 = vld [vmem:[#allocation9 + $0x124] sm:$0xf]
    %v3480 = vld [vmem:[#allocation9 + $0x128] sm:$0xf]
    %v3481 = vld [vmem:[#allocation9 + $0x12c] sm:$0xf]
    %v3482 = vld [vmem:[#allocation9 + $0x130] sm:$0xf]
    %v3483 = vld [vmem:[#allocation9 + $0x134] sm:$0xf]
    %v3484 = vld [vmem:[#allocation9 + $0x138] sm:$0xf]
    %v3485 = vld [vmem:[#allocation9 + $0x13c] sm:$0xf]
    %v3486 = vld [vmem:[#allocation9 + $0x140] sm:$0xf]
    %v3487 = vld [vmem:[#allocation9 + $0x144] sm:$0xf]
    %v3488 = vld [vmem:[#allocation9 + $0x148] sm:$0xf]
    %v3489 = vld [vmem:[#allocation9 + $0x14c] sm:$0xf]
    %v3490 = vld [vmem:[#allocation9 + $0x150] sm:$0xf]
    %v3491 = vld [vmem:[#allocation9 + $0x154] sm:$0xf]
    %v3492 = vld [vmem:[#allocation9 + $0x158] sm:$0xf]
    %v3493 = vld [vmem:[#allocation9 + $0x15c] sm:$0xf]
    %v3494 = vld [vmem:[#allocation9 + $0x160] sm:$0xf]
    %v3495 = vld [vmem:[#allocation9 + $0x164] sm:$0xf]
    %v3496 = vld [vmem:[#allocation9 + $0x168] sm:$0xf]
    %v3497 = vld [vmem:[#allocation9 + $0x16c] sm:$0xf]
    %v3498 = vld [vmem:[#allocation9 + $0x170] sm:$0xf]
    %v3499 = vld [vmem:[#allocation9 + $0x174] sm:$0xf]
    %v3500 = vld [vmem:[#allocation9 + $0x178] sm:$0xf]
    %v3501 = vld [vmem:[#allocation9 + $0x17c] sm:$0xf]
    %v3502 = vld [vmem:[#allocation9 + $0x180] sm:$0xf]
    %v3503 = vld [vmem:[#allocation9 + $0x184] sm:$0xf]
    %v3504 = vld [vmem:[#allocation9 + $0x188] sm:$0xf]
    %v3505 = vld [vmem:[#allocation9 + $0x18c] sm:$0xf]
    %v3506 = vld [vmem:[#allocation9 + $0x190] sm:$0xf]
    %v3507 = vld [vmem:[#allocation9 + $0x194] sm:$0xf]
    %v3508 = vld [vmem:[#allocation9 + $0x198] sm:$0xf]
    %v3509 = vld [vmem:[#allocation9 + $0x19c] sm:$0xf]
    %v3510 = vld [vmem:[#allocation9 + $0x1a0] sm:$0xf]
    %v3511 = vld [vmem:[#allocation9 + $0x1a4] sm:$0xf]
    %v3512 = vld [vmem:[#allocation9 + $0x1a8] sm:$0xf]
    %v3513 = vld [vmem:[#allocation9 + $0x1ac] sm:$0xf]
    %v3514 = vld [vmem:[#allocation9 + $0x1b0] sm:$0xf]
    %v3515 = vld [vmem:[#allocation9 + $0x1b4] sm:$0xf]
    %v3516 = vld [vmem:[#allocation9 + $0x1b8] sm:$0xf]
    %v3517 = vld [vmem:[#allocation9 + $0x1bc] sm:$0xf]
    %v3518 = vld [vmem:[#allocation9 + $0x1c0] sm:$0xf]
    %v3519 = vld [vmem:[#allocation9 + $0x1c4] sm:$0xf]
    %v3520 = vld [vmem:[#allocation9 + $0x1c8] sm:$0xf]
    %v3521 = vld [vmem:[#allocation9 + $0x1cc] sm:$0xf]
    %v3522 = vld [vmem:[#allocation9 + $0x1d0] sm:$0xf]
    %v3523 = vld [vmem:[#allocation9 + $0x1d4] sm:$0xf]
    %v3524 = vld [vmem:[#allocation9 + $0x1d8] sm:$0xf]
    %v3525 = vld [vmem:[#allocation9 + $0x1dc] sm:$0xf]
    %v3526 = vld [vmem:[#allocation9 + $0x1e0] sm:$0xf]
    %v3527 = vld [vmem:[#allocation9 + $0x1e4] sm:$0xf]
    %v3528 = vld [vmem:[#allocation9 + $0x1e8] sm:$0xf]
    %v3529 = vld [vmem:[#allocation9 + $0x1ec] sm:$0xf]
    %v3530 = vld [vmem:[#allocation9 + $0x1f0] sm:$0xf]
    %v3531 = vld [vmem:[#allocation9 + $0x1f4] sm:$0xf]
    %v3532 = vld [vmem:[#allocation9 + $0x1f8] sm:$0xf]
    %v3533 = vld [vmem:[#allocation9 + $0x1fc] sm:$0xf]
    %v3598 = vunpack.c.l.b16 %v3470
    %v3599 = vunpack.c.l.b16 %v3471
    %v3600 = vunpack.c.l.b16 %v3472
    %v3601 = vunpack.c.l.b16 %v3473
    %v3602 = vunpack.c.l.b16 %v3474
    %v3603 = vunpack.c.l.b16 %v3475
    %v3604 = vunpack.c.l.b16 %v3476
    %v3605 = vunpack.c.l.b16 %v3477
    %v3606 = vunpack.c.l.b16 %v3478
    %v3607 = vunpack.c.l.b16 %v3479
    %v3608 = vunpack.c.l.b16 %v3480
    %v3609 = vunpack.c.l.b16 %v3481
    %v3610 = vunpack.c.l.b16 %v3482
    %v3611 = vunpack.c.l.b16 %v3483
    %v3612 = vunpack.c.l.b16 %v3484
    %v3613 = vunpack.c.l.b16 %v3485
    %v3614 = vunpack.c.l.b16 %v3486
    %v3615 = vunpack.c.l.b16 %v3487
    %v3616 = vunpack.c.l.b16 %v3488
    %v3617 = vunpack.c.l.b16 %v3489
    %v3618 = vunpack.c.l.b16 %v3490
    %v3619 = vunpack.c.l.b16 %v3491
    %v3620 = vunpack.c.l.b16 %v3492
    %v3621 = vunpack.c.l.b16 %v3493
    %v3622 = vunpack.c.l.b16 %v3494
    %v3623 = vunpack.c.l.b16 %v3495
    %v3624 = vunpack.c.l.b16 %v3496
    %v3625 = vunpack.c.l.b16 %v3497
    %v3626 = vunpack.c.l.b16 %v3498
    %v3627 = vunpack.c.l.b16 %v3499
    %v3628 = vunpack.c.l.b16 %v3500
    %v3629 = vunpack.c.l.b16 %v3501
    %v3630 = vunpack.c.l.b16 %v3502
    %v3631 = vunpack.c.l.b16 %v3503
    %v3632 = vunpack.c.l.b16 %v3504
    %v3633 = vunpack.c.l.b16 %v3505
    %v3634 = vunpack.c.l.b16 %v3506
    %v3635 = vunpack.c.l.b16 %v3507
    %v3636 = vunpack.c.l.b16 %v3508
    %v3637 = vunpack.c.l.b16 %v3509
    %v3638 = vunpack.c.l.b16 %v3510
    %v3639 = vunpack.c.l.b16 %v3511
    %v3640 = vunpack.c.l.b16 %v3512
    %v3641 = vunpack.c.l.b16 %v3513
    %v3642 = vunpack.c.l.b16 %v3514
    %v3643 = vunpack.c.l.b16 %v3515
    %v3644 = vunpack.c.l.b16 %v3516
    %v3645 = vunpack.c.l.b16 %v3517
    %v3646 = vunpack.c.l.b16 %v3518
    %v3647 = vunpack.c.l.b16 %v3519
    %v3648 = vunpack.c.l.b16 %v3520
    %v3649 = vunpack.c.l.b16 %v3521
    %v3650 = vunpack.c.l.b16 %v3522
    %v3651 = vunpack.c.l.b16 %v3523
    %v3652 = vunpack.c.l.b16 %v3524
    %v3653 = vunpack.c.l.b16 %v3525
    %v3654 = vunpack.c.l.b16 %v3526
    %v3655 = vunpack.c.l.b16 %v3527
    %v3656 = vunpack.c.l.b16 %v3528
    %v3657 = vunpack.c.l.b16 %v3529
    %v3658 = vunpack.c.l.b16 %v3530
    %v3659 = vunpack.c.l.b16 %v3531
    %v3660 = vunpack.c.l.b16 %v3532
    %v3661 = vunpack.c.l.b16 %v3533
    %v3662 = vpack.c.b16 %v3599, %v3598
    %v3663 = vpack.c.b16 %v3601, %v3600
    %v3664 = vpack.c.b16 %v3603, %v3602
    %v3665 = vpack.c.b16 %v3605, %v3604
    %v3666 = vpack.c.b16 %v3607, %v3606
    %v3667 = vpack.c.b16 %v3609, %v3608
    %v3668 = vpack.c.b16 %v3611, %v3610
    %v3669 = vpack.c.b16 %v3613, %v3612
    %v3670 = vpack.c.b16 %v3615, %v3614
    %v3671 = vpack.c.b16 %v3617, %v3616
    %v3672 = vpack.c.b16 %v3619, %v3618
    %v3673 = vpack.c.b16 %v3621, %v3620
    %v3674 = vpack.c.b16 %v3623, %v3622
    %v3675 = vpack.c.b16 %v3625, %v3624
    %v3676 = vpack.c.b16 %v3627, %v3626
    %v3677 = vpack.c.b16 %v3629, %v3628
    %v3678 = vpack.c.b16 %v3631, %v3630
    %v3679 = vpack.c.b16 %v3633, %v3632
    %v3680 = vpack.c.b16 %v3635, %v3634
    %v3681 = vpack.c.b16 %v3637, %v3636
    %v3682 = vpack.c.b16 %v3639, %v3638
    %v3683 = vpack.c.b16 %v3641, %v3640
    %v3684 = vpack.c.b16 %v3643, %v3642
    %v3685 = vpack.c.b16 %v3645, %v3644
    %v3686 = vpack.c.b16 %v3647, %v3646
    %v3687 = vpack.c.b16 %v3649, %v3648
    %v3688 = vpack.c.b16 %v3651, %v3650
    %v3689 = vpack.c.b16 %v3653, %v3652
    %v3690 = vpack.c.b16 %v3655, %v3654
    %v3691 = vpack.c.b16 %v3657, %v3656
    %v3692 = vpack.c.b16 %v3659, %v3658
    %v3693 = vpack.c.b16 %v3661, %v3660
    %3726 = vmatprep.subr.bf16.mxu0 0
    %3727 = vmatpush1.bf16.msra.mxu0 %v3669
    %3728 = vmatprep.subr.bf16.mxu0 0
    %3729 = vmatpush1.bf16.msra.mxu0 %v3668
    %3730 = vmatprep.subr.bf16.mxu0 0
    %3731 = vmatpush1.bf16.msra.mxu0 %v3667
    %3732 = vmatprep.subr.bf16.mxu0 0
    %3733 = vmatpush1.bf16.msra.mxu0 %v3666
    %3734 = vmatprep.subr.bf16.mxu0 0
    %3735 = vmatpush1.bf16.msra.mxu0 %v3665
    %3736 = vmatprep.subr.bf16.mxu0 0
    %3737 = vmatpush1.bf16.msra.mxu0 %v3664
    %3738 = vmatprep.subr.bf16.mxu0 0
    %3739 = vmatpush1.bf16.msra.mxu0 %v3663
    %3740 = vmatprep.subr.bf16.mxu0 0
    %3741 = vmatpush1.bf16.msra.mxu0 %v3662
    %3742 = vmatprep.subr.bf16.mxu0 0
    %3743 = vmatpush2.bf16.msra.mxu0 %v3677
    %3744 = vmatprep.subr.bf16.mxu0 0
    %3745 = vmatpush2.bf16.msra.mxu0 %v3676
    %3746 = vmatprep.subr.bf16.mxu0 0
    %3747 = vmatpush2.bf16.msra.mxu0 %v3675
    %3748 = vmatprep.subr.bf16.mxu0 0
    %3749 = vmatpush2.bf16.msra.mxu0 %v3674
    %3750 = vmatprep.subr.bf16.mxu0 0
    %3751 = vmatpush2.bf16.msra.mxu0 %v3673
    %3752 = vmatprep.subr.bf16.mxu0 0
    %3753 = vmatpush2.bf16.msra.mxu0 %v3672
    %3754 = vmatprep.subr.bf16.mxu0 0
    %3755 = vmatpush2.bf16.msra.mxu0 %v3671
    %3756 = vmatprep.subr.bf16.mxu0 0
    %3757 = vmatpush2.bf16.msra.mxu0 %v3670
    %3758 = vmatprep.mubr.bf16.mxu0 %v3455
    %3759 = vmatmul.mubr.bf16.gmra.mxu0 %v3454
    %v3760 = vpop.f32.mrf.mxu0
    %v3761 = vadd.f32 0.0, %v3760
    %v3762 = vpop.f32.mrf.mxu0
    %v3763 = vpop.f32.mrf.mxu0
    %v3764 = vadd.f32 0.0, %v3763
    %v3765 = vpop.f32.mrf.mxu0
    %3766 = vmatprep.mubr.bf16.mxu0 %v3459
    %3767 = vmatmul.mubr.bf16.gmra.mxu0 %v3458
    %v3768 = vpop.f32.mrf.mxu0
    %v3769 = vadd.f32 0.0, %v3768
    %v3770 = vpop.f32.mrf.mxu0
    %v3771 = vpop.f32.mrf.mxu0
    %v3772 = vadd.f32 0.0, %v3771
    %v3773 = vpop.f32.mrf.mxu0
    %3774 = vmatprep.mubr.bf16.mxu0 %v3463
    %3775 = vmatmul.mubr.bf16.gmra.mxu0 %v3462
    %v3776 = vpop.f32.mrf.mxu0
    %v3777 = vadd.f32 0.0, %v3776
    %v3778 = vpop.f32.mrf.mxu0
    %v3779 = vpop.f32.mrf.mxu0
    %v3780 = vadd.f32 0.0, %v3779
    %v3781 = vpop.f32.mrf.mxu0
    %3782 = vmatprep.mubr.bf16.mxu0 %v3467
    %3783 = vmatmul.mubr.bf16.gmra.mxu0 %v3466
    %v3784 = vpop.f32.mrf.mxu0
    %v3785 = vadd.f32 0.0, %v3784
    %v3786 = vpop.f32.mrf.mxu0
    %v3787 = vpop.f32.mrf.mxu0
    %v3788 = vadd.f32 0.0, %v3787
    %v3789 = vpop.f32.mrf.mxu0
    %3790 = vdwg.mxu0
    %3791 = vmatprep.subr.bf16.mxu0 0
    %3792 = vmatpush1.bf16.msra.mxu0 %v3685
    %3793 = vmatprep.subr.bf16.mxu0 0
    %3794 = vmatpush1.bf16.msra.mxu0 %v3684
    %3795 = vmatprep.subr.bf16.mxu0 0
    %3796 = vmatpush1.bf16.msra.mxu0 %v3683
    %3797 = vmatprep.subr.bf16.mxu0 0
    %3798 = vmatpush1.bf16.msra.mxu0 %v3682
    %3799 = vmatprep.subr.bf16.mxu0 0
    %3800 = vmatpush1.bf16.msra.mxu0 %v3681
    %3801 = vmatprep.subr.bf16.mxu0 0
    %3802 = vmatpush1.bf16.msra.mxu0 %v3680
    %3803 = vmatprep.subr.bf16.mxu0 0
    %3804 = vmatpush1.bf16.msra.mxu0 %v3679
    %3805 = vmatprep.subr.bf16.mxu0 0
    %3806 = vmatpush1.bf16.msra.mxu0 %v3678
    %3807 = vmatprep.subr.bf16.mxu0 0
    %3808 = vmatpush2.bf16.msra.mxu0 %v3693
    %3809 = vmatprep.subr.bf16.mxu0 0
    %3810 = vmatpush2.bf16.msra.mxu0 %v3692
    %3811 = vmatprep.subr.bf16.mxu0 0
    %3812 = vmatpush2.bf16.msra.mxu0 %v3691
    %3813 = vmatprep.subr.bf16.mxu0 0
    %3814 = vmatpush2.bf16.msra.mxu0 %v3690
    %3815 = vmatprep.subr.bf16.mxu0 0
    %3816 = vmatpush2.bf16.msra.mxu0 %v3689
    %3817 = vmatprep.subr.bf16.mxu0 0
    %3818 = vmatpush2.bf16.msra.mxu0 %v3688
    %3819 = vmatprep.subr.bf16.mxu0 0
    %3820 = vmatpush2.bf16.msra.mxu0 %v3687
    %3821 = vmatprep.subr.bf16.mxu0 0
    %3822 = vmatpush2.bf16.msra.mxu0 %v3686
    %3823 = vmatprep.mubr.bf16.mxu0 %v3457
    %3824 = vmatmul.mubr.bf16.gmra.mxu0 %v3456
    %v3825 = vpop.f32.mrf.mxu0
    %v3826 = vadd.f32 %v3761, %v3825
    %v3827 = vpop.f32.mrf.mxu0
    %v3828 = vpop.f32.mrf.mxu0
    %v3829 = vadd.f32 %v3764, %v3828
    %v3830 = vpop.f32.mrf.mxu0
    %3831 = vmatprep.mubr.bf16.mxu0 %v3461
    %3832 = vmatmul.mubr.bf16.gmra.mxu0 %v3460
    %v3833 = vpop.f32.mrf.mxu0
    %v3834 = vadd.f32 %v3769, %v3833
    %v3835 = vpop.f32.mrf.mxu0
    %v3836 = vpop.f32.mrf.mxu0
    %v3837 = vadd.f32 %v3772, %v3836
    %v3838 = vpop.f32.mrf.mxu0
    %3839 = vmatprep.mubr.bf16.mxu0 %v3465
    %3840 = vmatmul.mubr.bf16.gmra.mxu0 %v3464
    %v3841 = vpop.f32.mrf.mxu0
    %v3842 = vadd.f32 %v3777, %v3841
    %v3843 = vpop.f32.mrf.mxu0
    %v3844 = vpop.f32.mrf.mxu0
    %v3845 = vadd.f32 %v3780, %v3844
    %v3846 = vpop.f32.mrf.mxu0
    %3847 = vmatprep.mubr.bf16.mxu0 %v3469
    %3848 = vmatmul.mubr.bf16.gmra.mxu0 %v3468
    %v3849 = vpop.f32.mrf.mxu0
    %v3850 = vadd.f32 %v3785, %v3849
    %v3851 = vpop.f32.mrf.mxu0
    %v3852 = vpop.f32.mrf.mxu0
    %v3853 = vadd.f32 %v3788, %v3852
    %v3854 = vpop.f32.mrf.mxu0
    %3855 = vdwg.mxu0
    %v3920 = vunpack.c.l.b16 %v2998
    %v3921 = vunpack.c.l.b16 %v2999
    %v3922 = vunpack.c.l.b16 %v3000
    %v3923 = vunpack.c.l.b16 %v3001
    %v3924 = vunpack.c.l.b16 %v3002
    %v3925 = vunpack.c.l.b16 %v3003
    %v3926 = vunpack.c.l.b16 %v3004
    %v3927 = vunpack.c.l.b16 %v3005
    %v3928 = vunpack.c.l.b16 %v3006
    %v3929 = vunpack.c.l.b16 %v3007
    %v3930 = vunpack.c.l.b16 %v3008
    %v3931 = vunpack.c.l.b16 %v3009
    %v3932 = vunpack.c.l.b16 %v3010
    %v3933 = vunpack.c.l.b16 %v3011
    %v3934 = vunpack.c.l.b16 %v3012
    %v3935 = vunpack.c.l.b16 %v3013
    %v3936 = vunpack.c.l.b16 %v3014
    %v3937 = vunpack.c.l.b16 %v3015
    %v3938 = vunpack.c.l.b16 %v3016
    %v3939 = vunpack.c.l.b16 %v3017
    %v3940 = vunpack.c.l.b16 %v3018
    %v3941 = vunpack.c.l.b16 %v3019
    %v3942 = vunpack.c.l.b16 %v3020
    %v3943 = vunpack.c.l.b16 %v3021
    %v3944 = vunpack.c.l.b16 %v3022
    %v3945 = vunpack.c.l.b16 %v3023
    %v3946 = vunpack.c.l.b16 %v3024
    %v3947 = vunpack.c.l.b16 %v3025
    %v3948 = vunpack.c.l.b16 %v3026
    %v3949 = vunpack.c.l.b16 %v3027
    %v3950 = vunpack.c.l.b16 %v3028
    %v3951 = vunpack.c.l.b16 %v3029
    %v3952 = vunpack.c.l.b16 %v3030
    %v3953 = vunpack.c.l.b16 %v3031
    %v3954 = vunpack.c.l.b16 %v3032
    %v3955 = vunpack.c.l.b16 %v3033
    %v3956 = vunpack.c.l.b16 %v3034
    %v3957 = vunpack.c.l.b16 %v3035
    %v3958 = vunpack.c.l.b16 %v3036
    %v3959 = vunpack.c.l.b16 %v3037
    %v3960 = vunpack.c.l.b16 %v3038
    %v3961 = vunpack.c.l.b16 %v3039
    %v3962 = vunpack.c.l.b16 %v3040
    %v3963 = vunpack.c.l.b16 %v3041
    %v3964 = vunpack.c.l.b16 %v3042
    %v3965 = vunpack.c.l.b16 %v3043
    %v3966 = vunpack.c.l.b16 %v3044
    %v3967 = vunpack.c.l.b16 %v3045
    %v3968 = vunpack.c.l.b16 %v3046
    %v3969 = vunpack.c.l.b16 %v3047
    %v3970 = vunpack.c.l.b16 %v3048
    %v3971 = vunpack.c.l.b16 %v3049
    %v3972 = vunpack.c.l.b16 %v3050
    %v3973 = vunpack.c.l.b16 %v3051
    %v3974 = vunpack.c.l.b16 %v3052
    %v3975 = vunpack.c.l.b16 %v3053
    %v3976 = vunpack.c.l.b16 %v3054
    %v3977 = vunpack.c.l.b16 %v3055
    %v3978 = vunpack.c.l.b16 %v3056
    %v3979 = vunpack.c.l.b16 %v3057
    %v3980 = vunpack.c.l.b16 %v3058
    %v3981 = vunpack.c.l.b16 %v3059
    %v3982 = vunpack.c.l.b16 %v3060
    %v3983 = vunpack.c.l.b16 %v3061
    %v3984 = vpack.c.b16 %v3921, %v3920
    %v3985 = vpack.c.b16 %v3923, %v3922
    %v3986 = vpack.c.b16 %v3925, %v3924
    %v3987 = vpack.c.b16 %v3927, %v3926
    %v3988 = vpack.c.b16 %v3929, %v3928
    %v3989 = vpack.c.b16 %v3931, %v3930
    %v3990 = vpack.c.b16 %v3933, %v3932
    %v3991 = vpack.c.b16 %v3935, %v3934
    %v3992 = vpack.c.b16 %v3937, %v3936
    %v3993 = vpack.c.b16 %v3939, %v3938
    %v3994 = vpack.c.b16 %v3941, %v3940
    %v3995 = vpack.c.b16 %v3943, %v3942
    %v3996 = vpack.c.b16 %v3945, %v3944
    %v3997 = vpack.c.b16 %v3947, %v3946
    %v3998 = vpack.c.b16 %v3949, %v3948
    %v3999 = vpack.c.b16 %v3951, %v3950
    %v4000 = vpack.c.b16 %v3953, %v3952
    %v4001 = vpack.c.b16 %v3955, %v3954
    %v4002 = vpack.c.b16 %v3957, %v3956
    %v4003 = vpack.c.b16 %v3959, %v3958
    %v4004 = vpack.c.b16 %v3961, %v3960
    %v4005 = vpack.c.b16 %v3963, %v3962
    %v4006 = vpack.c.b16 %v3965, %v3964
    %v4007 = vpack.c.b16 %v3967, %v3966
    %v4008 = vpack.c.b16 %v3969, %v3968
    %v4009 = vpack.c.b16 %v3971, %v3970
    %v4010 = vpack.c.b16 %v3973, %v3972
    %v4011 = vpack.c.b16 %v3975, %v3974
    %v4012 = vpack.c.b16 %v3977, %v3976
    %v4013 = vpack.c.b16 %v3979, %v3978
    %v4014 = vpack.c.b16 %v3981, %v3980
    %v4015 = vpack.c.b16 %v3983, %v3982
    %4048 = vmatprep.subr.bf16.mxu0 0
    %4049 = vmatpush1.bf16.msra.mxu0 %v3991
    %4050 = vmatprep.subr.bf16.mxu0 0
    %4051 = vmatpush1.bf16.msra.mxu0 %v3990
    %4052 = vmatprep.subr.bf16.mxu0 0
    %4053 = vmatpush1.bf16.msra.mxu0 %v3989
    %4054 = vmatprep.subr.bf16.mxu0 0
    %4055 = vmatpush1.bf16.msra.mxu0 %v3988
    %4056 = vmatprep.subr.bf16.mxu0 0
    %4057 = vmatpush1.bf16.msra.mxu0 %v3987
    %4058 = vmatprep.subr.bf16.mxu0 0
    %4059 = vmatpush1.bf16.msra.mxu0 %v3986
    %4060 = vmatprep.subr.bf16.mxu0 0
    %4061 = vmatpush1.bf16.msra.mxu0 %v3985
    %4062 = vmatprep.subr.bf16.mxu0 0
    %4063 = vmatpush1.bf16.msra.mxu0 %v3984
    %4064 = vmatprep.subr.bf16.mxu0 0
    %4065 = vmatpush2.bf16.msra.mxu0 %v3999
    %4066 = vmatprep.subr.bf16.mxu0 0
    %4067 = vmatpush2.bf16.msra.mxu0 %v3998
    %4068 = vmatprep.subr.bf16.mxu0 0
    %4069 = vmatpush2.bf16.msra.mxu0 %v3997
    %4070 = vmatprep.subr.bf16.mxu0 0
    %4071 = vmatpush2.bf16.msra.mxu0 %v3996
    %4072 = vmatprep.subr.bf16.mxu0 0
    %4073 = vmatpush2.bf16.msra.mxu0 %v3995
    %4074 = vmatprep.subr.bf16.mxu0 0
    %4075 = vmatpush2.bf16.msra.mxu0 %v3994
    %4076 = vmatprep.subr.bf16.mxu0 0
    %4077 = vmatpush2.bf16.msra.mxu0 %v3993
    %4078 = vmatprep.subr.bf16.mxu0 0
    %4079 = vmatpush2.bf16.msra.mxu0 %v3992
    %4080 = vmatprep.mubr.bf16.mxu0 %v2983
    %4081 = vmatmul.mubr.bf16.gmra.mxu0 %v2982
    %v4082 = vpop.f32.mrf.mxu0
    %v4083 = vadd.f32 %v3826, %v4082
    %v4084 = vpop.f32.mrf.mxu0
    %v4085 = vpop.f32.mrf.mxu0
    %v4086 = vadd.f32 %v3829, %v4085
    %v4087 = vpop.f32.mrf.mxu0
    %4088 = vmatprep.mubr.bf16.mxu0 %v2987
    %4089 = vmatmul.mubr.bf16.gmra.mxu0 %v2986
    %v4090 = vpop.f32.mrf.mxu0
    %v4091 = vadd.f32 %v3834, %v4090
    %v4092 = vpop.f32.mrf.mxu0
    %v4093 = vpop.f32.mrf.mxu0
    %v4094 = vadd.f32 %v3837, %v4093
    %v4095 = vpop.f32.mrf.mxu0
    %4096 = vmatprep.mubr.bf16.mxu0 %v2991
    %4097 = vmatmul.mubr.bf16.gmra.mxu0 %v2990
    %v4098 = vpop.f32.mrf.mxu0
    %v4099 = vadd.f32 %v3842, %v4098
    %v4100 = vpop.f32.mrf.mxu0
    %v4101 = vpop.f32.mrf.mxu0
    %v4102 = vadd.f32 %v3845, %v4101
    %v4103 = vpop.f32.mrf.mxu0
    %4104 = vmatprep.mubr.bf16.mxu0 %v2995
    %4105 = vmatmul.mubr.bf16.gmra.mxu0 %v2994
    %v4106 = vpop.f32.mrf.mxu0
    %v4107 = vadd.f32 %v3850, %v4106
    %v4108 = vpop.f32.mrf.mxu0
    %v4109 = vpop.f32.mrf.mxu0
    %v4110 = vadd.f32 %v3853, %v4109
    %v4111 = vpop.f32.mrf.mxu0
    %4112 = vdwg.mxu0
    %4113 = vmatprep.subr.bf16.mxu0 0
    %4114 = vmatpush1.bf16.msra.mxu0 %v4007
    %4115 = vmatprep.subr.bf16.mxu0 0
    %4116 = vmatpush1.bf16.msra.mxu0 %v4006
    %4117 = vmatprep.subr.bf16.mxu0 0
    %4118 = vmatpush1.bf16.msra.mxu0 %v4005
    %4119 = vmatprep.subr.bf16.mxu0 0
    %4120 = vmatpush1.bf16.msra.mxu0 %v4004
    %4121 = vmatprep.subr.bf16.mxu0 0
    %4122 = vmatpush1.bf16.msra.mxu0 %v4003
    %4123 = vmatprep.subr.bf16.mxu0 0
    %4124 = vmatpush1.bf16.msra.mxu0 %v4002
    %4125 = vmatprep.subr.bf16.mxu0 0
    %4126 = vmatpush1.bf16.msra.mxu0 %v4001
    %4127 = vmatprep.subr.bf16.mxu0 0
    %4128 = vmatpush1.bf16.msra.mxu0 %v4000
    %4129 = vmatprep.subr.bf16.mxu0 0
    %4130 = vmatpush2.bf16.msra.mxu0 %v4015
    %4131 = vmatprep.subr.bf16.mxu0 0
    %4132 = vmatpush2.bf16.msra.mxu0 %v4014
    %4133 = vmatprep.subr.bf16.mxu0 0
    %4134 = vmatpush2.bf16.msra.mxu0 %v4013
    %4135 = vmatprep.subr.bf16.mxu0 0
    %4136 = vmatpush2.bf16.msra.mxu0 %v4012
    %4137 = vmatprep.subr.bf16.mxu0 0
    %4138 = vmatpush2.bf16.msra.mxu0 %v4011
    %4139 = vmatprep.subr.bf16.mxu0 0
    %4140 = vmatpush2.bf16.msra.mxu0 %v4010
    %4141 = vmatprep.subr.bf16.mxu0 0
    %4142 = vmatpush2.bf16.msra.mxu0 %v4009
    %4143 = vmatprep.subr.bf16.mxu0 0
    %4144 = vmatpush2.bf16.msra.mxu0 %v4008
    %4145 = vmatprep.mubr.bf16.mxu0 %v2985
    %4146 = vmatmul.mubr.bf16.gmra.mxu0 %v2984
    %v4147 = vpop.f32.mrf.mxu0
    %v4148 = vadd.f32 %v4083, %v4147
    %v4149 = vpop.f32.mrf.mxu0
    %v4150 = vpop.f32.mrf.mxu0
    %v4151 = vadd.f32 %v4086, %v4150
    %v4152 = vpop.f32.mrf.mxu0
    %4153 = vmatprep.mubr.bf16.mxu0 %v2989
    %4154 = vmatmul.mubr.bf16.gmra.mxu0 %v2988
    %v4155 = vpop.f32.mrf.mxu0
    %v4156 = vadd.f32 %v4091, %v4155
    %v4157 = vpop.f32.mrf.mxu0
    %v4158 = vpop.f32.mrf.mxu0
    %v4159 = vadd.f32 %v4094, %v4158
    %v4160 = vpop.f32.mrf.mxu0
    %4161 = vmatprep.mubr.bf16.mxu0 %v2993
    %4162 = vmatmul.mubr.bf16.gmra.mxu0 %v2992
    %v4163 = vpop.f32.mrf.mxu0
    %v4164 = vadd.f32 %v4099, %v4163
    %v4165 = vpop.f32.mrf.mxu0
    %v4166 = vpop.f32.mrf.mxu0
    %v4167 = vadd.f32 %v4102, %v4166
    %v4168 = vpop.f32.mrf.mxu0
    %4169 = vmatprep.mubr.bf16.mxu0 %v2997
    %4170 = vmatmul.mubr.bf16.gmra.mxu0 %v2996
    %v4171 = vpop.f32.mrf.mxu0
    %v4172 = vadd.f32 %v4107, %v4171
    %v4173 = vpop.f32.mrf.mxu0
    %v4174 = vpop.f32.mrf.mxu0
    %v4175 = vadd.f32 %v4110, %v4174
    %v4176 = vpop.f32.mrf.mxu0
    %4177 = vdwg.mxu0
    %v4178 = vld [vmem:[#allocation7 + $0x20] sm:$0xff]
    %v4179 = vld [vmem:[#allocation7 + $0x28] sm:$0xff]
    %v4180 = vld [vmem:[#allocation7 + $0x60] sm:$0xff]
    %v4181 = vld [vmem:[#allocation7 + $0x68] sm:$0xff]
    %v4182 = vld [vmem:[#allocation7 + $0xa0] sm:$0xff]
    %v4183 = vld [vmem:[#allocation7 + $0xa8] sm:$0xff]
    %v4184 = vld [vmem:[#allocation7 + $0xe0] sm:$0xff]
    %v4185 = vld [vmem:[#allocation7 + $0xe8] sm:$0xff]
    %v4186 = vld [vmem:[#allocation7 + $0x120] sm:$0xff]
    %v4187 = vld [vmem:[#allocation7 + $0x128] sm:$0xff]
    %v4188 = vld [vmem:[#allocation7 + $0x160] sm:$0xff]
    %v4189 = vld [vmem:[#allocation7 + $0x168] sm:$0xff]
    %v4190 = vld [vmem:[#allocation7 + $0x1a0] sm:$0xff]
    %v4191 = vld [vmem:[#allocation7 + $0x1a8] sm:$0xff]
    %v4192 = vld [vmem:[#allocation7 + $0x1e0] sm:$0xff]
    %v4193 = vld [vmem:[#allocation7 + $0x1e8] sm:$0xff]
    %v4194 = vld [vmem:[#allocation7 + $0x220] sm:$0xff]
    %v4195 = vld [vmem:[#allocation7 + $0x228] sm:$0xff]
    %v4196 = vld [vmem:[#allocation7 + $0x260] sm:$0xff]
    %v4197 = vld [vmem:[#allocation7 + $0x268] sm:$0xff]
    %v4198 = vld [vmem:[#allocation7 + $0x2a0] sm:$0xff]
    %v4199 = vld [vmem:[#allocation7 + $0x2a8] sm:$0xff]
    %v4200 = vld [vmem:[#allocation7 + $0x2e0] sm:$0xff]
    %v4201 = vld [vmem:[#allocation7 + $0x2e8] sm:$0xff]
    %v4202 = vld [vmem:[#allocation7 + $0x320] sm:$0xff]
    %v4203 = vld [vmem:[#allocation7 + $0x328] sm:$0xff]
    %v4204 = vld [vmem:[#allocation7 + $0x360] sm:$0xff]
    %v4205 = vld [vmem:[#allocation7 + $0x368] sm:$0xff]
    %v4206 = vld [vmem:[#allocation7 + $0x3a0] sm:$0xff]
    %v4207 = vld [vmem:[#allocation7 + $0x3a8] sm:$0xff]
    %v4208 = vld [vmem:[#allocation7 + $0x3e0] sm:$0xff]
    %v4209 = vld [vmem:[#allocation7 + $0x3e8] sm:$0xff]
    %v4210 = vld [vmem:[%s8 + $0x8] sm:$0xf]
    %v4212 = vlaneseq
    %v4213 = vshrl.u32 %v4212, 7
    %v4214 = vsub.s32 0, %v4213
    %v4215 = vrot.slane %v4210, %v4214
    %v4216 = vlaneseq
    %v4217 = vshrl.u32 %v4216, 7
    %v4218 = vsub.s32 1, %v4217
    %v4219 = vrot.slane %v4210, %v4218
    %v4220 = vlaneseq
    %v4221 = vshrl.u32 %v4220, 7
    %v4222 = vsub.s32 2, %v4221
    %v4223 = vrot.slane %v4210, %v4222
    %v4224 = vlaneseq
    %v4225 = vshrl.u32 %v4224, 7
    %v4226 = vsub.s32 3, %v4225
    %v4227 = vrot.slane %v4210, %v4226
    %v4264 = vunpack.c.l.b16 %v4178
    %v4265 = vunpack.c.h.b16 %v4178
    %v4266 = vunpack.c.l.b16 %v4179
    %v4267 = vunpack.c.h.b16 %v4179
    %v4268 = vunpack.c.l.b16 %v4180
    %v4269 = vunpack.c.h.b16 %v4180
    %v4270 = vunpack.c.l.b16 %v4181
    %v4271 = vunpack.c.h.b16 %v4181
    %v4272 = vunpack.c.l.b16 %v4182
    %v4273 = vunpack.c.h.b16 %v4182
    %v4274 = vunpack.c.l.b16 %v4183
    %v4275 = vunpack.c.h.b16 %v4183
    %v4276 = vunpack.c.l.b16 %v4184
    %v4277 = vunpack.c.h.b16 %v4184
    %v4278 = vunpack.c.l.b16 %v4185
    %v4279 = vunpack.c.h.b16 %v4185
    %v4280 = vunpack.c.l.b16 %v4186
    %v4281 = vunpack.c.h.b16 %v4186
    %v4282 = vunpack.c.l.b16 %v4187
    %v4283 = vunpack.c.h.b16 %v4187
    %v4284 = vunpack.c.l.b16 %v4188
    %v4285 = vunpack.c.h.b16 %v4188
    %v4286 = vunpack.c.l.b16 %v4189
    %v4287 = vunpack.c.h.b16 %v4189
    %v4288 = vunpack.c.l.b16 %v4190
    %v4289 = vunpack.c.h.b16 %v4190
    %v4290 = vunpack.c.l.b16 %v4191
    %v4291 = vunpack.c.h.b16 %v4191
    %v4292 = vunpack.c.l.b16 %v4192
    %v4293 = vunpack.c.h.b16 %v4192
    %v4294 = vunpack.c.l.b16 %v4193
    %v4295 = vunpack.c.h.b16 %v4193
    %v4296 = vunpack.c.l.b16 %v4194
    %v4297 = vunpack.c.h.b16 %v4194
    %v4298 = vunpack.c.l.b16 %v4195
    %v4299 = vunpack.c.h.b16 %v4195
    %v4300 = vunpack.c.l.b16 %v4196
    %v4301 = vunpack.c.h.b16 %v4196
    %v4302 = vunpack.c.l.b16 %v4197
    %v4303 = vunpack.c.h.b16 %v4197
    %v4304 = vunpack.c.l.b16 %v4198
    %v4305 = vunpack.c.h.b16 %v4198
    %v4306 = vunpack.c.l.b16 %v4199
    %v4307 = vunpack.c.h.b16 %v4199
    %v4308 = vunpack.c.l.b16 %v4200
    %v4309 = vunpack.c.h.b16 %v4200
    %v4310 = vunpack.c.l.b16 %v4201
    %v4311 = vunpack.c.h.b16 %v4201
    %v4312 = vunpack.c.l.b16 %v4202
    %v4313 = vunpack.c.h.b16 %v4202
    %v4314 = vunpack.c.l.b16 %v4203
    %v4315 = vunpack.c.h.b16 %v4203
    %v4316 = vunpack.c.l.b16 %v4204
    %v4317 = vunpack.c.h.b16 %v4204
    %v4318 = vunpack.c.l.b16 %v4205
    %v4319 = vunpack.c.h.b16 %v4205
    %v4320 = vunpack.c.l.b16 %v4206
    %v4321 = vunpack.c.h.b16 %v4206
    %v4322 = vunpack.c.l.b16 %v4207
    %v4323 = vunpack.c.h.b16 %v4207
    %v4324 = vunpack.c.l.b16 %v4208
    %v4325 = vunpack.c.h.b16 %v4208
    %v4326 = vunpack.c.l.b16 %v4209
    %v4327 = vunpack.c.h.b16 %v4209
    %v4328 = vpack.c.b16 %v4268, %v4264
    %v4329 = vpack.c.b16 %v4269, %v4265
    %v4330 = vpack.c.b16 %v4270, %v4266
    %v4331 = vpack.c.b16 %v4271, %v4267
    %v4332 = vpack.c.b16 %v4276, %v4272
    %v4333 = vpack.c.b16 %v4277, %v4273
    %v4334 = vpack.c.b16 %v4278, %v4274
    %v4335 = vpack.c.b16 %v4279, %v4275
    %v4336 = vpack.c.b16 %v4284, %v4280
    %v4337 = vpack.c.b16 %v4285, %v4281
    %v4338 = vpack.c.b16 %v4286, %v4282
    %v4339 = vpack.c.b16 %v4287, %v4283
    %v4340 = vpack.c.b16 %v4292, %v4288
    %v4341 = vpack.c.b16 %v4293, %v4289
    %v4342 = vpack.c.b16 %v4294, %v4290
    %v4343 = vpack.c.b16 %v4295, %v4291
    %v4344 = vpack.c.b16 %v4300, %v4296
    %v4345 = vpack.c.b16 %v4301, %v4297
    %v4346 = vpack.c.b16 %v4302, %v4298
    %v4347 = vpack.c.b16 %v4303, %v4299
    %v4348 = vpack.c.b16 %v4308, %v4304
    %v4349 = vpack.c.b16 %v4309, %v4305
    %v4350 = vpack.c.b16 %v4310, %v4306
    %v4351 = vpack.c.b16 %v4311, %v4307
    %v4352 = vpack.c.b16 %v4316, %v4312
    %v4353 = vpack.c.b16 %v4317, %v4313
    %v4354 = vpack.c.b16 %v4318, %v4314
    %v4355 = vpack.c.b16 %v4319, %v4315
    %v4356 = vpack.c.b16 %v4324, %v4320
    %v4357 = vpack.c.b16 %v4325, %v4321
    %v4358 = vpack.c.b16 %v4326, %v4322
    %v4359 = vpack.c.b16 %v4327, %v4323
    %4392 = vmatprep.subr.bf16.mxu0 %v4357
    %4393 = vmatpush1.bf16.msra.mxu0 %v4356
    %4394 = vmatprep.subr.bf16.mxu0 %v4353
    %4395 = vmatpush1.bf16.msra.mxu0 %v4352
    %4396 = vmatprep.subr.bf16.mxu0 %v4349
    %4397 = vmatpush1.bf16.msra.mxu0 %v4348
    %4398 = vmatprep.subr.bf16.mxu0 %v4345
    %4399 = vmatpush1.bf16.msra.mxu0 %v4344
    %4400 = vmatprep.subr.bf16.mxu0 %v4341
    %4401 = vmatpush1.bf16.msra.mxu0 %v4340
    %4402 = vmatprep.subr.bf16.mxu0 %v4337
    %4403 = vmatpush1.bf16.msra.mxu0 %v4336
    %4404 = vmatprep.subr.bf16.mxu0 %v4333
    %4405 = vmatpush1.bf16.msra.mxu0 %v4332
    %4406 = vmatprep.subr.bf16.mxu0 %v4329
    %4407 = vmatpush1.bf16.msra.mxu0 %v4328
    %4408 = vmatprep.subr.bf16.mxu0 0
    %4409 = vmatpush2.bf16.msra.mxu0 0
    %4410 = vmatprep.subr.bf16.mxu0 0
    %4411 = vmatpush2.bf16.msra.mxu0 0
    %4412 = vmatprep.subr.bf16.mxu0 0
    %4413 = vmatpush2.bf16.msra.mxu0 0
    %4414 = vmatprep.subr.bf16.mxu0 0
    %4415 = vmatpush2.bf16.msra.mxu0 0
    %4416 = vmatprep.subr.bf16.mxu0 0
    %4417 = vmatpush2.bf16.msra.mxu0 0
    %4418 = vmatprep.subr.bf16.mxu0 0
    %4419 = vmatpush2.bf16.msra.mxu0 0
    %4420 = vmatprep.subr.bf16.mxu0 0
    %4421 = vmatpush2.bf16.msra.mxu0 0
    %4422 = vmatprep.subr.bf16.mxu0 0
    %4423 = vmatpush2.bf16.msra.mxu0 0
    %4424 = vmatprep.mubr.bf16.mxu0 0
    %4425 = vmatmul.mubr.bf16.gmra.mxu0 %v2586
    %v4426 = vpop.f32.mrf.mxu0
    %v4427 = vadd.f32 %v4215, %v4426
    %v4428 = vpop.f32.mrf.mxu0
    %v4429 = vadd.f32 %v4219, %v4428
    %v4430 = vpop.f32.mrf.mxu0
    %v4431 = vadd.f32 %v4215, %v4430
    %v4432 = vpop.f32.mrf.mxu0
    %v4433 = vadd.f32 %v4219, %v4432
    %4434 = vmatprep.mubr.bf16.mxu0 0
    %4435 = vmatmul.mubr.bf16.gmra.mxu0 %v2587
    %v4436 = vpop.f32.mrf.mxu0
    %v4437 = vadd.f32 %v4215, %v4436
    %v4438 = vpop.f32.mrf.mxu0
    %v4439 = vadd.f32 %v4219, %v4438
    %v4440 = vpop.f32.mrf.mxu0
    %v4441 = vadd.f32 %v4215, %v4440
    %v4442 = vpop.f32.mrf.mxu0
    %v4443 = vadd.f32 %v4219, %v4442
    %4444 = vmatprep.mubr.bf16.mxu0 0
    %4445 = vmatmul.mubr.bf16.gmra.mxu0 %v2588
    %v4446 = vpop.f32.mrf.mxu0
    %v4447 = vadd.f32 %v4215, %v4446
    %v4448 = vpop.f32.mrf.mxu0
    %v4449 = vadd.f32 %v4219, %v4448
    %v4450 = vpop.f32.mrf.mxu0
    %v4451 = vadd.f32 %v4215, %v4450
    %v4452 = vpop.f32.mrf.mxu0
    %v4453 = vadd.f32 %v4219, %v4452
    %4454 = vmatprep.mubr.bf16.mxu0 0
    %4455 = vmatmul.mubr.bf16.gmra.mxu0 %v2589
    %v4456 = vpop.f32.mrf.mxu0
    %v4457 = vadd.f32 %v4215, %v4456
    %v4458 = vpop.f32.mrf.mxu0
    %v4459 = vadd.f32 %v4219, %v4458
    %v4460 = vpop.f32.mrf.mxu0
    %v4461 = vadd.f32 %v4215, %v4460
    %v4462 = vpop.f32.mrf.mxu0
    %v4463 = vadd.f32 %v4219, %v4462
    %4464 = vdwg.mxu0
    %4465 = vmatprep.subr.bf16.mxu0 %v4359
    %4466 = vmatpush1.bf16.msra.mxu0 %v4358
    %4467 = vmatprep.subr.bf16.mxu0 %v4355
    %4468 = vmatpush1.bf16.msra.mxu0 %v4354
    %4469 = vmatprep.subr.bf16.mxu0 %v4351
    %4470 = vmatpush1.bf16.msra.mxu0 %v4350
    %4471 = vmatprep.subr.bf16.mxu0 %v4347
    %4472 = vmatpush1.bf16.msra.mxu0 %v4346
    %4473 = vmatprep.subr.bf16.mxu0 %v4343
    %4474 = vmatpush1.bf16.msra.mxu0 %v4342
    %4475 = vmatprep.subr.bf16.mxu0 %v4339
    %4476 = vmatpush1.bf16.msra.mxu0 %v4338
    %4477 = vmatprep.subr.bf16.mxu0 %v4335
    %4478 = vmatpush1.bf16.msra.mxu0 %v4334
    %4479 = vmatprep.subr.bf16.mxu0 %v4331
    %4480 = vmatpush1.bf16.msra.mxu0 %v4330
    %4481 = vmatprep.subr.bf16.mxu0 0
    %4482 = vmatpush2.bf16.msra.mxu0 0
    %4483 = vmatprep.subr.bf16.mxu0 0
    %4484 = vmatpush2.bf16.msra.mxu0 0
    %4485 = vmatprep.subr.bf16.mxu0 0
    %4486 = vmatpush2.bf16.msra.mxu0 0
    %4487 = vmatprep.subr.bf16.mxu0 0
    %4488 = vmatpush2.bf16.msra.mxu0 0
    %4489 = vmatprep.subr.bf16.mxu0 0
    %4490 = vmatpush2.bf16.msra.mxu0 0
    %4491 = vmatprep.subr.bf16.mxu0 0
    %4492 = vmatpush2.bf16.msra.mxu0 0
    %4493 = vmatprep.subr.bf16.mxu0 0
    %4494 = vmatpush2.bf16.msra.mxu0 0
    %4495 = vmatprep.subr.bf16.mxu0 0
    %4496 = vmatpush2.bf16.msra.mxu0 0
    %4497 = vmatprep.mubr.bf16.mxu0 0
    %4498 = vmatmul.mubr.bf16.gmra.mxu0 %v2586
    %v4499 = vpop.f32.mrf.mxu0
    %v4500 = vadd.f32 %v4223, %v4499
    %v4501 = vpop.f32.mrf.mxu0
    %v4502 = vadd.f32 %v4227, %v4501
    %v4503 = vpop.f32.mrf.mxu0
    %v4504 = vadd.f32 %v4223, %v4503
    %v4505 = vpop.f32.mrf.mxu0
    %v4506 = vadd.f32 %v4227, %v4505
    %4507 = vmatprep.mubr.bf16.mxu0 0
    %4508 = vmatmul.mubr.bf16.gmra.mxu0 %v2587
    %v4509 = vpop.f32.mrf.mxu0
    %v4510 = vadd.f32 %v4223, %v4509
    %v4511 = vpop.f32.mrf.mxu0
    %v4512 = vadd.f32 %v4227, %v4511
    %v4513 = vpop.f32.mrf.mxu0
    %v4514 = vadd.f32 %v4223, %v4513
    %v4515 = vpop.f32.mrf.mxu0
    %v4516 = vadd.f32 %v4227, %v4515
    %4517 = vmatprep.mubr.bf16.mxu0 0
    %4518 = vmatmul.mubr.bf16.gmra.mxu0 %v2588
    %v4519 = vpop.f32.mrf.mxu0
    %v4520 = vadd.f32 %v4223, %v4519
    %v4521 = vpop.f32.mrf.mxu0
    %v4522 = vadd.f32 %v4227, %v4521
    %v4523 = vpop.f32.mrf.mxu0
    %v4524 = vadd.f32 %v4223, %v4523
    %v4525 = vpop.f32.mrf.mxu0
    %v4526 = vadd.f32 %v4227, %v4525
    %4527 = vmatprep.mubr.bf16.mxu0 0
    %4528 = vmatmul.mubr.bf16.gmra.mxu0 %v2589
    %v4529 = vpop.f32.mrf.mxu0
    %v4530 = vadd.f32 %v4223, %v4529
    %v4531 = vpop.f32.mrf.mxu0
    %v4532 = vadd.f32 %v4227, %v4531
    %v4533 = vpop.f32.mrf.mxu0
    %v4534 = vadd.f32 %v4223, %v4533
    %v4535 = vpop.f32.mrf.mxu0
    %v4536 = vadd.f32 %v4227, %v4535
    %4537 = vdwg.mxu0
    %v4538 = vmax.f32 %v4427, 0.0
    %v4539 = vmax.f32 %v4429, 0.0
    %v4540 = vmax.f32 %v4500, 0.0
    %v4541 = vmax.f32 %v4502, 0.0
    %v4542 = vmax.f32 %v4431, 0.0
    %v4543 = vmax.f32 %v4433, 0.0
    %v4544 = vmax.f32 %v4504, 0.0
    %v4545 = vmax.f32 %v4506, 0.0
    %v4546 = vmax.f32 %v4437, 0.0
    %v4547 = vmax.f32 %v4439, 0.0
    %v4548 = vmax.f32 %v4510, 0.0
    %v4549 = vmax.f32 %v4512, 0.0
    %v4550 = vmax.f32 %v4441, 0.0
    %v4551 = vmax.f32 %v4443, 0.0
    %v4552 = vmax.f32 %v4514, 0.0
    %v4553 = vmax.f32 %v4516, 0.0
    %v4554 = vmax.f32 %v4447, 0.0
    %v4555 = vmax.f32 %v4449, 0.0
    %v4556 = vmax.f32 %v4520, 0.0
    %v4557 = vmax.f32 %v4522, 0.0
    %v4558 = vmax.f32 %v4451, 0.0
    %v4559 = vmax.f32 %v4453, 0.0
    %v4560 = vmax.f32 %v4524, 0.0
    %v4561 = vmax.f32 %v4526, 0.0
    %v4562 = vmax.f32 %v4457, 0.0
    %v4563 = vmax.f32 %v4459, 0.0
    %v4564 = vmax.f32 %v4530, 0.0
    %v4565 = vmax.f32 %v4532, 0.0
    %v4566 = vmax.f32 %v4461, 0.0
    %v4567 = vmax.f32 %v4463, 0.0
    %v4568 = vmax.f32 %v4534, 0.0
    %v4569 = vmax.f32 %v4536, 0.0
    %v4570 = vpack.c.bf16 %v4542, %v4538
    %v4571 = vpack.c.bf16 %v4543, %v4539
    %v4572 = vpack.c.bf16 %v4544, %v4540
    %v4573 = vpack.c.bf16 %v4545, %v4541
    %v4574 = vpack.c.bf16 %v4550, %v4546
    %v4575 = vpack.c.bf16 %v4551, %v4547
    %v4576 = vpack.c.bf16 %v4552, %v4548
    %v4577 = vpack.c.bf16 %v4553, %v4549
    %v4578 = vpack.c.bf16 %v4558, %v4554
    %v4579 = vpack.c.bf16 %v4559, %v4555
    %v4580 = vpack.c.bf16 %v4560, %v4556
    %v4581 = vpack.c.bf16 %v4561, %v4557
    %v4582 = vpack.c.bf16 %v4566, %v4562
    %v4583 = vpack.c.bf16 %v4567, %v4563
    %v4584 = vpack.c.bf16 %v4568, %v4564
    %v4585 = vpack.c.bf16 %v4569, %v4565
    %v4586 = vld [vmem:[#allocation9 + $0x200] sm:$0xf]
    %v4587 = vld [vmem:[#allocation9 + $0x204] sm:$0xf]
    %v4588 = vld [vmem:[#allocation9 + $0x208] sm:$0xf]
    %v4589 = vld [vmem:[#allocation9 + $0x20c] sm:$0xf]
    %v4590 = vld [vmem:[#allocation9 + $0x210] sm:$0xf]
    %v4591 = vld [vmem:[#allocation9 + $0x214] sm:$0xf]
    %v4592 = vld [vmem:[#allocation9 + $0x218] sm:$0xf]
    %v4593 = vld [vmem:[#allocation9 + $0x21c] sm:$0xf]
    %v4594 = vld [vmem:[#allocation9 + $0x220] sm:$0xf]
    %v4595 = vld [vmem:[#allocation9 + $0x224] sm:$0xf]
    %v4596 = vld [vmem:[#allocation9 + $0x228] sm:$0xf]
    %v4597 = vld [vmem:[#allocation9 + $0x22c] sm:$0xf]
    %v4598 = vld [vmem:[#allocation9 + $0x230] sm:$0xf]
    %v4599 = vld [vmem:[#allocation9 + $0x234] sm:$0xf]
    %v4600 = vld [vmem:[#allocation9 + $0x238] sm:$0xf]
    %v4601 = vld [vmem:[#allocation9 + $0x23c] sm:$0xf]
    %v4602 = vld [vmem:[#allocation9 + $0x240] sm:$0xf]
    %v4603 = vld [vmem:[#allocation9 + $0x244] sm:$0xf]
    %v4604 = vld [vmem:[#allocation9 + $0x248] sm:$0xf]
    %v4605 = vld [vmem:[#allocation9 + $0x24c] sm:$0xf]
    %v4606 = vld [vmem:[#allocation9 + $0x250] sm:$0xf]
    %v4607 = vld [vmem:[#allocation9 + $0x254] sm:$0xf]
    %v4608 = vld [vmem:[#allocation9 + $0x258] sm:$0xf]
    %v4609 = vld [vmem:[#allocation9 + $0x25c] sm:$0xf]
    %v4610 = vld [vmem:[#allocation9 + $0x260] sm:$0xf]
    %v4611 = vld [vmem:[#allocation9 + $0x264] sm:$0xf]
    %v4612 = vld [vmem:[#allocation9 + $0x268] sm:$0xf]
    %v4613 = vld [vmem:[#allocation9 + $0x26c] sm:$0xf]
    %v4614 = vld [vmem:[#allocation9 + $0x270] sm:$0xf]
    %v4615 = vld [vmem:[#allocation9 + $0x274] sm:$0xf]
    %v4616 = vld [vmem:[#allocation9 + $0x278] sm:$0xf]
    %v4617 = vld [vmem:[#allocation9 + $0x27c] sm:$0xf]
    %v4618 = vld [vmem:[#allocation9 + $0x280] sm:$0xf]
    %v4619 = vld [vmem:[#allocation9 + $0x284] sm:$0xf]
    %v4620 = vld [vmem:[#allocation9 + $0x288] sm:$0xf]
    %v4621 = vld [vmem:[#allocation9 + $0x28c] sm:$0xf]
    %v4622 = vld [vmem:[#allocation9 + $0x290] sm:$0xf]
    %v4623 = vld [vmem:[#allocation9 + $0x294] sm:$0xf]
    %v4624 = vld [vmem:[#allocation9 + $0x298] sm:$0xf]
    %v4625 = vld [vmem:[#allocation9 + $0x29c] sm:$0xf]
    %v4626 = vld [vmem:[#allocation9 + $0x2a0] sm:$0xf]
    %v4627 = vld [vmem:[#allocation9 + $0x2a4] sm:$0xf]
    %v4628 = vld [vmem:[#allocation9 + $0x2a8] sm:$0xf]
    %v4629 = vld [vmem:[#allocation9 + $0x2ac] sm:$0xf]
    %v4630 = vld [vmem:[#allocation9 + $0x2b0] sm:$0xf]
    %v4631 = vld [vmem:[#allocation9 + $0x2b4] sm:$0xf]
    %v4632 = vld [vmem:[#allocation9 + $0x2b8] sm:$0xf]
    %v4633 = vld [vmem:[#allocation9 + $0x2bc] sm:$0xf]
    %v4634 = vld [vmem:[#allocation9 + $0x2c0] sm:$0xf]
    %v4635 = vld [vmem:[#allocation9 + $0x2c4] sm:$0xf]
    %v4636 = vld [vmem:[#allocation9 + $0x2c8] sm:$0xf]
    %v4637 = vld [vmem:[#allocation9 + $0x2cc] sm:$0xf]
    %v4638 = vld [vmem:[#allocation9 + $0x2d0] sm:$0xf]
    %v4639 = vld [vmem:[#allocation9 + $0x2d4] sm:$0xf]
    %v4640 = vld [vmem:[#allocation9 + $0x2d8] sm:$0xf]
    %v4641 = vld [vmem:[#allocation9 + $0x2dc] sm:$0xf]
    %v4642 = vld [vmem:[#allocation9 + $0x2e0] sm:$0xf]
    %v4643 = vld [vmem:[#allocation9 + $0x2e4] sm:$0xf]
    %v4644 = vld [vmem:[#allocation9 + $0x2e8] sm:$0xf]
    %v4645 = vld [vmem:[#allocation9 + $0x2ec] sm:$0xf]
    %v4646 = vld [vmem:[#allocation9 + $0x2f0] sm:$0xf]
    %v4647 = vld [vmem:[#allocation9 + $0x2f4] sm:$0xf]
    %v4648 = vld [vmem:[#allocation9 + $0x2f8] sm:$0xf]
    %v4649 = vld [vmem:[#allocation9 + $0x2fc] sm:$0xf]
    %v4714 = vunpack.c.l.b16 %v4586
    %v4715 = vunpack.c.l.b16 %v4587
    %v4716 = vunpack.c.l.b16 %v4588
    %v4717 = vunpack.c.l.b16 %v4589
    %v4718 = vunpack.c.l.b16 %v4590
    %v4719 = vunpack.c.l.b16 %v4591
    %v4720 = vunpack.c.l.b16 %v4592
    %v4721 = vunpack.c.l.b16 %v4593
    %v4722 = vunpack.c.l.b16 %v4594
    %v4723 = vunpack.c.l.b16 %v4595
    %v4724 = vunpack.c.l.b16 %v4596
    %v4725 = vunpack.c.l.b16 %v4597
    %v4726 = vunpack.c.l.b16 %v4598
    %v4727 = vunpack.c.l.b16 %v4599
    %v4728 = vunpack.c.l.b16 %v4600
    %v4729 = vunpack.c.l.b16 %v4601
    %v4730 = vunpack.c.l.b16 %v4602
    %v4731 = vunpack.c.l.b16 %v4603
    %v4732 = vunpack.c.l.b16 %v4604
    %v4733 = vunpack.c.l.b16 %v4605
    %v4734 = vunpack.c.l.b16 %v4606
    %v4735 = vunpack.c.l.b16 %v4607
    %v4736 = vunpack.c.l.b16 %v4608
    %v4737 = vunpack.c.l.b16 %v4609
    %v4738 = vunpack.c.l.b16 %v4610
    %v4739 = vunpack.c.l.b16 %v4611
    %v4740 = vunpack.c.l.b16 %v4612
    %v4741 = vunpack.c.l.b16 %v4613
    %v4742 = vunpack.c.l.b16 %v4614
    %v4743 = vunpack.c.l.b16 %v4615
    %v4744 = vunpack.c.l.b16 %v4616
    %v4745 = vunpack.c.l.b16 %v4617
    %v4746 = vunpack.c.l.b16 %v4618
    %v4747 = vunpack.c.l.b16 %v4619
    %v4748 = vunpack.c.l.b16 %v4620
    %v4749 = vunpack.c.l.b16 %v4621
    %v4750 = vunpack.c.l.b16 %v4622
    %v4751 = vunpack.c.l.b16 %v4623
    %v4752 = vunpack.c.l.b16 %v4624
    %v4753 = vunpack.c.l.b16 %v4625
    %v4754 = vunpack.c.l.b16 %v4626
    %v4755 = vunpack.c.l.b16 %v4627
    %v4756 = vunpack.c.l.b16 %v4628
    %v4757 = vunpack.c.l.b16 %v4629
    %v4758 = vunpack.c.l.b16 %v4630
    %v4759 = vunpack.c.l.b16 %v4631
    %v4760 = vunpack.c.l.b16 %v4632
    %v4761 = vunpack.c.l.b16 %v4633
    %v4762 = vunpack.c.l.b16 %v4634
    %v4763 = vunpack.c.l.b16 %v4635
    %v4764 = vunpack.c.l.b16 %v4636
    %v4765 = vunpack.c.l.b16 %v4637
    %v4766 = vunpack.c.l.b16 %v4638
    %v4767 = vunpack.c.l.b16 %v4639
    %v4768 = vunpack.c.l.b16 %v4640
    %v4769 = vunpack.c.l.b16 %v4641
    %v4770 = vunpack.c.l.b16 %v4642
    %v4771 = vunpack.c.l.b16 %v4643
    %v4772 = vunpack.c.l.b16 %v4644
    %v4773 = vunpack.c.l.b16 %v4645
    %v4774 = vunpack.c.l.b16 %v4646
    %v4775 = vunpack.c.l.b16 %v4647
    %v4776 = vunpack.c.l.b16 %v4648
    %v4777 = vunpack.c.l.b16 %v4649
    %v4778 = vpack.c.b16 %v4715, %v4714
    %v4779 = vpack.c.b16 %v4717, %v4716
    %v4780 = vpack.c.b16 %v4719, %v4718
    %v4781 = vpack.c.b16 %v4721, %v4720
    %v4782 = vpack.c.b16 %v4723, %v4722
    %v4783 = vpack.c.b16 %v4725, %v4724
    %v4784 = vpack.c.b16 %v4727, %v4726
    %v4785 = vpack.c.b16 %v4729, %v4728
    %v4786 = vpack.c.b16 %v4731, %v4730
    %v4787 = vpack.c.b16 %v4733, %v4732
    %v4788 = vpack.c.b16 %v4735, %v4734
    %v4789 = vpack.c.b16 %v4737, %v4736
    %v4790 = vpack.c.b16 %v4739, %v4738
    %v4791 = vpack.c.b16 %v4741, %v4740
    %v4792 = vpack.c.b16 %v4743, %v4742
    %v4793 = vpack.c.b16 %v4745, %v4744
    %v4794 = vpack.c.b16 %v4747, %v4746
    %v4795 = vpack.c.b16 %v4749, %v4748
    %v4796 = vpack.c.b16 %v4751, %v4750
    %v4797 = vpack.c.b16 %v4753, %v4752
    %v4798 = vpack.c.b16 %v4755, %v4754
    %v4799 = vpack.c.b16 %v4757, %v4756
    %v4800 = vpack.c.b16 %v4759, %v4758
    %v4801 = vpack.c.b16 %v4761, %v4760
    %v4802 = vpack.c.b16 %v4763, %v4762
    %v4803 = vpack.c.b16 %v4765, %v4764
    %v4804 = vpack.c.b16 %v4767, %v4766
    %v4805 = vpack.c.b16 %v4769, %v4768
    %v4806 = vpack.c.b16 %v4771, %v4770
    %v4807 = vpack.c.b16 %v4773, %v4772
    %v4808 = vpack.c.b16 %v4775, %v4774
    %v4809 = vpack.c.b16 %v4777, %v4776
    %4842 = vmatprep.subr.bf16.mxu0 0
    %4843 = vmatpush1.bf16.msra.mxu0 %v4785
    %4844 = vmatprep.subr.bf16.mxu0 0
    %4845 = vmatpush1.bf16.msra.mxu0 %v4784
    %4846 = vmatprep.subr.bf16.mxu0 0
    %4847 = vmatpush1.bf16.msra.mxu0 %v4783
    %4848 = vmatprep.subr.bf16.mxu0 0
    %4849 = vmatpush1.bf16.msra.mxu0 %v4782
    %4850 = vmatprep.subr.bf16.mxu0 0
    %4851 = vmatpush1.bf16.msra.mxu0 %v4781
    %4852 = vmatprep.subr.bf16.mxu0 0
    %4853 = vmatpush1.bf16.msra.mxu0 %v4780
    %4854 = vmatprep.subr.bf16.mxu0 0
    %4855 = vmatpush1.bf16.msra.mxu0 %v4779
    %4856 = vmatprep.subr.bf16.mxu0 0
    %4857 = vmatpush1.bf16.msra.mxu0 %v4778
    %4858 = vmatprep.subr.bf16.mxu0 0
    %4859 = vmatpush2.bf16.msra.mxu0 %v4793
    %4860 = vmatprep.subr.bf16.mxu0 0
    %4861 = vmatpush2.bf16.msra.mxu0 %v4792
    %4862 = vmatprep.subr.bf16.mxu0 0
    %4863 = vmatpush2.bf16.msra.mxu0 %v4791
    %4864 = vmatprep.subr.bf16.mxu0 0
    %4865 = vmatpush2.bf16.msra.mxu0 %v4790
    %4866 = vmatprep.subr.bf16.mxu0 0
    %4867 = vmatpush2.bf16.msra.mxu0 %v4789
    %4868 = vmatprep.subr.bf16.mxu0 0
    %4869 = vmatpush2.bf16.msra.mxu0 %v4788
    %4870 = vmatprep.subr.bf16.mxu0 0
    %4871 = vmatpush2.bf16.msra.mxu0 %v4787
    %4872 = vmatprep.subr.bf16.mxu0 0
    %4873 = vmatpush2.bf16.msra.mxu0 %v4786
    %4874 = vmatprep.mubr.bf16.mxu0 %v4571
    %4875 = vmatmul.mubr.bf16.gmra.mxu0 %v4570
    %v4876 = vpop.f32.mrf.mxu0
    %v4877 = vadd.f32 0.0, %v4876
    %v4878 = vpop.f32.mrf.mxu0
    %v4879 = vpop.f32.mrf.mxu0
    %v4880 = vadd.f32 0.0, %v4879
    %v4881 = vpop.f32.mrf.mxu0
    %4882 = vmatprep.mubr.bf16.mxu0 %v4575
    %4883 = vmatmul.mubr.bf16.gmra.mxu0 %v4574
    %v4884 = vpop.f32.mrf.mxu0
    %v4885 = vadd.f32 0.0, %v4884
    %v4886 = vpop.f32.mrf.mxu0
    %v4887 = vpop.f32.mrf.mxu0
    %v4888 = vadd.f32 0.0, %v4887
    %v4889 = vpop.f32.mrf.mxu0
    %4890 = vmatprep.mubr.bf16.mxu0 %v4579
    %4891 = vmatmul.mubr.bf16.gmra.mxu0 %v4578
    %v4892 = vpop.f32.mrf.mxu0
    %v4893 = vadd.f32 0.0, %v4892
    %v4894 = vpop.f32.mrf.mxu0
    %v4895 = vpop.f32.mrf.mxu0
    %v4896 = vadd.f32 0.0, %v4895
    %v4897 = vpop.f32.mrf.mxu0
    %4898 = vmatprep.mubr.bf16.mxu0 %v4583
    %4899 = vmatmul.mubr.bf16.gmra.mxu0 %v4582
    %v4900 = vpop.f32.mrf.mxu0
    %v4901 = vadd.f32 0.0, %v4900
    %v4902 = vpop.f32.mrf.mxu0
    %v4903 = vpop.f32.mrf.mxu0
    %v4904 = vadd.f32 0.0, %v4903
    %v4905 = vpop.f32.mrf.mxu0
    %4906 = vdwg.mxu0
    %4907 = vmatprep.subr.bf16.mxu0 0
    %4908 = vmatpush1.bf16.msra.mxu0 %v4801
    %4909 = vmatprep.subr.bf16.mxu0 0
    %4910 = vmatpush1.bf16.msra.mxu0 %v4800
    %4911 = vmatprep.subr.bf16.mxu0 0
    %4912 = vmatpush1.bf16.msra.mxu0 %v4799
    %4913 = vmatprep.subr.bf16.mxu0 0
    %4914 = vmatpush1.bf16.msra.mxu0 %v4798
    %4915 = vmatprep.subr.bf16.mxu0 0
    %4916 = vmatpush1.bf16.msra.mxu0 %v4797
    %4917 = vmatprep.subr.bf16.mxu0 0
    %4918 = vmatpush1.bf16.msra.mxu0 %v4796
    %4919 = vmatprep.subr.bf16.mxu0 0
    %4920 = vmatpush1.bf16.msra.mxu0 %v4795
    %4921 = vmatprep.subr.bf16.mxu0 0
    %4922 = vmatpush1.bf16.msra.mxu0 %v4794
    %4923 = vmatprep.subr.bf16.mxu0 0
    %4924 = vmatpush2.bf16.msra.mxu0 %v4809
    %4925 = vmatprep.subr.bf16.mxu0 0
    %4926 = vmatpush2.bf16.msra.mxu0 %v4808
    %4927 = vmatprep.subr.bf16.mxu0 0
    %4928 = vmatpush2.bf16.msra.mxu0 %v4807
    %4929 = vmatprep.subr.bf16.mxu0 0
    %4930 = vmatpush2.bf16.msra.mxu0 %v4806
    %4931 = vmatprep.subr.bf16.mxu0 0
    %4932 = vmatpush2.bf16.msra.mxu0 %v4805
    %4933 = vmatprep.subr.bf16.mxu0 0
    %4934 = vmatpush2.bf16.msra.mxu0 %v4804
    %4935 = vmatprep.subr.bf16.mxu0 0
    %4936 = vmatpush2.bf16.msra.mxu0 %v4803
    %4937 = vmatprep.subr.bf16.mxu0 0
    %4938 = vmatpush2.bf16.msra.mxu0 %v4802
    %4939 = vmatprep.mubr.bf16.mxu0 %v4573
    %4940 = vmatmul.mubr.bf16.gmra.mxu0 %v4572
    %v4941 = vpop.f32.mrf.mxu0
    %v4942 = vadd.f32 %v4877, %v4941
    %v4943 = vpop.f32.mrf.mxu0
    %v4944 = vpop.f32.mrf.mxu0
    %v4945 = vadd.f32 %v4880, %v4944
    %v4946 = vpop.f32.mrf.mxu0
    %4947 = vmatprep.mubr.bf16.mxu0 %v4577
    %4948 = vmatmul.mubr.bf16.gmra.mxu0 %v4576
    %v4949 = vpop.f32.mrf.mxu0
    %v4950 = vadd.f32 %v4885, %v4949
    %v4951 = vpop.f32.mrf.mxu0
    %v4952 = vpop.f32.mrf.mxu0
    %v4953 = vadd.f32 %v4888, %v4952
    %v4954 = vpop.f32.mrf.mxu0
    %4955 = vmatprep.mubr.bf16.mxu0 %v4581
    %4956 = vmatmul.mubr.bf16.gmra.mxu0 %v4580
    %v4957 = vpop.f32.mrf.mxu0
    %v4958 = vadd.f32 %v4893, %v4957
    %v4959 = vpop.f32.mrf.mxu0
    %v4960 = vpop.f32.mrf.mxu0
    %v4961 = vadd.f32 %v4896, %v4960
    %v4962 = vpop.f32.mrf.mxu0
    %4963 = vmatprep.mubr.bf16.mxu0 %v4585
    %4964 = vmatmul.mubr.bf16.gmra.mxu0 %v4584
    %v4965 = vpop.f32.mrf.mxu0
    %v4966 = vadd.f32 %v4901, %v4965
    %v4967 = vpop.f32.mrf.mxu0
    %v4968 = vpop.f32.mrf.mxu0
    %v4969 = vadd.f32 %v4904, %v4968
    %v4970 = vpop.f32.mrf.mxu0
    %4971 = vdwg.mxu0
    %v4972 = vadd.f32 %v4148, %v4942
    %v4973 = vadd.f32 %v4151, %v4945
    %v4974 = vadd.f32 %v4156, %v4950
    %v4975 = vadd.f32 %v4159, %v4953
    %v4976 = vadd.f32 %v4164, %v4958
    %v4977 = vadd.f32 %v4167, %v4961
    %v4978 = vadd.f32 %v4172, %v4966
    %v4979 = vadd.f32 %v4175, %v4969
    %v4980 = vld [vmem:[#allocation7 + $0x30] sm:$0xff]
    %v4981 = vld [vmem:[#allocation7 + $0x38] sm:$0xff]
    %v4982 = vld [vmem:[#allocation7 + $0x70] sm:$0xff]
    %v4983 = vld [vmem:[#allocation7 + $0x78] sm:$0xff]
    %v4984 = vld [vmem:[#allocation7 + $0xb0] sm:$0xff]
    %v4985 = vld [vmem:[#allocation7 + $0xb8] sm:$0xff]
    %v4986 = vld [vmem:[#allocation7 + $0xf0] sm:$0xff]
    %v4987 = vld [vmem:[#allocation7 + $0xf8] sm:$0xff]
    %v4988 = vld [vmem:[#allocation7 + $0x130] sm:$0xff]
    %v4989 = vld [vmem:[#allocation7 + $0x138] sm:$0xff]
    %v4990 = vld [vmem:[#allocation7 + $0x170] sm:$0xff]
    %v4991 = vld [vmem:[#allocation7 + $0x178] sm:$0xff]
    %v4992 = vld [vmem:[#allocation7 + $0x1b0] sm:$0xff]
    %v4993 = vld [vmem:[#allocation7 + $0x1b8] sm:$0xff]
    %v4994 = vld [vmem:[#allocation7 + $0x1f0] sm:$0xff]
    %v4995 = vld [vmem:[#allocation7 + $0x1f8] sm:$0xff]
    %v4996 = vld [vmem:[#allocation7 + $0x230] sm:$0xff]
    %v4997 = vld [vmem:[#allocation7 + $0x238] sm:$0xff]
    %v4998 = vld [vmem:[#allocation7 + $0x270] sm:$0xff]
    %v4999 = vld [vmem:[#allocation7 + $0x278] sm:$0xff]
    %v5000 = vld [vmem:[#allocation7 + $0x2b0] sm:$0xff]
    %v5001 = vld [vmem:[#allocation7 + $0x2b8] sm:$0xff]
    %v5002 = vld [vmem:[#allocation7 + $0x2f0] sm:$0xff]
    %v5003 = vld [vmem:[#allocation7 + $0x2f8] sm:$0xff]
    %v5004 = vld [vmem:[#allocation7 + $0x330] sm:$0xff]
    %v5005 = vld [vmem:[#allocation7 + $0x338] sm:$0xff]
    %v5006 = vld [vmem:[#allocation7 + $0x370] sm:$0xff]
    %v5007 = vld [vmem:[#allocation7 + $0x378] sm:$0xff]
    %v5008 = vld [vmem:[#allocation7 + $0x3b0] sm:$0xff]
    %v5009 = vld [vmem:[#allocation7 + $0x3b8] sm:$0xff]
    %v5010 = vld [vmem:[#allocation7 + $0x3f0] sm:$0xff]
    %v5011 = vld [vmem:[#allocation7 + $0x3f8] sm:$0xff]
    %v5012 = vld [vmem:[%s8 + $0xc] sm:$0xf]
    %v5014 = vlaneseq
    %v5015 = vshrl.u32 %v5014, 7
    %v5016 = vsub.s32 0, %v5015
    %v5017 = vrot.slane %v5012, %v5016
    %v5018 = vlaneseq
    %v5019 = vshrl.u32 %v5018, 7
    %v5020 = vsub.s32 1, %v5019
    %v5021 = vrot.slane %v5012, %v5020
    %v5022 = vlaneseq
    %v5023 = vshrl.u32 %v5022, 7
    %v5024 = vsub.s32 2, %v5023
    %v5025 = vrot.slane %v5012, %v5024
    %v5026 = vlaneseq
    %v5027 = vshrl.u32 %v5026, 7
    %v5028 = vsub.s32 3, %v5027
    %v5029 = vrot.slane %v5012, %v5028
    %v5066 = vunpack.c.l.b16 %v4980
    %v5067 = vunpack.c.h.b16 %v4980
    %v5068 = vunpack.c.l.b16 %v4981
    %v5069 = vunpack.c.h.b16 %v4981
    %v5070 = vunpack.c.l.b16 %v4982
    %v5071 = vunpack.c.h.b16 %v4982
    %v5072 = vunpack.c.l.b16 %v4983
    %v5073 = vunpack.c.h.b16 %v4983
    %v5074 = vunpack.c.l.b16 %v4984
    %v5075 = vunpack.c.h.b16 %v4984
    %v5076 = vunpack.c.l.b16 %v4985
    %v5077 = vunpack.c.h.b16 %v4985
    %v5078 = vunpack.c.l.b16 %v4986
    %v5079 = vunpack.c.h.b16 %v4986
    %v5080 = vunpack.c.l.b16 %v4987
    %v5081 = vunpack.c.h.b16 %v4987
    %v5082 = vunpack.c.l.b16 %v4988
    %v5083 = vunpack.c.h.b16 %v4988
    %v5084 = vunpack.c.l.b16 %v4989
    %v5085 = vunpack.c.h.b16 %v4989
    %v5086 = vunpack.c.l.b16 %v4990
    %v5087 = vunpack.c.h.b16 %v4990
    %v5088 = vunpack.c.l.b16 %v4991
    %v5089 = vunpack.c.h.b16 %v4991
    %v5090 = vunpack.c.l.b16 %v4992
    %v5091 = vunpack.c.h.b16 %v4992
    %v5092 = vunpack.c.l.b16 %v4993
    %v5093 = vunpack.c.h.b16 %v4993
    %v5094 = vunpack.c.l.b16 %v4994
    %v5095 = vunpack.c.h.b16 %v4994
    %v5096 = vunpack.c.l.b16 %v4995
    %v5097 = vunpack.c.h.b16 %v4995
    %v5098 = vunpack.c.l.b16 %v4996
    %v5099 = vunpack.c.h.b16 %v4996
    %v5100 = vunpack.c.l.b16 %v4997
    %v5101 = vunpack.c.h.b16 %v4997
    %v5102 = vunpack.c.l.b16 %v4998
    %v5103 = vunpack.c.h.b16 %v4998
    %v5104 = vunpack.c.l.b16 %v4999
    %v5105 = vunpack.c.h.b16 %v4999
    %v5106 = vunpack.c.l.b16 %v5000
    %v5107 = vunpack.c.h.b16 %v5000
    %v5108 = vunpack.c.l.b16 %v5001
    %v5109 = vunpack.c.h.b16 %v5001
    %v5110 = vunpack.c.l.b16 %v5002
    %v5111 = vunpack.c.h.b16 %v5002
    %v5112 = vunpack.c.l.b16 %v5003
    %v5113 = vunpack.c.h.b16 %v5003
    %v5114 = vunpack.c.l.b16 %v5004
    %v5115 = vunpack.c.h.b16 %v5004
    %v5116 = vunpack.c.l.b16 %v5005
    %v5117 = vunpack.c.h.b16 %v5005
    %v5118 = vunpack.c.l.b16 %v5006
    %v5119 = vunpack.c.h.b16 %v5006
    %v5120 = vunpack.c.l.b16 %v5007
    %v5121 = vunpack.c.h.b16 %v5007
    %v5122 = vunpack.c.l.b16 %v5008
    %v5123 = vunpack.c.h.b16 %v5008
    %v5124 = vunpack.c.l.b16 %v5009
    %v5125 = vunpack.c.h.b16 %v5009
    %v5126 = vunpack.c.l.b16 %v5010
    %v5127 = vunpack.c.h.b16 %v5010
    %v5128 = vunpack.c.l.b16 %v5011
    %v5129 = vunpack.c.h.b16 %v5011
    %v5130 = vpack.c.b16 %v5070, %v5066
    %v5131 = vpack.c.b16 %v5071, %v5067
    %v5132 = vpack.c.b16 %v5072, %v5068
    %v5133 = vpack.c.b16 %v5073, %v5069
    %v5134 = vpack.c.b16 %v5078, %v5074
    %v5135 = vpack.c.b16 %v5079, %v5075
    %v5136 = vpack.c.b16 %v5080, %v5076
    %v5137 = vpack.c.b16 %v5081, %v5077
    %v5138 = vpack.c.b16 %v5086, %v5082
    %v5139 = vpack.c.b16 %v5087, %v5083
    %v5140 = vpack.c.b16 %v5088, %v5084
    %v5141 = vpack.c.b16 %v5089, %v5085
    %v5142 = vpack.c.b16 %v5094, %v5090
    %v5143 = vpack.c.b16 %v5095, %v5091
    %v5144 = vpack.c.b16 %v5096, %v5092
    %v5145 = vpack.c.b16 %v5097, %v5093
    %v5146 = vpack.c.b16 %v5102, %v5098
    %v5147 = vpack.c.b16 %v5103, %v5099
    %v5148 = vpack.c.b16 %v5104, %v5100
    %v5149 = vpack.c.b16 %v5105, %v5101
    %v5150 = vpack.c.b16 %v5110, %v5106
    %v5151 = vpack.c.b16 %v5111, %v5107
    %v5152 = vpack.c.b16 %v5112, %v5108
    %v5153 = vpack.c.b16 %v5113, %v5109
    %v5154 = vpack.c.b16 %v5118, %v5114
    %v5155 = vpack.c.b16 %v5119, %v5115
    %v5156 = vpack.c.b16 %v5120, %v5116
    %v5157 = vpack.c.b16 %v5121, %v5117
    %v5158 = vpack.c.b16 %v5126, %v5122
    %v5159 = vpack.c.b16 %v5127, %v5123
    %v5160 = vpack.c.b16 %v5128, %v5124
    %v5161 = vpack.c.b16 %v5129, %v5125
    %5194 = vmatprep.subr.bf16.mxu0 %v5159
    %5195 = vmatpush1.bf16.msra.mxu0 %v5158
    %5196 = vmatprep.subr.bf16.mxu0 %v5155
    %5197 = vmatpush1.bf16.msra.mxu0 %v5154
    %5198 = vmatprep.subr.bf16.mxu0 %v5151
    %5199 = vmatpush1.bf16.msra.mxu0 %v5150
    %5200 = vmatprep.subr.bf16.mxu0 %v5147
    %5201 = vmatpush1.bf16.msra.mxu0 %v5146
    %5202 = vmatprep.subr.bf16.mxu0 %v5143
    %5203 = vmatpush1.bf16.msra.mxu0 %v5142
    %5204 = vmatprep.subr.bf16.mxu0 %v5139
    %5205 = vmatpush1.bf16.msra.mxu0 %v5138
    %5206 = vmatprep.subr.bf16.mxu0 %v5135
    %5207 = vmatpush1.bf16.msra.mxu0 %v5134
    %5208 = vmatprep.subr.bf16.mxu0 %v5131
    %5209 = vmatpush1.bf16.msra.mxu0 %v5130
    %5210 = vmatprep.subr.bf16.mxu0 0
    %5211 = vmatpush2.bf16.msra.mxu0 0
    %5212 = vmatprep.subr.bf16.mxu0 0
    %5213 = vmatpush2.bf16.msra.mxu0 0
    %5214 = vmatprep.subr.bf16.mxu0 0
    %5215 = vmatpush2.bf16.msra.mxu0 0
    %5216 = vmatprep.subr.bf16.mxu0 0
    %5217 = vmatpush2.bf16.msra.mxu0 0
    %5218 = vmatprep.subr.bf16.mxu0 0
    %5219 = vmatpush2.bf16.msra.mxu0 0
    %5220 = vmatprep.subr.bf16.mxu0 0
    %5221 = vmatpush2.bf16.msra.mxu0 0
    %5222 = vmatprep.subr.bf16.mxu0 0
    %5223 = vmatpush2.bf16.msra.mxu0 0
    %5224 = vmatprep.subr.bf16.mxu0 0
    %5225 = vmatpush2.bf16.msra.mxu0 0
    %5226 = vmatprep.mubr.bf16.mxu0 0
    %5227 = vmatmul.mubr.bf16.gmra.mxu0 %v2586
    %v5228 = vpop.f32.mrf.mxu0
    %v5229 = vadd.f32 %v5017, %v5228
    %v5230 = vpop.f32.mrf.mxu0
    %v5231 = vadd.f32 %v5021, %v5230
    %v5232 = vpop.f32.mrf.mxu0
    %v5233 = vadd.f32 %v5017, %v5232
    %v5234 = vpop.f32.mrf.mxu0
    %v5235 = vadd.f32 %v5021, %v5234
    %5236 = vmatprep.mubr.bf16.mxu0 0
    %5237 = vmatmul.mubr.bf16.gmra.mxu0 %v2587
    %v5238 = vpop.f32.mrf.mxu0
    %v5239 = vadd.f32 %v5017, %v5238
    %v5240 = vpop.f32.mrf.mxu0
    %v5241 = vadd.f32 %v5021, %v5240
    %v5242 = vpop.f32.mrf.mxu0
    %v5243 = vadd.f32 %v5017, %v5242
    %v5244 = vpop.f32.mrf.mxu0
    %v5245 = vadd.f32 %v5021, %v5244
    %5246 = vmatprep.mubr.bf16.mxu0 0
    %5247 = vmatmul.mubr.bf16.gmra.mxu0 %v2588
    %v5248 = vpop.f32.mrf.mxu0
    %v5249 = vadd.f32 %v5017, %v5248
    %v5250 = vpop.f32.mrf.mxu0
    %v5251 = vadd.f32 %v5021, %v5250
    %v5252 = vpop.f32.mrf.mxu0
    %v5253 = vadd.f32 %v5017, %v5252
    %v5254 = vpop.f32.mrf.mxu0
    %v5255 = vadd.f32 %v5021, %v5254
    %5256 = vmatprep.mubr.bf16.mxu0 0
    %5257 = vmatmul.mubr.bf16.gmra.mxu0 %v2589
    %v5258 = vpop.f32.mrf.mxu0
    %v5259 = vadd.f32 %v5017, %v5258
    %v5260 = vpop.f32.mrf.mxu0
    %v5261 = vadd.f32 %v5021, %v5260
    %v5262 = vpop.f32.mrf.mxu0
    %v5263 = vadd.f32 %v5017, %v5262
    %v5264 = vpop.f32.mrf.mxu0
    %v5265 = vadd.f32 %v5021, %v5264
    %5266 = vdwg.mxu0
    %5267 = vmatprep.subr.bf16.mxu0 %v5161
    %5268 = vmatpush1.bf16.msra.mxu0 %v5160
    %5269 = vmatprep.subr.bf16.mxu0 %v5157
    %5270 = vmatpush1.bf16.msra.mxu0 %v5156
    %5271 = vmatprep.subr.bf16.mxu0 %v5153
    %5272 = vmatpush1.bf16.msra.mxu0 %v5152
    %5273 = vmatprep.subr.bf16.mxu0 %v5149
    %5274 = vmatpush1.bf16.msra.mxu0 %v5148
    %5275 = vmatprep.subr.bf16.mxu0 %v5145
    %5276 = vmatpush1.bf16.msra.mxu0 %v5144
    %5277 = vmatprep.subr.bf16.mxu0 %v5141
    %5278 = vmatpush1.bf16.msra.mxu0 %v5140
    %5279 = vmatprep.subr.bf16.mxu0 %v5137
    %5280 = vmatpush1.bf16.msra.mxu0 %v5136
    %5281 = vmatprep.subr.bf16.mxu0 %v5133
    %5282 = vmatpush1.bf16.msra.mxu0 %v5132
    %5283 = vmatprep.subr.bf16.mxu0 0
    %5284 = vmatpush2.bf16.msra.mxu0 0
    %5285 = vmatprep.subr.bf16.mxu0 0
    %5286 = vmatpush2.bf16.msra.mxu0 0
    %5287 = vmatprep.subr.bf16.mxu0 0
    %5288 = vmatpush2.bf16.msra.mxu0 0
    %5289 = vmatprep.subr.bf16.mxu0 0
    %5290 = vmatpush2.bf16.msra.mxu0 0
    %5291 = vmatprep.subr.bf16.mxu0 0
    %5292 = vmatpush2.bf16.msra.mxu0 0
    %5293 = vmatprep.subr.bf16.mxu0 0
    %5294 = vmatpush2.bf16.msra.mxu0 0
    %5295 = vmatprep.subr.bf16.mxu0 0
    %5296 = vmatpush2.bf16.msra.mxu0 0
    %5297 = vmatprep.subr.bf16.mxu0 0
    %5298 = vmatpush2.bf16.msra.mxu0 0
    %5299 = vmatprep.mubr.bf16.mxu0 0
    %5300 = vmatmul.mubr.bf16.gmra.mxu0 %v2586
    %v5301 = vpop.f32.mrf.mxu0
    %v5302 = vadd.f32 %v5025, %v5301
    %v5303 = vpop.f32.mrf.mxu0
    %v5304 = vadd.f32 %v5029, %v5303
    %v5305 = vpop.f32.mrf.mxu0
    %v5306 = vadd.f32 %v5025, %v5305
    %v5307 = vpop.f32.mrf.mxu0
    %v5308 = vadd.f32 %v5029, %v5307
    %5309 = vmatprep.mubr.bf16.mxu0 0
    %5310 = vmatmul.mubr.bf16.gmra.mxu0 %v2587
    %v5311 = vpop.f32.mrf.mxu0
    %v5312 = vadd.f32 %v5025, %v5311
    %v5313 = vpop.f32.mrf.mxu0
    %v5314 = vadd.f32 %v5029, %v5313
    %v5315 = vpop.f32.mrf.mxu0
    %v5316 = vadd.f32 %v5025, %v5315
    %v5317 = vpop.f32.mrf.mxu0
    %v5318 = vadd.f32 %v5029, %v5317
    %5319 = vmatprep.mubr.bf16.mxu0 0
    %5320 = vmatmul.mubr.bf16.gmra.mxu0 %v2588
    %v5321 = vpop.f32.mrf.mxu0
    %v5322 = vadd.f32 %v5025, %v5321
    %v5323 = vpop.f32.mrf.mxu0
    %v5324 = vadd.f32 %v5029, %v5323
    %v5325 = vpop.f32.mrf.mxu0
    %v5326 = vadd.f32 %v5025, %v5325
    %v5327 = vpop.f32.mrf.mxu0
    %v5328 = vadd.f32 %v5029, %v5327
    %5329 = vmatprep.mubr.bf16.mxu0 0
    %5330 = vmatmul.mubr.bf16.gmra.mxu0 %v2589
    %v5331 = vpop.f32.mrf.mxu0
    %v5332 = vadd.f32 %v5025, %v5331
    %v5333 = vpop.f32.mrf.mxu0
    %v5334 = vadd.f32 %v5029, %v5333
    %v5335 = vpop.f32.mrf.mxu0
    %v5336 = vadd.f32 %v5025, %v5335
    %v5337 = vpop.f32.mrf.mxu0
    %v5338 = vadd.f32 %v5029, %v5337
    %5339 = vdwg.mxu0
    %v5340 = vmax.f32 %v5229, 0.0
    %v5341 = vmax.f32 %v5231, 0.0
    %v5342 = vmax.f32 %v5302, 0.0
    %v5343 = vmax.f32 %v5304, 0.0
    %v5344 = vmax.f32 %v5233, 0.0
    %v5345 = vmax.f32 %v5235, 0.0
    %v5346 = vmax.f32 %v5306, 0.0
    %v5347 = vmax.f32 %v5308, 0.0
    %v5348 = vmax.f32 %v5239, 0.0
    %v5349 = vmax.f32 %v5241, 0.0
    %v5350 = vmax.f32 %v5312, 0.0
    %v5351 = vmax.f32 %v5314, 0.0
    %v5352 = vmax.f32 %v5243, 0.0
    %v5353 = vmax.f32 %v5245, 0.0
    %v5354 = vmax.f32 %v5316, 0.0
    %v5355 = vmax.f32 %v5318, 0.0
    %v5356 = vmax.f32 %v5249, 0.0
    %v5357 = vmax.f32 %v5251, 0.0
    %v5358 = vmax.f32 %v5322, 0.0
    %v5359 = vmax.f32 %v5324, 0.0
    %v5360 = vmax.f32 %v5253, 0.0
    %v5361 = vmax.f32 %v5255, 0.0
    %v5362 = vmax.f32 %v5326, 0.0
    %v5363 = vmax.f32 %v5328, 0.0
    %v5364 = vmax.f32 %v5259, 0.0
    %v5365 = vmax.f32 %v5261, 0.0
    %v5366 = vmax.f32 %v5332, 0.0
    %v5367 = vmax.f32 %v5334, 0.0
    %v5368 = vmax.f32 %v5263, 0.0
    %v5369 = vmax.f32 %v5265, 0.0
    %v5370 = vmax.f32 %v5336, 0.0
    %v5371 = vmax.f32 %v5338, 0.0
    %v5372 = vpack.c.bf16 %v5344, %v5340
    %v5373 = vpack.c.bf16 %v5345, %v5341
    %v5374 = vpack.c.bf16 %v5346, %v5342
    %v5375 = vpack.c.bf16 %v5347, %v5343
    %v5376 = vpack.c.bf16 %v5352, %v5348
    %v5377 = vpack.c.bf16 %v5353, %v5349
    %v5378 = vpack.c.bf16 %v5354, %v5350
    %v5379 = vpack.c.bf16 %v5355, %v5351
    %v5380 = vpack.c.bf16 %v5360, %v5356
    %v5381 = vpack.c.bf16 %v5361, %v5357
    %v5382 = vpack.c.bf16 %v5362, %v5358
    %v5383 = vpack.c.bf16 %v5363, %v5359
    %v5384 = vpack.c.bf16 %v5368, %v5364
    %v5385 = vpack.c.bf16 %v5369, %v5365
    %v5386 = vpack.c.bf16 %v5370, %v5366
    %v5387 = vpack.c.bf16 %v5371, %v5367
    %v5388 = vld [vmem:[#allocation9 + $0x300] sm:$0xf]
    %v5389 = vld [vmem:[#allocation9 + $0x304] sm:$0xf]
    %v5390 = vld [vmem:[#allocation9 + $0x308] sm:$0xf]
    %v5391 = vld [vmem:[#allocation9 + $0x30c] sm:$0xf]
    %v5392 = vld [vmem:[#allocation9 + $0x310] sm:$0xf]
    %v5393 = vld [vmem:[#allocation9 + $0x314] sm:$0xf]
    %v5394 = vld [vmem:[#allocation9 + $0x318] sm:$0xf]
    %v5395 = vld [vmem:[#allocation9 + $0x31c] sm:$0xf]
    %v5396 = vld [vmem:[#allocation9 + $0x320] sm:$0xf]
    %v5397 = vld [vmem:[#allocation9 + $0x324] sm:$0xf]
    %v5398 = vld [vmem:[#allocation9 + $0x328] sm:$0xf]
    %v5399 = vld [vmem:[#allocation9 + $0x32c] sm:$0xf]
    %v5400 = vld [vmem:[#allocation9 + $0x330] sm:$0xf]
    %v5401 = vld [vmem:[#allocation9 + $0x334] sm:$0xf]
    %v5402 = vld [vmem:[#allocation9 + $0x338] sm:$0xf]
    %v5403 = vld [vmem:[#allocation9 + $0x33c] sm:$0xf]
    %v5404 = vld [vmem:[#allocation9 + $0x340] sm:$0xf]
    %v5405 = vld [vmem:[#allocation9 + $0x344] sm:$0xf]
    %v5406 = vld [vmem:[#allocation9 + $0x348] sm:$0xf]
    %v5407 = vld [vmem:[#allocation9 + $0x34c] sm:$0xf]
    %v5408 = vld [vmem:[#allocation9 + $0x350] sm:$0xf]
    %v5409 = vld [vmem:[#allocation9 + $0x354] sm:$0xf]
    %v5410 = vld [vmem:[#allocation9 + $0x358] sm:$0xf]
    %v5411 = vld [vmem:[#allocation9 + $0x35c] sm:$0xf]
    %v5412 = vld [vmem:[#allocation9 + $0x360] sm:$0xf]
    %v5413 = vld [vmem:[#allocation9 + $0x364] sm:$0xf]
    %v5414 = vld [vmem:[#allocation9 + $0x368] sm:$0xf]
    %v5415 = vld [vmem:[#allocation9 + $0x36c] sm:$0xf]
    %v5416 = vld [vmem:[#allocation9 + $0x370] sm:$0xf]
    %v5417 = vld [vmem:[#allocation9 + $0x374] sm:$0xf]
    %v5418 = vld [vmem:[#allocation9 + $0x378] sm:$0xf]
    %v5419 = vld [vmem:[#allocation9 + $0x37c] sm:$0xf]
    %v5420 = vld [vmem:[#allocation9 + $0x380] sm:$0xf]
    %v5421 = vld [vmem:[#allocation9 + $0x384] sm:$0xf]
    %v5422 = vld [vmem:[#allocation9 + $0x388] sm:$0xf]
    %v5423 = vld [vmem:[#allocation9 + $0x38c] sm:$0xf]
    %v5424 = vld [vmem:[#allocation9 + $0x390] sm:$0xf]
    %v5425 = vld [vmem:[#allocation9 + $0x394] sm:$0xf]
    %v5426 = vld [vmem:[#allocation9 + $0x398] sm:$0xf]
    %v5427 = vld [vmem:[#allocation9 + $0x39c] sm:$0xf]
    %v5428 = vld [vmem:[#allocation9 + $0x3a0] sm:$0xf]
    %v5429 = vld [vmem:[#allocation9 + $0x3a4] sm:$0xf]
    %v5430 = vld [vmem:[#allocation9 + $0x3a8] sm:$0xf]
    %v5431 = vld [vmem:[#allocation9 + $0x3ac] sm:$0xf]
    %v5432 = vld [vmem:[#allocation9 + $0x3b0] sm:$0xf]
    %v5433 = vld [vmem:[#allocation9 + $0x3b4] sm:$0xf]
    %v5434 = vld [vmem:[#allocation9 + $0x3b8] sm:$0xf]
    %v5435 = vld [vmem:[#allocation9 + $0x3bc] sm:$0xf]
    %v5436 = vld [vmem:[#allocation9 + $0x3c0] sm:$0xf]
    %v5437 = vld [vmem:[#allocation9 + $0x3c4] sm:$0xf]
    %v5438 = vld [vmem:[#allocation9 + $0x3c8] sm:$0xf]
    %v5439 = vld [vmem:[#allocation9 + $0x3cc] sm:$0xf]
    %v5440 = vld [vmem:[#allocation9 + $0x3d0] sm:$0xf]
    %v5441 = vld [vmem:[#allocation9 + $0x3d4] sm:$0xf]
    %v5442 = vld [vmem:[#allocation9 + $0x3d8] sm:$0xf]
    %v5443 = vld [vmem:[#allocation9 + $0x3dc] sm:$0xf]
    %v5444 = vld [vmem:[#allocation9 + $0x3e0] sm:$0xf]
    %v5445 = vld [vmem:[#allocation9 + $0x3e4] sm:$0xf]
    %v5446 = vld [vmem:[#allocation9 + $0x3e8] sm:$0xf]
    %v5447 = vld [vmem:[#allocation9 + $0x3ec] sm:$0xf]
    %v5448 = vld [vmem:[#allocation9 + $0x3f0] sm:$0xf]
    %v5449 = vld [vmem:[#allocation9 + $0x3f4] sm:$0xf]
    %v5450 = vld [vmem:[#allocation9 + $0x3f8] sm:$0xf]
    %v5451 = vld [vmem:[#allocation9 + $0x3fc] sm:$0xf]
    %v5516 = vunpack.c.l.b16 %v5388
    %v5517 = vunpack.c.l.b16 %v5389
    %v5518 = vunpack.c.l.b16 %v5390
    %v5519 = vunpack.c.l.b16 %v5391
    %v5520 = vunpack.c.l.b16 %v5392
    %v5521 = vunpack.c.l.b16 %v5393
    %v5522 = vunpack.c.l.b16 %v5394
    %v5523 = vunpack.c.l.b16 %v5395
    %v5524 = vunpack.c.l.b16 %v5396
    %v5525 = vunpack.c.l.b16 %v5397
    %v5526 = vunpack.c.l.b16 %v5398
    %v5527 = vunpack.c.l.b16 %v5399
    %v5528 = vunpack.c.l.b16 %v5400
    %v5529 = vunpack.c.l.b16 %v5401
    %v5530 = vunpack.c.l.b16 %v5402
    %v5531 = vunpack.c.l.b16 %v5403
    %v5532 = vunpack.c.l.b16 %v5404
    %v5533 = vunpack.c.l.b16 %v5405
    %v5534 = vunpack.c.l.b16 %v5406
    %v5535 = vunpack.c.l.b16 %v5407
    %v5536 = vunpack.c.l.b16 %v5408
    %v5537 = vunpack.c.l.b16 %v5409
    %v5538 = vunpack.c.l.b16 %v5410
    %v5539 = vunpack.c.l.b16 %v5411
    %v5540 = vunpack.c.l.b16 %v5412
    %v5541 = vunpack.c.l.b16 %v5413
    %v5542 = vunpack.c.l.b16 %v5414
    %v5543 = vunpack.c.l.b16 %v5415
    %v5544 = vunpack.c.l.b16 %v5416
    %v5545 = vunpack.c.l.b16 %v5417
    %v5546 = vunpack.c.l.b16 %v5418
    %v5547 = vunpack.c.l.b16 %v5419
    %v5548 = vunpack.c.l.b16 %v5420
    %v5549 = vunpack.c.l.b16 %v5421
    %v5550 = vunpack.c.l.b16 %v5422
    %v5551 = vunpack.c.l.b16 %v5423
    %v5552 = vunpack.c.l.b16 %v5424
    %v5553 = vunpack.c.l.b16 %v5425
    %v5554 = vunpack.c.l.b16 %v5426
    %v5555 = vunpack.c.l.b16 %v5427
    %v5556 = vunpack.c.l.b16 %v5428
    %v5557 = vunpack.c.l.b16 %v5429
    %v5558 = vunpack.c.l.b16 %v5430
    %v5559 = vunpack.c.l.b16 %v5431
    %v5560 = vunpack.c.l.b16 %v5432
    %v5561 = vunpack.c.l.b16 %v5433
    %v5562 = vunpack.c.l.b16 %v5434
    %v5563 = vunpack.c.l.b16 %v5435
    %v5564 = vunpack.c.l.b16 %v5436
    %v5565 = vunpack.c.l.b16 %v5437
    %v5566 = vunpack.c.l.b16 %v5438
    %v5567 = vunpack.c.l.b16 %v5439
    %v5568 = vunpack.c.l.b16 %v5440
    %v5569 = vunpack.c.l.b16 %v5441
    %v5570 = vunpack.c.l.b16 %v5442
    %v5571 = vunpack.c.l.b16 %v5443
    %v5572 = vunpack.c.l.b16 %v5444
    %v5573 = vunpack.c.l.b16 %v5445
    %v5574 = vunpack.c.l.b16 %v5446
    %v5575 = vunpack.c.l.b16 %v5447
    %v5576 = vunpack.c.l.b16 %v5448
    %v5577 = vunpack.c.l.b16 %v5449
    %v5578 = vunpack.c.l.b16 %v5450
    %v5579 = vunpack.c.l.b16 %v5451
    %v5580 = vpack.c.b16 %v5517, %v5516
    %v5581 = vpack.c.b16 %v5519, %v5518
    %v5582 = vpack.c.b16 %v5521, %v5520
    %v5583 = vpack.c.b16 %v5523, %v5522
    %v5584 = vpack.c.b16 %v5525, %v5524
    %v5585 = vpack.c.b16 %v5527, %v5526
    %v5586 = vpack.c.b16 %v5529, %v5528
    %v5587 = vpack.c.b16 %v5531, %v5530
    %v5588 = vpack.c.b16 %v5533, %v5532
    %v5589 = vpack.c.b16 %v5535, %v5534
    %v5590 = vpack.c.b16 %v5537, %v5536
    %v5591 = vpack.c.b16 %v5539, %v5538
    %v5592 = vpack.c.b16 %v5541, %v5540
    %v5593 = vpack.c.b16 %v5543, %v5542
    %v5594 = vpack.c.b16 %v5545, %v5544
    %v5595 = vpack.c.b16 %v5547, %v5546
    %v5596 = vpack.c.b16 %v5549, %v5548
    %v5597 = vpack.c.b16 %v5551, %v5550
    %v5598 = vpack.c.b16 %v5553, %v5552
    %v5599 = vpack.c.b16 %v5555, %v5554
    %v5600 = vpack.c.b16 %v5557, %v5556
    %v5601 = vpack.c.b16 %v5559, %v5558
    %v5602 = vpack.c.b16 %v5561, %v5560
    %v5603 = vpack.c.b16 %v5563, %v5562
    %v5604 = vpack.c.b16 %v5565, %v5564
    %v5605 = vpack.c.b16 %v5567, %v5566
    %v5606 = vpack.c.b16 %v5569, %v5568
    %v5607 = vpack.c.b16 %v5571, %v5570
    %v5608 = vpack.c.b16 %v5573, %v5572
    %v5609 = vpack.c.b16 %v5575, %v5574
    %v5610 = vpack.c.b16 %v5577, %v5576
    %v5611 = vpack.c.b16 %v5579, %v5578
    %5644 = vmatprep.subr.bf16.mxu0 0
    %5645 = vmatpush1.bf16.msra.mxu0 %v5587
    %5646 = vmatprep.subr.bf16.mxu0 0
    %5647 = vmatpush1.bf16.msra.mxu0 %v5586
    %5648 = vmatprep.subr.bf16.mxu0 0
    %5649 = vmatpush1.bf16.msra.mxu0 %v5585
    %5650 = vmatprep.subr.bf16.mxu0 0
    %5651 = vmatpush1.bf16.msra.mxu0 %v5584
    %5652 = vmatprep.subr.bf16.mxu0 0
    %5653 = vmatpush1.bf16.msra.mxu0 %v5583
    %5654 = vmatprep.subr.bf16.mxu0 0
    %5655 = vmatpush1.bf16.msra.mxu0 %v5582
    %5656 = vmatprep.subr.bf16.mxu0 0
    %5657 = vmatpush1.bf16.msra.mxu0 %v5581
    %5658 = vmatprep.subr.bf16.mxu0 0
    %5659 = vmatpush1.bf16.msra.mxu0 %v5580
    %5660 = vmatprep.subr.bf16.mxu0 0
    %5661 = vmatpush2.bf16.msra.mxu0 %v5595
    %5662 = vmatprep.subr.bf16.mxu0 0
    %5663 = vmatpush2.bf16.msra.mxu0 %v5594
    %5664 = vmatprep.subr.bf16.mxu0 0
    %5665 = vmatpush2.bf16.msra.mxu0 %v5593
    %5666 = vmatprep.subr.bf16.mxu0 0
    %5667 = vmatpush2.bf16.msra.mxu0 %v5592
    %5668 = vmatprep.subr.bf16.mxu0 0
    %5669 = vmatpush2.bf16.msra.mxu0 %v5591
    %5670 = vmatprep.subr.bf16.mxu0 0
    %5671 = vmatpush2.bf16.msra.mxu0 %v5590
    %5672 = vmatprep.subr.bf16.mxu0 0
    %5673 = vmatpush2.bf16.msra.mxu0 %v5589
    %5674 = vmatprep.subr.bf16.mxu0 0
    %5675 = vmatpush2.bf16.msra.mxu0 %v5588
    %5676 = vmatprep.mubr.bf16.mxu0 %v5373
    %5677 = vmatmul.mubr.bf16.gmra.mxu0 %v5372
    %v5678 = vpop.f32.mrf.mxu0
    %v5679 = vadd.f32 0.0, %v5678
    %v5680 = vpop.f32.mrf.mxu0
    %v5681 = vpop.f32.mrf.mxu0
    %v5682 = vadd.f32 0.0, %v5681
    %v5683 = vpop.f32.mrf.mxu0
    %5684 = vmatprep.mubr.bf16.mxu0 %v5377
    %5685 = vmatmul.mubr.bf16.gmra.mxu0 %v5376
    %v5686 = vpop.f32.mrf.mxu0
    %v5687 = vadd.f32 0.0, %v5686
    %v5688 = vpop.f32.mrf.mxu0
    %v5689 = vpop.f32.mrf.mxu0
    %v5690 = vadd.f32 0.0, %v5689
    %v5691 = vpop.f32.mrf.mxu0
    %5692 = vmatprep.mubr.bf16.mxu0 %v5381
    %5693 = vmatmul.mubr.bf16.gmra.mxu0 %v5380
    %v5694 = vpop.f32.mrf.mxu0
    %v5695 = vadd.f32 0.0, %v5694
    %v5696 = vpop.f32.mrf.mxu0
    %v5697 = vpop.f32.mrf.mxu0
    %v5698 = vadd.f32 0.0, %v5697
    %v5699 = vpop.f32.mrf.mxu0
    %5700 = vmatprep.mubr.bf16.mxu0 %v5385
    %5701 = vmatmul.mubr.bf16.gmra.mxu0 %v5384
    %v5702 = vpop.f32.mrf.mxu0
    %v5703 = vadd.f32 0.0, %v5702
    %v5704 = vpop.f32.mrf.mxu0
    %v5705 = vpop.f32.mrf.mxu0
    %v5706 = vadd.f32 0.0, %v5705
    %v5707 = vpop.f32.mrf.mxu0
    %5708 = vdwg.mxu0
    %5709 = vmatprep.subr.bf16.mxu0 0
    %5710 = vmatpush1.bf16.msra.mxu0 %v5603
    %5711 = vmatprep.subr.bf16.mxu0 0
    %5712 = vmatpush1.bf16.msra.mxu0 %v5602
    %5713 = vmatprep.subr.bf16.mxu0 0
    %5714 = vmatpush1.bf16.msra.mxu0 %v5601
    %5715 = vmatprep.subr.bf16.mxu0 0
    %5716 = vmatpush1.bf16.msra.mxu0 %v5600
    %5717 = vmatprep.subr.bf16.mxu0 0
    %5718 = vmatpush1.bf16.msra.mxu0 %v5599
    %5719 = vmatprep.subr.bf16.mxu0 0
    %5720 = vmatpush1.bf16.msra.mxu0 %v5598
    %5721 = vmatprep.subr.bf16.mxu0 0
    %5722 = vmatpush1.bf16.msra.mxu0 %v5597
    %5723 = vmatprep.subr.bf16.mxu0 0
    %5724 = vmatpush1.bf16.msra.mxu0 %v5596
    %5725 = vmatprep.subr.bf16.mxu0 0
    %5726 = vmatpush2.bf16.msra.mxu0 %v5611
    %5727 = vmatprep.subr.bf16.mxu0 0
    %5728 = vmatpush2.bf16.msra.mxu0 %v5610
    %5729 = vmatprep.subr.bf16.mxu0 0
    %5730 = vmatpush2.bf16.msra.mxu0 %v5609
    %5731 = vmatprep.subr.bf16.mxu0 0
    %5732 = vmatpush2.bf16.msra.mxu0 %v5608
    %5733 = vmatprep.subr.bf16.mxu0 0
    %5734 = vmatpush2.bf16.msra.mxu0 %v5607
    %5735 = vmatprep.subr.bf16.mxu0 0
    %5736 = vmatpush2.bf16.msra.mxu0 %v5606
    %5737 = vmatprep.subr.bf16.mxu0 0
    %5738 = vmatpush2.bf16.msra.mxu0 %v5605
    %5739 = vmatprep.subr.bf16.mxu0 0
    %5740 = vmatpush2.bf16.msra.mxu0 %v5604
    %5741 = vmatprep.mubr.bf16.mxu0 %v5375
    %5742 = vmatmul.mubr.bf16.gmra.mxu0 %v5374
    %v5743 = vpop.f32.mrf.mxu0
    %v5744 = vadd.f32 %v5679, %v5743
    %v5745 = vpop.f32.mrf.mxu0
    %v5746 = vpop.f32.mrf.mxu0
    %v5747 = vadd.f32 %v5682, %v5746
    %v5748 = vpop.f32.mrf.mxu0
    %5749 = vmatprep.mubr.bf16.mxu0 %v5379
    %5750 = vmatmul.mubr.bf16.gmra.mxu0 %v5378
    %v5751 = vpop.f32.mrf.mxu0
    %v5752 = vadd.f32 %v5687, %v5751
    %v5753 = vpop.f32.mrf.mxu0
    %v5754 = vpop.f32.mrf.mxu0
    %v5755 = vadd.f32 %v5690, %v5754
    %v5756 = vpop.f32.mrf.mxu0
    %5757 = vmatprep.mubr.bf16.mxu0 %v5383
    %5758 = vmatmul.mubr.bf16.gmra.mxu0 %v5382
    %v5759 = vpop.f32.mrf.mxu0
    %v5760 = vadd.f32 %v5695, %v5759
    %v5761 = vpop.f32.mrf.mxu0
    %v5762 = vpop.f32.mrf.mxu0
    %v5763 = vadd.f32 %v5698, %v5762
    %v5764 = vpop.f32.mrf.mxu0
    %5765 = vmatprep.mubr.bf16.mxu0 %v5387
    %5766 = vmatmul.mubr.bf16.gmra.mxu0 %v5386
    %v5767 = vpop.f32.mrf.mxu0
    %v5768 = vadd.f32 %v5703, %v5767
    %v5769 = vpop.f32.mrf.mxu0
    %v5770 = vpop.f32.mrf.mxu0
    %v5771 = vadd.f32 %v5706, %v5770
    %v5772 = vpop.f32.mrf.mxu0
    %5773 = vdwg.mxu0
    %v5774 = vadd.f32 %v4972, %v5744
    %v5775 = vadd.f32 %v4973, %v5747
    %v5776 = vadd.f32 %v4974, %v5752
    %v5777 = vadd.f32 %v4975, %v5755
    %v5778 = vadd.f32 %v4976, %v5760
    %v5779 = vadd.f32 %v4977, %v5763
    %v5780 = vadd.f32 %v4978, %v5768
    %v5781 = vadd.f32 %v4979, %v5771
    %v5782 = vld [vmem:[%s10] sm:$0x1]
    %v5784 = vlaneseq
    %v5785 = vshrl.u32 %v5784, 7
    %v5786 = vsub.s32 0, %v5785
    %v5787 = vrot.slane %v5782, %v5786
    %v5789 = vadd.f32 %v5774, %v5787
    %v5790 = vadd.f32 %v5775, %v5787
    %v5791 = vadd.f32 %v5776, %v5787
    %v5792 = vadd.f32 %v5777, %v5787
    %v5793 = vadd.f32 %v5778, %v5787
    %v5794 = vadd.f32 %v5779, %v5787
    %v5795 = vadd.f32 %v5780, %v5787
    %v5796 = vadd.f32 %v5781, %v5787
    %v5797 = vadd.f32 %v2578, %v5789
    %v5798 = vadd.f32 %v2579, %v5790
    %v5799 = vadd.f32 %v2580, %v5791
    %v5800 = vadd.f32 %v2581, %v5792
    %v5801 = vadd.f32 %v2582, %v5793
    %v5802 = vadd.f32 %v2583, %v5794
    %v5803 = vadd.f32 %v2584, %v5795
    %v5804 = vadd.f32 %v2585, %v5796
    %v5805 = vld [vmem:[%s11] sm:$0x1]
    %v5806 = vld [vmem:[%s12] sm:$0x1]
    %5807 = vadd.xlane.f32.xlu0 %v5797
    %v5808 = vpop.xlane.xlu0 %5807
    %5809 = vadd.xlane.f32.xlu0 %v5798
    %v5810 = vpop.xlane.xlu0 %5809
    %5811 = vadd.xlane.f32.xlu0 %v5799
    %v5812 = vpop.xlane.xlu0 %5811
    %5813 = vadd.xlane.f32.xlu0 %v5800
    %v5814 = vpop.xlane.xlu0 %5813
    %5815 = vadd.xlane.f32.xlu0 %v5801
    %v5816 = vpop.xlane.xlu0 %5815
    %5817 = vadd.xlane.f32.xlu0 %v5802
    %v5818 = vpop.xlane.xlu0 %5817
    %5819 = vadd.xlane.f32.xlu0 %v5803
    %v5820 = vpop.xlane.xlu0 %5819
    %5821 = vadd.xlane.f32.xlu0 %v5804
    %v5822 = vpop.xlane.xlu0 %5821
    %v5823 = vmul.f32 %v5808, %v2485
    %v5824 = vmul.f32 %v5810, %v2485
    %v5825 = vmul.f32 %v5812, %v2485
    %v5826 = vmul.f32 %v5814, %v2485
    %v5827 = vmul.f32 %v5816, %v2485
    %v5828 = vmul.f32 %v5818, %v2485
    %v5829 = vmul.f32 %v5820, %v2485
    %v5830 = vmul.f32 %v5822, %v2485
    %v5831 = vsub.f32 %v5797, %v5823
    %v5832 = vsub.f32 %v5798, %v5824
    %v5833 = vsub.f32 %v5799, %v5825
    %v5834 = vsub.f32 %v5800, %v5826
    %v5835 = vsub.f32 %v5801, %v5827
    %v5836 = vsub.f32 %v5802, %v5828
    %v5837 = vsub.f32 %v5803, %v5829
    %v5838 = vsub.f32 %v5804, %v5830
    %v5839 = vmul.f32 %v5831, %v5831
    %v5840 = vmul.f32 %v5832, %v5832
    %v5841 = vmul.f32 %v5833, %v5833
    %v5842 = vmul.f32 %v5834, %v5834
    %v5843 = vmul.f32 %v5835, %v5835
    %v5844 = vmul.f32 %v5836, %v5836
    %v5845 = vmul.f32 %v5837, %v5837
    %v5846 = vmul.f32 %v5838, %v5838
    %5847 = vadd.xlane.f32.xlu0 %v5839
    %v5848 = vpop.xlane.xlu0 %5847
    %5849 = vadd.xlane.f32.xlu0 %v5840
    %v5850 = vpop.xlane.xlu0 %5849
    %5851 = vadd.xlane.f32.xlu0 %v5841
    %v5852 = vpop.xlane.xlu0 %5851
    %5853 = vadd.xlane.f32.xlu0 %v5842
    %v5854 = vpop.xlane.xlu0 %5853
    %5855 = vadd.xlane.f32.xlu0 %v5843
    %v5856 = vpop.xlane.xlu0 %5855
    %5857 = vadd.xlane.f32.xlu0 %v5844
    %v5858 = vpop.xlane.xlu0 %5857
    %5859 = vadd.xlane.f32.xlu0 %v5845
    %v5860 = vpop.xlane.xlu0 %5859
    %5861 = vadd.xlane.f32.xlu0 %v5846
    %v5862 = vpop.xlane.xlu0 %5861
    %v5863 = vmul.f32 %v5848, %v2485
    %v5864 = vmul.f32 %v5850, %v2485
    %v5865 = vmul.f32 %v5852, %v2485
    %v5866 = vmul.f32 %v5854, %v2485
    %v5867 = vmul.f32 %v5856, %v2485
    %v5868 = vmul.f32 %v5858, %v2485
    %v5869 = vmul.f32 %v5860, %v2485
    %v5870 = vmul.f32 %v5862, %v2485
    %v5871 = vadd.f32 %v5863, 1e-05
    %v5872 = vadd.f32 %v5864, 1e-05
    %v5873 = vadd.f32 %v5865, 1e-05
    %v5874 = vadd.f32 %v5866, 1e-05
    %v5875 = vadd.f32 %v5867, 1e-05
    %v5876 = vadd.f32 %v5868, 1e-05
    %v5877 = vadd.f32 %v5869, 1e-05
    %v5878 = vadd.f32 %v5870, 1e-05
    %v5879 = vrsqrt.pop %v5871
    %v5880 = vrsqrt.pop %v5872
    %v5881 = vrsqrt.pop %v5873
    %v5882 = vrsqrt.pop %v5874
    %v5883 = vrsqrt.pop %v5875
    %v5884 = vrsqrt.pop %v5876
    %v5885 = vrsqrt.pop %v5877
    %v5886 = vrsqrt.pop %v5878
    %v5887 = vmul.f32 %v5831, %v5879
    %v5888 = vmul.f32 %v5832, %v5880
    %v5889 = vmul.f32 %v5833, %v5881
    %v5890 = vmul.f32 %v5834, %v5882
    %v5891 = vmul.f32 %v5835, %v5883
    %v5892 = vmul.f32 %v5836, %v5884
    %v5893 = vmul.f32 %v5837, %v5885
    %v5894 = vmul.f32 %v5838, %v5886
    %v5896 = vlaneseq
    %v5897 = vshrl.u32 %v5896, 7
    %v5898 = vsub.s32 0, %v5897
    %v5899 = vrot.slane %v5805, %v5898
    %v5901 = vmul.f32 %v5887, %v5899
    %v5902 = vmul.f32 %v5888, %v5899
    %v5903 = vmul.f32 %v5889, %v5899
    %v5904 = vmul.f32 %v5890, %v5899
    %v5905 = vmul.f32 %v5891, %v5899
    %v5906 = vmul.f32 %v5892, %v5899
    %v5907 = vmul.f32 %v5893, %v5899
    %v5908 = vmul.f32 %v5894, %v5899
    %v5910 = vlaneseq
    %v5911 = vshrl.u32 %v5910, 7
    %v5912 = vsub.s32 0, %v5911
    %v5913 = vrot.slane %v5806, %v5912
    %v5915 = vadd.f32 %v5901, %v5913
    %v5916 = vadd.f32 %v5902, %v5913
    %v5917 = vadd.f32 %v5903, %v5913
    %v5918 = vadd.f32 %v5904, %v5913
    %v5919 = vadd.f32 %v5905, %v5913
    %v5920 = vadd.f32 %v5906, %v5913
    %v5921 = vadd.f32 %v5907, %v5913
    %v5922 = vadd.f32 %v5908, %v5913
    %5923 = vst [vmem:[#allocation10] sm:$0xff] %v5915
    %5924 = vst [vmem:[#allocation10 + $0x8] sm:$0xff] %v5916
    %5925 = vst [vmem:[#allocation10 + $0x10] sm:$0xff] %v5917
    %5926 = vst [vmem:[#allocation10 + $0x18] sm:$0xff] %v5918
    %5927 = vst [vmem:[#allocation10 + $0x20] sm:$0xff] %v5919
    %5928 = vst [vmem:[#allocation10 + $0x28] sm:$0xff] %v5920
    %5929 = vst [vmem:[#allocation10 + $0x30] sm:$0xff] %v5921
    %5930 = vst [vmem:[#allocation10 + $0x38] sm:$0xff] %v5922
    // Predicated region
    $region66: #{_forward.1} parent=1 // pred_check
      _
    $region67: #{_forward.1} parent=1 // pred_check_branch
      %5932 = sbr.rel (0) target = $region69
    $region68: #{_forward.1} parent=1 // pred_region
      %s5934 = ssub.s32 1024, 1024
      %5935 = vsyncadd [#allocation6], %s5934
      %s5936 = sshll.u32 [#allocation10], 4
      %s5937 = int_to_ptr.vmem [resolvable:$true] %s5936
      %5942 = dma.vmem_to_hbm [thread:$0]  %s5937, 1024, %s13, [#allocation6], 128, 128, 8
    $region69: #{_forward.1} parent=1 // pred_fallthru
      _
    // Predicated region
    $region70: #{_forward.1} parent=1 // pred_check
      _
    $region71: #{_forward.1} parent=1 // pred_check_branch
      %5944 = sbr.rel (0) target = $region73
    $region72: #{_forward.1} parent=1 // pred_region
      %5945 = dma.done [#allocation6], 1024
    $region73: #{_forward.1} parent=1 // pred_fallthru
      _
    %5946 = vsyncpa [#allocation5], 1
    %5947 = vsyncpa [#allocation8], 1
    %5948 = vsyncpa [#allocation6], 1

</llo_original>
